<compile_context>
chip_gen: v5e
topology: v5e:2x2
jax: 0.10.0
libtpu: 0.0.40
codegen_flags: <defaults>
</compile_context>

<pallas_src>
import functools

import jax
import jax.numpy as jnp
from jax.experimental import pallas as pl
from jax.experimental.pallas import tpu as pltpu


def _round_up(n, m):
    return ((n + m - 1) // m) * m


def _cdiv(a, b):
    return -(-a // b)


# ---------------------------------------------------------------------------
# Pallas kernel: fused VAE forward over one batch tile
# ---------------------------------------------------------------------------
def _vae_forward_kernel(
    x_ref, eps_ref,
    w1_ref, b1_ref, w2_ref, b2_ref,
    wmulv_ref, bmulv_ref,
    wd1_ref, bd1_ref, wd2_ref, bd2_ref, wd3_ref, bd3_ref,
    dec_ref, mulv_ref,
    *, l_pad,
):
    mm = jnp.bfloat16  # MXU input dtype; accumulation stays f32

    # ---- encoder: Linear(D, 256) + ReLU ; Linear(256, 128) + ReLU
    # x is already bf16 (cast in the wrapper, halves the input DMA bytes).
    h = jnp.dot(x_ref[...], w1_ref[...], preferred_element_type=jnp.float32) + b1_ref[...]
    h = jnp.maximum(h, 0.0)
    h = jnp.dot(h.astype(mm), w2_ref[...], preferred_element_type=jnp.float32) + b2_ref[...]
    h = jnp.maximum(h, 0.0)

    # ---- fused mu|logvar head: single [128, 2*L_pad] matmul kept in f32
    # (tiny matmul; preserves precision of mu/logvar for any downstream KL)
    mulv = (jnp.dot(h, wmulv_ref[...], preferred_element_type=jnp.float32)
            + bmulv_ref[...])
    mu = mulv[:, :l_pad]
    logvar = mulv[:, l_pad:]

    # ---- reparameterize: z = mu + eps * exp(0.5 * logvar)
    z = mu + eps_ref[...] * jnp.exp(0.5 * logvar)

    # ---- decoder: Linear(L,128)+ReLU ; Linear(128,256)+ReLU ; Linear(256,D)+Sigmoid
    d = jnp.dot(z.astype(mm), wd1_ref[...], preferred_element_type=jnp.float32) + bd1_ref[...]
    d = jnp.maximum(d, 0.0)
    d = jnp.dot(d.astype(mm), wd2_ref[...], preferred_element_type=jnp.float32) + bd2_ref[...]
    d = jnp.maximum(d, 0.0)
    d = jnp.dot(d.astype(mm), wd3_ref[...], preferred_element_type=jnp.float32) + bd3_ref[...]
    d = jax.nn.sigmoid(d)

    dec_ref[...] = d.astype(dec_ref.dtype)
    mulv_ref[...] = mulv.astype(mulv_ref.dtype)


# ---------------------------------------------------------------------------
# Parameter preparation: pad to lane-dense shapes, fuse mu|logvar
# ---------------------------------------------------------------------------
def _prepare_params(p, d_pad, l_pad, matmul_dtype=jnp.bfloat16):
    def pad2(a, r, c):
        out = jnp.zeros((r, c), jnp.float32)
        return out.at[: a.shape[0], : a.shape[1]].set(a)

    w1 = pad2(p["w1"], d_pad, 256).astype(matmul_dtype)      # (d_pad, 256)
    b1 = p["b1"].astype(jnp.float32)                         # (1, 256)
    w2 = p["w2"].astype(matmul_dtype)                        # (256, 128)
    b2 = p["b2"].astype(jnp.float32)                         # (1, 128)
    # fused mu|logvar head, kept f32 (tiny; KL-grade precision)
    wmulv = jnp.concatenate(
        [pad2(p["wmu"], 128, l_pad), pad2(p["wlv"], 128, l_pad)], axis=1
    ).astype(jnp.float32)                                    # (128, 2*l_pad)
    bmulv = jnp.concatenate(
        [pad2(p["bmu"], 1, l_pad), pad2(p["blv"], 1, l_pad)], axis=1
    ).astype(jnp.float32)                                    # (1, 2*l_pad)
    wd1 = pad2(p["wd1"], l_pad, 128).astype(matmul_dtype)    # (l_pad, 128)
    bd1 = p["bd1"].astype(jnp.float32)                       # (1, 128)
    wd2 = p["wd2"].astype(matmul_dtype)                      # (128, 256)
    bd2 = p["bd2"].astype(jnp.float32)                       # (1, 256)
    wd3 = pad2(p["wd3"], 256, d_pad).astype(matmul_dtype)    # (256, d_pad)
    bd3 = pad2(p["bd3"], 1, d_pad).astype(jnp.float32)       # (1, d_pad)
    return (w1, b1, w2, b2, wmulv, bmulv, wd1, bd1, wd2, bd2, wd3, bd3)


# ---------------------------------------------------------------------------
# Wrapper: pad inputs, tile over batch, call the fused kernel, slice outputs.
# Returns [decoded, input, mu, logvar] exactly like VAE.forward.
# ---------------------------------------------------------------------------
def vae_forward(x, eps, params, *, block_b=512, min_grid_steps=2):
    B, input_dim = x.shape
    latent_dim = eps.shape[1]

    d_pad = _round_up(input_dim, 128)
    l_pad = _round_up(latent_dim, 128)

    # ---- balanced batch tiling:
    #   * at least `min_grid_steps` steps when B > 16 so both v7x TensorCores
    #     get work through dimension_semantics=("parallel",),
    #   * tile rows a multiple of 16 (bf16 sublane packing of x),
    #   * tb ~ cdiv(B, n_steps) so the last tile is nearly full (little waste).
    want_steps = min_grid_steps if B > 16 else 1
    n_steps = max(want_steps, _cdiv(B, max(16, block_b)))
    tb = _round_up(_cdiv(B, n_steps), 16)
    n_steps = max(_cdiv(B, tb), 1)
    b_pad = tb * n_steps
    grid = (n_steps,)

    # Zero-padded, lane-dense activations.  Zero padding keeps the math exact:
    # padded latent cols give mu=0, logvar=0, eps=0 -> z=0 -> zero contribution.
    # x is pre-cast to bf16 here (it is quantized to bf16 before the MXU anyway).
    x_p = jnp.zeros((b_pad, d_pad), jnp.bfloat16)
    x_p = x_p.at[:B, :input_dim].set(x.astype(jnp.bfloat16))
    eps_p = jnp.zeros((b_pad, l_pad), jnp.float32)
    eps_p = eps_p.at[:B, :latent_dim].set(eps.astype(jnp.float32))

    weights = _prepare_params(params, d_pad, l_pad)
    w1, b1, w2, b2, wmulv, bmulv, wd1, bd1, wd2, bd2, wd3, bd3 = weights
    w_bytes = sum(int(w.size) * w.dtype.itemsize for w in weights)

    # VMEM budget derived from the actual footprint (double-buffered
    # activations + weights), clamped to [32 MiB, 112 MiB].
    act_bytes = tb * (d_pad * 2 + l_pad * 4 + d_pad * 4 + 2 * l_pad * 4)
    vmem_limit = int(max(32 << 20, min(112 << 20,
                                       4 * act_bytes + 2 * w_bytes + (8 << 20))))

    # Advisory cost estimate for XLA's scheduler around the custom call.
    flops = 2 * b_pad * (d_pad * 256 + 256 * 128 + 128 * (2 * l_pad)
                         + l_pad * 128 + 128 * 256 + 256 * d_pad)
    transcendentals = b_pad * (l_pad + d_pad)       # exp (reparam) + sigmoid
    bytes_accessed = (b_pad * d_pad * 2             # x (bf16)
                      + b_pad * l_pad * 4           # eps
                      + w_bytes                     # weights / biases
                      + b_pad * d_pad * 4           # decoded out
                      + b_pad * 2 * l_pad * 4)      # mu|logvar out
    cost = pl.CostEstimate(flops=flops, transcendentals=transcendentals,
                           bytes_accessed=bytes_accessed)

    out_shape = (
        jax.ShapeDtypeStruct((b_pad, d_pad), jnp.float32),       # decoded (padded)
        jax.ShapeDtypeStruct((b_pad, 2 * l_pad), jnp.float32),   # mu|logvar slab
    )

    def build_call(single_buffer_weights):
        # Activations are blocked over batch; weights/biases use constant
        # index maps so they stay resident in VMEM across grid steps.
        act_spec = lambda cols: pl.BlockSpec((tb, cols), lambda i: (i, 0))
        if single_buffer_weights:
            res_spec = lambda shape: pl.BlockSpec(
                shape, lambda i: (0, 0), pipeline_mode=pl.Buffered(1))
        else:
            res_spec = lambda shape: pl.BlockSpec(shape, lambda i: (0, 0))
        return pl.pallas_call(
            functools.partial(_vae_forward_kernel, l_pad=l_pad),
            out_shape=out_shape,
            grid_spec=pltpu.PrefetchScalarGridSpec(
                num_scalar_prefetch=0,
                grid=grid,
                in_specs=[
                    act_spec(d_pad),                # x (bf16)
                    act_spec(l_pad),                # eps
                    res_spec((d_pad, 256)), res_spec((1, 256)),            # w1, b1
                    res_spec((256, 128)), res_spec((1, 128)),              # w2, b2
                    res_spec((128, 2 * l_pad)), res_spec((1, 2 * l_pad)),  # wmu|wlv fused
                    res_spec((l_pad, 128)), res_spec((1, 128)),            # wd1, bd1
                    res_spec((128, 256)), res_spec((1, 256)),              # wd2, bd2
                    res_spec((256, d_pad)), res_spec((1, d_pad)),          # wd3, bd3
                ],
                out_specs=(
                    act_spec(d_pad),
                    act_spec(2 * l_pad),
                ),
            ),
            compiler_params=pltpu.CompilerParams(
                dimension_semantics=("parallel",),   # shard batch tiles across TCs
                vmem_limit_bytes=vmem_limit,
            ),
            cost_estimate=cost,
        )

    args = (x_p, eps_p, w1, b1, w2, b2, wmulv, bmulv,
            wd1, bd1, wd2, bd2, wd3, bd3)
    try:
        decoded_p, mulv_p = build_call(single_buffer_weights=True)(*args)
        jax.block_until_ready((decoded_p, mulv_p))
    except Exception:
        # Fallback if this jax version rejects pipeline_mode=pl.Buffered(1)
        # on the top-level pallas_call pipeline.
        decoded_p, mulv_p = build_call(single_buffer_weights=False)(*args)

    decoded = decoded_p[:B, :input_dim]
    mu = mulv_p[:B, :latent_dim]
    logvar = mulv_p[:B, l_pad:l_pad + latent_dim]
    return [decoded, x, mu, logvar]


# ---------------------------------------------------------------------------
# Deterministic parameter init (shapes follow VAE.__init__; weights stored
# [in, out] so every layer is x @ W + b)
# ---------------------------------------------------------------------------
def init_params(key, input_dim, latent_dim):
    dims = [
        ("w1", (input_dim, 256)), ("b1", (1, 256)),
        ("w2", (256, 128)),       ("b2", (1, 128)),
        ("wmu", (128, latent_dim)), ("bmu", (1, latent_dim)),
        ("wlv", (128, latent_dim)), ("blv", (1, latent_dim)),
        ("wd1", (latent_dim, 128)), ("bd1", (1, 128)),
        ("wd2", (128, 256)),        ("bd2", (1, 256)),
        ("wd3", (256, input_dim)),  ("bd3", (1, input_dim)),
    ]
    params = {}
    keys = jax.random.split(key, len(dims))
    for k, (name, shape) in zip(keys, dims):
        params[name] = 0.05 * jax.random.normal(k, shape, dtype=jnp.float32)
    return params


# ---------------------------------------------------------------------------
# Pure-JAX f32 reference (module semantics) for the sanity check
# ---------------------------------------------------------------------------
def vae_forward_ref(x, eps, p):
    h = jax.nn.relu(x @ p["w1"] + p["b1"])
    h = jax.nn.relu(h @ p["w2"] + p["b2"])
    mu = h @ p["wmu"] + p["bmu"]
    logvar = h @ p["wlv"] + p["blv"]
    z = mu + eps * jnp.exp(0.5 * logvar)
    d = jax.nn.relu(z @ p["wd1"] + p["bd1"])
    d = jax.nn.relu(d @ p["wd2"] + p["bd2"])
    d = jax.nn.sigmoid(d @ p["wd3"] + p["bd3"])
    return d, mu, logvar


if __name__ == "__main__":
    # Small shapes consistent with the module: input_dim matches the module's
    # global (409); non-128 values exercise the lane-padding path.
    B = 24
    INPUT_DIM = 409
    LATENT_DIM = 16

    key = jax.random.PRNGKey(0)
    k_params, k_x, k_eps = jax.random.split(key, 3)

    params = init_params(k_params, INPUT_DIM, LATENT_DIM)
    x = jax.random.normal(k_x, (B, INPUT_DIM), dtype=jnp.float32)
    # reparameterize(): eps ~ N(0, 1), drawn deterministically here and passed in.
    # TODO(synk): torch.randn_like could instead be emulated in-kernel with
    # pltpu.prng_random_bits; kept as an explicit input for determinism.
    eps = jax.random.normal(k_eps, (B, LATENT_DIM), dtype=jnp.float32)

    decoded, x_out, mu, logvar = vae_forward(x, eps, params)
    jax.block_until_ready((decoded, mu, logvar))

    d_ref, mu_ref, lv_ref = vae_forward_ref(x, eps, params)
    assert decoded.shape == (B, INPUT_DIM)
    assert mu.shape == (B, LATENT_DIM) and logvar.shape == (B, LATENT_DIM)
    # bf16 MXU inputs with f32 accumulation -> small differences vs f32 ref
    assert jnp.allclose(decoded, d_ref, atol=3e-2, rtol=3e-2)
    assert jnp.allclose(mu, mu_ref, atol=3e-2, rtol=3e-2)
    assert jnp.allclose(logvar, lv_ref, atol=3e-2, rtol=3e-2)
    assert jnp.array_equal(x_out, x)

    # Different batch & tilings must agree: default (2 x tb=32) vs block_b=16
    # (3 x tb=16) exercise multi-step grids with VMEM-resident weights.
    B2 = 40
    x2 = jax.random.normal(jax.random.PRNGKey(1), (B2, INPUT_DIM), dtype=jnp.float32)
    eps2 = jax.random.normal(jax.random.PRNGKey(2), (B2, LATENT_DIM), dtype=jnp.float32)
    dA, _, muA, lvA = vae_forward(x2, eps2, params)
    dB, _, muB, lvB = vae_forward(x2, eps2, params, block_b=16)
    jax.block_until_ready((dA, dB))
    assert jnp.allclose(dA, dB, atol=1e-6)
    assert jnp.allclose(muA, muB, atol=1e-6)
    assert jnp.allclose(lvA, lvB, atol=1e-6)

    print("KERNEL_OK")
</pallas_src>

<mosaic_0001>
module attributes {stable_mosaic.version = 11 : i64} {
  func.func @_vae_forward_kernel(%arg0: i32, %arg1: memref<16x512xbf16, #tpu.memory_space<vmem>>, %arg2: memref<16x128xf32, #tpu.memory_space<vmem>>, %arg3: memref<512x256xbf16, #tpu.memory_space<vmem>>, %arg4: memref<1x256xf32, #tpu.memory_space<vmem>>, %arg5: memref<256x128xbf16, #tpu.memory_space<vmem>>, %arg6: memref<1x128xf32, #tpu.memory_space<vmem>>, %arg7: memref<128x256xf32, #tpu.memory_space<vmem>>, %arg8: memref<1x256xf32, #tpu.memory_space<vmem>>, %arg9: memref<128x128xbf16, #tpu.memory_space<vmem>>, %arg10: memref<1x128xf32, #tpu.memory_space<vmem>>, %arg11: memref<128x256xbf16, #tpu.memory_space<vmem>>, %arg12: memref<1x256xf32, #tpu.memory_space<vmem>>, %arg13: memref<256x512xbf16, #tpu.memory_space<vmem>>, %arg14: memref<1x512xf32, #tpu.memory_space<vmem>>, %arg15: memref<16x512xf32, #tpu.memory_space<vmem>>, %arg16: memref<16x256xf32, #tpu.memory_space<vmem>>) attributes {dimension_semantics = [#tpu.dimension_semantics<parallel>], iteration_bounds = array<i64: 2>, scalar_prefetch = 0 : i64, scratch_operands = 0 : i64, tpu.core_type = #tpu.core_type<tc>, window_params = [{transform_indices = @transform_0, window_bounds = array<i64: 16, 512>}, {transform_indices = @transform_1, window_bounds = array<i64: 16, 128>}, {pipeline_mode = #tpu.pipeline_mode<synchronous>, transform_indices = @transform_2, window_bounds = array<i64: 512, 256>}, {pipeline_mode = #tpu.pipeline_mode<synchronous>, transform_indices = @transform_3, window_bounds = array<i64: 1, 256>}, {pipeline_mode = #tpu.pipeline_mode<synchronous>, transform_indices = @transform_4, window_bounds = array<i64: 256, 128>}, {pipeline_mode = #tpu.pipeline_mode<synchronous>, transform_indices = @transform_5, window_bounds = array<i64: 1, 128>}, {pipeline_mode = #tpu.pipeline_mode<synchronous>, transform_indices = @transform_6, window_bounds = array<i64: 128, 256>}, {pipeline_mode = #tpu.pipeline_mode<synchronous>, transform_indices = @transform_7, window_bounds = array<i64: 1, 256>}, {pipeline_mode = #tpu.pipeline_mode<synchronous>, transform_indices = @transform_8, window_bounds = array<i64: 128, 128>}, {pipeline_mode = #tpu.pipeline_mode<synchronous>, transform_indices = @transform_9, window_bounds = array<i64: 1, 128>}, {pipeline_mode = #tpu.pipeline_mode<synchronous>, transform_indices = @transform_10, window_bounds = array<i64: 128, 256>}, {pipeline_mode = #tpu.pipeline_mode<synchronous>, transform_indices = @transform_11, window_bounds = array<i64: 1, 256>}, {pipeline_mode = #tpu.pipeline_mode<synchronous>, transform_indices = @transform_12, window_bounds = array<i64: 256, 512>}, {pipeline_mode = #tpu.pipeline_mode<synchronous>, transform_indices = @transform_13, window_bounds = array<i64: 1, 512>}, {transform_indices = @transform_14, window_bounds = array<i64: 16, 512>}, {transform_indices = @transform_15, window_bounds = array<i64: 16, 256>}]} {
    %c0 = arith.constant 0 : index
    %c0_0 = arith.constant 0 : index
    %0 = vector.load %arg1[%c0, %c0_0] : memref<16x512xbf16, #tpu.memory_space<vmem>>, vector<16x512xbf16>
    %c0_1 = arith.constant 0 : index
    %c0_2 = arith.constant 0 : index
    %1 = vector.load %arg3[%c0_1, %c0_2] : memref<512x256xbf16, #tpu.memory_space<vmem>>, vector<512x256xbf16>
    %cst = arith.constant dense<0.000000e+00> : vector<16x256xf32>
    %2 = tpu.matmul %0, %1, %cst {dimension_numbers = #tpu.dot_dimension_numbers<[1], [0], [0], [1], [0, 0, 1, 1], [], []>} : vector<16x512xbf16>, vector<512x256xbf16>, vector<16x256xf32> -> vector<16x256xf32>
    %c0_3 = arith.constant 0 : index
    %c0_4 = arith.constant 0 : index
    %3 = vector.load %arg4[%c0_3, %c0_4] : memref<1x256xf32, #tpu.memory_space<vmem>>, vector<1x256xf32>
    %4 = vector.broadcast %3 : vector<1x256xf32> to vector<16x256xf32>
    %5 = arith.addf %2, %4 : vector<16x256xf32>
    %cst_5 = arith.constant 0.000000e+00 : f32
    %6 = vector.broadcast %cst_5 : f32 to vector<16x256xf32>
    %7 = arith.maximumf %5, %6 : vector<16x256xf32>
    %8 = arith.truncf %7 : vector<16x256xf32> to vector<16x256xbf16>
    %c0_6 = arith.constant 0 : index
    %c0_7 = arith.constant 0 : index
    %9 = vector.load %arg5[%c0_6, %c0_7] : memref<256x128xbf16, #tpu.memory_space<vmem>>, vector<256x128xbf16>
    %cst_8 = arith.constant dense<0.000000e+00> : vector<16x128xf32>
    %10 = tpu.matmul %8, %9, %cst_8 {dimension_numbers = #tpu.dot_dimension_numbers<[1], [0], [0], [1], [0, 0, 1, 1], [], []>} : vector<16x256xbf16>, vector<256x128xbf16>, vector<16x128xf32> -> vector<16x128xf32>
    %c0_9 = arith.constant 0 : index
    %c0_10 = arith.constant 0 : index
    %11 = vector.load %arg6[%c0_9, %c0_10] : memref<1x128xf32, #tpu.memory_space<vmem>>, vector<1x128xf32>
    %12 = vector.broadcast %11 : vector<1x128xf32> to vector<16x128xf32>
    %13 = arith.addf %10, %12 : vector<16x128xf32>
    %cst_11 = arith.constant 0.000000e+00 : f32
    %14 = vector.broadcast %cst_11 : f32 to vector<16x128xf32>
    %15 = arith.maximumf %13, %14 : vector<16x128xf32>
    %c0_12 = arith.constant 0 : index
    %c0_13 = arith.constant 0 : index
    %16 = vector.load %arg7[%c0_12, %c0_13] : memref<128x256xf32, #tpu.memory_space<vmem>>, vector<128x256xf32>
    %cst_14 = arith.constant dense<0.000000e+00> : vector<16x256xf32>
    %17 = tpu.matmul %15, %16, %cst_14 {dimension_numbers = #tpu.dot_dimension_numbers<[1], [0], [0], [1], [0, 0, 1, 1], [], []>} : vector<16x128xf32>, vector<128x256xf32>, vector<16x256xf32> -> vector<16x256xf32>
    %c0_15 = arith.constant 0 : index
    %c0_16 = arith.constant 0 : index
    %18 = vector.load %arg8[%c0_15, %c0_16] : memref<1x256xf32, #tpu.memory_space<vmem>>, vector<1x256xf32>
    %19 = vector.broadcast %18 : vector<1x256xf32> to vector<16x256xf32>
    %20 = arith.addf %17, %19 : vector<16x256xf32>
    %21 = vector.extract_strided_slice %20 {offsets = [0, 0], sizes = [16, 128], strides = [1, 1]} : vector<16x256xf32> to vector<16x128xf32>
    %22 = vector.extract_strided_slice %20 {offsets = [0, 128], sizes = [16, 128], strides = [1, 1]} : vector<16x256xf32> to vector<16x128xf32>
    %c0_17 = arith.constant 0 : index
    %c0_18 = arith.constant 0 : index
    %23 = vector.load %arg2[%c0_17, %c0_18] : memref<16x128xf32, #tpu.memory_space<vmem>>, vector<16x128xf32>
    %cst_19 = arith.constant 5.000000e-01 : f32
    %24 = vector.broadcast %cst_19 : f32 to vector<16x128xf32>
    %25 = arith.mulf %24, %22 : vector<16x128xf32>
    %26 = math.exp %25 : vector<16x128xf32>
    %27 = arith.mulf %23, %26 : vector<16x128xf32>
    %28 = arith.addf %21, %27 : vector<16x128xf32>
    %29 = arith.truncf %28 : vector<16x128xf32> to vector<16x128xbf16>
    %c0_20 = arith.constant 0 : index
    %c0_21 = arith.constant 0 : index
    %30 = vector.load %arg9[%c0_20, %c0_21] : memref<128x128xbf16, #tpu.memory_space<vmem>>, vector<128x128xbf16>
    %cst_22 = arith.constant dense<0.000000e+00> : vector<16x128xf32>
    %31 = tpu.matmul %29, %30, %cst_22 {dimension_numbers = #tpu.dot_dimension_numbers<[1], [0], [0], [1], [0, 0, 1, 1], [], []>} : vector<16x128xbf16>, vector<128x128xbf16>, vector<16x128xf32> -> vector<16x128xf32>
    %c0_23 = arith.constant 0 : index
    %c0_24 = arith.constant 0 : index
    %32 = vector.load %arg10[%c0_23, %c0_24] : memref<1x128xf32, #tpu.memory_space<vmem>>, vector<1x128xf32>
    %33 = vector.broadcast %32 : vector<1x128xf32> to vector<16x128xf32>
    %34 = arith.addf %31, %33 : vector<16x128xf32>
    %cst_25 = arith.constant 0.000000e+00 : f32
    %35 = vector.broadcast %cst_25 : f32 to vector<16x128xf32>
    %36 = arith.maximumf %34, %35 : vector<16x128xf32>
    %37 = arith.truncf %36 : vector<16x128xf32> to vector<16x128xbf16>
    %c0_26 = arith.constant 0 : index
    %c0_27 = arith.constant 0 : index
    %38 = vector.load %arg11[%c0_26, %c0_27] : memref<128x256xbf16, #tpu.memory_space<vmem>>, vector<128x256xbf16>
    %cst_28 = arith.constant dense<0.000000e+00> : vector<16x256xf32>
    %39 = tpu.matmul %37, %38, %cst_28 {dimension_numbers = #tpu.dot_dimension_numbers<[1], [0], [0], [1], [0, 0, 1, 1], [], []>} : vector<16x128xbf16>, vector<128x256xbf16>, vector<16x256xf32> -> vector<16x256xf32>
    %c0_29 = arith.constant 0 : index
    %c0_30 = arith.constant 0 : index
    %40 = vector.load %arg12[%c0_29, %c0_30] : memref<1x256xf32, #tpu.memory_space<vmem>>, vector<1x256xf32>
    %41 = vector.broadcast %40 : vector<1x256xf32> to vector<16x256xf32>
    %42 = arith.addf %39, %41 : vector<16x256xf32>
    %cst_31 = arith.constant 0.000000e+00 : f32
    %43 = vector.broadcast %cst_31 : f32 to vector<16x256xf32>
    %44 = arith.maximumf %42, %43 : vector<16x256xf32>
    %45 = arith.truncf %44 : vector<16x256xf32> to vector<16x256xbf16>
    %c0_32 = arith.constant 0 : index
    %c0_33 = arith.constant 0 : index
    %46 = vector.load %arg13[%c0_32, %c0_33] : memref<256x512xbf16, #tpu.memory_space<vmem>>, vector<256x512xbf16>
    %cst_34 = arith.constant dense<0.000000e+00> : vector<16x512xf32>
    %47 = tpu.matmul %45, %46, %cst_34 {dimension_numbers = #tpu.dot_dimension_numbers<[1], [0], [0], [1], [0, 0, 1, 1], [], []>} : vector<16x256xbf16>, vector<256x512xbf16>, vector<16x512xf32> -> vector<16x512xf32>
    %c0_35 = arith.constant 0 : index
    %c0_36 = arith.constant 0 : index
    %48 = vector.load %arg14[%c0_35, %c0_36] : memref<1x512xf32, #tpu.memory_space<vmem>>, vector<1x512xf32>
    %49 = vector.broadcast %48 : vector<1x512xf32> to vector<16x512xf32>
    %50 = arith.addf %47, %49 : vector<16x512xf32>
    %51 = arith.negf %50 : vector<16x512xf32>
    %52 = math.exp %51 : vector<16x512xf32>
    %cst_37 = arith.constant 1.000000e+00 : f32
    %53 = vector.broadcast %cst_37 : f32 to vector<16x512xf32>
    %54 = arith.addf %53, %52 : vector<16x512xf32>
    %55 = arith.divf %53, %54 : vector<16x512xf32>
    %c0_38 = arith.constant 0 : index
    %c0_39 = arith.constant 0 : index
    %56 = vector.load %arg15[%c0_38, %c0_39] : memref<16x512xf32, #tpu.memory_space<vmem>>, vector<16x512xf32>
    tpu.vector_store %arg15[%c0_38, %c0_39], %55 {strides = array<i32>} : memref<16x512xf32, #tpu.memory_space<vmem>>, vector<16x512xf32>,
    %c0_40 = arith.constant 0 : index
    %c0_41 = arith.constant 0 : index
    %57 = vector.load %arg16[%c0_40, %c0_41] : memref<16x256xf32, #tpu.memory_space<vmem>>, vector<16x256xf32>
    tpu.vector_store %arg16[%c0_40, %c0_41], %20 {strides = array<i32>} : memref<16x256xf32, #tpu.memory_space<vmem>>, vector<16x256xf32>,
    return
  }
  func.func @transform_0(%arg0: i32) -> (i32, i32) {
    %c0_i32 = arith.constant 0 : i32
    %c0_i32_0 = arith.constant 0 : i32
    return %arg0, %c0_i32 : i32, i32
  }
  func.func @transform_1(%arg0: i32) -> (i32, i32) {
    %c0_i32 = arith.constant 0 : i32
    %c0_i32_0 = arith.constant 0 : i32
    return %arg0, %c0_i32 : i32, i32
  }
  func.func @transform_2(%arg0: i32) -> (i32, i32) {
    %c0_i32 = arith.constant 0 : i32
    %c0_i32_0 = arith.constant 0 : i32
    %c0_i32_1 = arith.constant 0 : i32
    return %c0_i32, %c0_i32_0 : i32, i32
  }
  func.func @transform_3(%arg0: i32) -> (i32, i32) {
    %c0_i32 = arith.constant 0 : i32
    %c0_i32_0 = arith.constant 0 : i32
    %c0_i32_1 = arith.constant 0 : i32
    return %c0_i32, %c0_i32_0 : i32, i32
  }
  func.func @transform_4(%arg0: i32) -> (i32, i32) {
    %c0_i32 = arith.constant 0 : i32
    %c0_i32_0 = arith.constant 0 : i32
    %c0_i32_1 = arith.constant 0 : i32
    return %c0_i32, %c0_i32_0 : i32, i32
  }
  func.func @transform_5(%arg0: i32) -> (i32, i32) {
    %c0_i32 = arith.constant 0 : i32
    %c0_i32_0 = arith.constant 0 : i32
    %c0_i32_1 = arith.constant 0 : i32
    return %c0_i32, %c0_i32_0 : i32, i32
  }
  func.func @transform_6(%arg0: i32) -> (i32, i32) {
    %c0_i32 = arith.constant 0 : i32
    %c0_i32_0 = arith.constant 0 : i32
    %c0_i32_1 = arith.constant 0 : i32
    return %c0_i32, %c0_i32_0 : i32, i32
  }
  func.func @transform_7(%arg0: i32) -> (i32, i32) {
    %c0_i32 = arith.constant 0 : i32
    %c0_i32_0 = arith.constant 0 : i32
    %c0_i32_1 = arith.constant 0 : i32
    return %c0_i32, %c0_i32_0 : i32, i32
  }
  func.func @transform_8(%arg0: i32) -> (i32, i32) {
    %c0_i32 = arith.constant 0 : i32
    %c0_i32_0 = arith.constant 0 : i32
    %c0_i32_1 = arith.constant 0 : i32
    return %c0_i32, %c0_i32_0 : i32, i32
  }
  func.func @transform_9(%arg0: i32) -> (i32, i32) {
    %c0_i32 = arith.constant 0 : i32
    %c0_i32_0 = arith.constant 0 : i32
    %c0_i32_1 = arith.constant 0 : i32
    return %c0_i32, %c0_i32_0 : i32, i32
  }
  func.func @transform_10(%arg0: i32) -> (i32, i32) {
    %c0_i32 = arith.constant 0 : i32
    %c0_i32_0 = arith.constant 0 : i32
    %c0_i32_1 = arith.constant 0 : i32
    return %c0_i32, %c0_i32_0 : i32, i32
  }
  func.func @transform_11(%arg0: i32) -> (i32, i32) {
    %c0_i32 = arith.constant 0 : i32
    %c0_i32_0 = arith.constant 0 : i32
    %c0_i32_1 = arith.constant 0 : i32
    return %c0_i32, %c0_i32_0 : i32, i32
  }
  func.func @transform_12(%arg0: i32) -> (i32, i32) {
    %c0_i32 = arith.constant 0 : i32
    %c0_i32_0 = arith.constant 0 : i32
    %c0_i32_1 = arith.constant 0 : i32
    return %c0_i32, %c0_i32_0 : i32, i32
  }
  func.func @transform_13(%arg0: i32) -> (i32, i32) {
    %c0_i32 = arith.constant 0 : i32
    %c0_i32_0 = arith.constant 0 : i32
    %c0_i32_1 = arith.constant 0 : i32
    return %c0_i32, %c0_i32_0 : i32, i32
  }
  func.func @transform_14(%arg0: i32) -> (i32, i32) {
    %c0_i32 = arith.constant 0 : i32
    %c0_i32_0 = arith.constant 0 : i32
    return %arg0, %c0_i32 : i32, i32
  }
  func.func @transform_15(%arg0: i32) -> (i32, i32) {
    %c0_i32 = arith.constant 0 : i32
    %c0_i32_0 = arith.constant 0 : i32
    return %arg0, %c0_i32 : i32, i32
  }
}

module attributes {stable_mosaic.version = 11 : i64} {
  func.func @_vae_forward_kernel(%arg0: i32, %arg1: memref<16x512xbf16, #tpu.memory_space<vmem>>, %arg2: memref<16x128xf32, #tpu.memory_space<vmem>>, %arg3: memref<512x256xbf16, #tpu.memory_space<vmem>>, %arg4: memref<1x256xf32, #tpu.memory_space<vmem>>, %arg5: memref<256x128xbf16, #tpu.memory_space<vmem>>, %arg6: memref<1x128xf32, #tpu.memory_space<vmem>>, %arg7: memref<128x256xf32, #tpu.memory_space<vmem>>, %arg8: memref<1x256xf32, #tpu.memory_space<vmem>>, %arg9: memref<128x128xbf16, #tpu.memory_space<vmem>>, %arg10: memref<1x128xf32, #tpu.memory_space<vmem>>, %arg11: memref<128x256xbf16, #tpu.memory_space<vmem>>, %arg12: memref<1x256xf32, #tpu.memory_space<vmem>>, %arg13: memref<256x512xbf16, #tpu.memory_space<vmem>>, %arg14: memref<1x512xf32, #tpu.memory_space<vmem>>, %arg15: memref<16x512xf32, #tpu.memory_space<vmem>>, %arg16: memref<16x256xf32, #tpu.memory_space<vmem>>) attributes {dimension_semantics = [#tpu.dimension_semantics<parallel>], iteration_bounds = array<i64: 2>, scalar_prefetch = 0 : i64, scratch_operands = 0 : i64, tpu.core_type = #tpu.core_type<tc>, window_params = [{transform_indices = @transform_0, window_bounds = array<i64: 16, 512>}, {transform_indices = @transform_1, window_bounds = array<i64: 16, 128>}, {pipeline_mode = #tpu.pipeline_mode<synchronous>, transform_indices = @transform_2, window_bounds = array<i64: 512, 256>}, {pipeline_mode = #tpu.pipeline_mode<synchronous>, transform_indices = @transform_3, window_bounds = array<i64: 1, 256>}, {pipeline_mode = #tpu.pipeline_mode<synchronous>, transform_indices = @transform_4, window_bounds = array<i64: 256, 128>}, {pipeline_mode = #tpu.pipeline_mode<synchronous>, transform_indices = @transform_5, window_bounds = array<i64: 1, 128>}, {pipeline_mode = #tpu.pipeline_mode<synchronous>, transform_indices = @transform_6, window_bounds = array<i64: 128, 256>}, {pipeline_mode = #tpu.pipeline_mode<synchronous>, transform_indices = @transform_7, window_bounds = array<i64: 1, 256>}, {pipeline_mode = #tpu.pipeline_mode<synchronous>, transform_indices = @transform_8, window_bounds = array<i64: 128, 128>}, {pipeline_mode = #tpu.pipeline_mode<synchronous>, transform_indices = @transform_9, window_bounds = array<i64: 1, 128>}, {pipeline_mode = #tpu.pipeline_mode<synchronous>, transform_indices = @transform_10, window_bounds = array<i64: 128, 256>}, {pipeline_mode = #tpu.pipeline_mode<synchronous>, transform_indices = @transform_11, window_bounds = array<i64: 1, 256>}, {pipeline_mode = #tpu.pipeline_mode<synchronous>, transform_indices = @transform_12, window_bounds = array<i64: 256, 512>}, {pipeline_mode = #tpu.pipeline_mode<synchronous>, transform_indices = @transform_13, window_bounds = array<i64: 1, 512>}, {transform_indices = @transform_14, window_bounds = array<i64: 16, 512>}, {transform_indices = @transform_15, window_bounds = array<i64: 16, 256>}]} {
    %c0 = arith.constant 0 : index
    %c0_0 = arith.constant 0 : index
    %0 = vector.load %arg1[%c0, %c0_0] : memref<16x512xbf16, #tpu.memory_space<vmem>>, vector<16x512xbf16>
    %c0_1 = arith.constant 0 : index
    %c0_2 = arith.constant 0 : index
    %1 = vector.load %arg3[%c0_1, %c0_2] : memref<512x256xbf16, #tpu.memory_space<vmem>>, vector<512x256xbf16>
    %cst = arith.constant dense<0.000000e+00> : vector<16x256xf32>
    %2 = tpu.matmul %0, %1, %cst {dimension_numbers = #tpu.dot_dimension_numbers<[1], [0], [0], [1], [0, 0, 1, 1], [], []>} : vector<16x512xbf16>, vector<512x256xbf16>, vector<16x256xf32> -> vector<16x256xf32>
    %c0_3 = arith.constant 0 : index
    %c0_4 = arith.constant 0 : index
    %3 = vector.load %arg4[%c0_3, %c0_4] : memref<1x256xf32, #tpu.memory_space<vmem>>, vector<1x256xf32>
    %4 = vector.broadcast %3 : vector<1x256xf32> to vector<16x256xf32>
    %5 = arith.addf %2, %4 : vector<16x256xf32>
    %cst_5 = arith.constant 0.000000e+00 : f32
    %6 = vector.broadcast %cst_5 : f32 to vector<16x256xf32>
    %7 = arith.maximumf %5, %6 : vector<16x256xf32>
    %8 = arith.truncf %7 : vector<16x256xf32> to vector<16x256xbf16>
    %c0_6 = arith.constant 0 : index
    %c0_7 = arith.constant 0 : index
    %9 = vector.load %arg5[%c0_6, %c0_7] : memref<256x128xbf16, #tpu.memory_space<vmem>>, vector<256x128xbf16>
    %cst_8 = arith.constant dense<0.000000e+00> : vector<16x128xf32>
    %10 = tpu.matmul %8, %9, %cst_8 {dimension_numbers = #tpu.dot_dimension_numbers<[1], [0], [0], [1], [0, 0, 1, 1], [], []>} : vector<16x256xbf16>, vector<256x128xbf16>, vector<16x128xf32> -> vector<16x128xf32>
    %c0_9 = arith.constant 0 : index
    %c0_10 = arith.constant 0 : index
    %11 = vector.load %arg6[%c0_9, %c0_10] : memref<1x128xf32, #tpu.memory_space<vmem>>, vector<1x128xf32>
    %12 = vector.broadcast %11 : vector<1x128xf32> to vector<16x128xf32>
    %13 = arith.addf %10, %12 : vector<16x128xf32>
    %cst_11 = arith.constant 0.000000e+00 : f32
    %14 = vector.broadcast %cst_11 : f32 to vector<16x128xf32>
    %15 = arith.maximumf %13, %14 : vector<16x128xf32>
    %c0_12 = arith.constant 0 : index
    %c0_13 = arith.constant 0 : index
    %16 = vector.load %arg7[%c0_12, %c0_13] : memref<128x256xf32, #tpu.memory_space<vmem>>, vector<128x256xf32>
    %cst_14 = arith.constant dense<0.000000e+00> : vector<16x256xf32>
    %17 = tpu.matmul %15, %16, %cst_14 {dimension_numbers = #tpu.dot_dimension_numbers<[1], [0], [0], [1], [0, 0, 1, 1], [], []>} : vector<16x128xf32>, vector<128x256xf32>, vector<16x256xf32> -> vector<16x256xf32>
    %c0_15 = arith.constant 0 : index
    %c0_16 = arith.constant 0 : index
    %18 = vector.load %arg8[%c0_15, %c0_16] : memref<1x256xf32, #tpu.memory_space<vmem>>, vector<1x256xf32>
    %19 = vector.broadcast %18 : vector<1x256xf32> to vector<16x256xf32>
    %20 = arith.addf %17, %19 : vector<16x256xf32>
    %21 = vector.extract_strided_slice %20 {offsets = [0, 0], sizes = [16, 128], strides = [1, 1]} : vector<16x256xf32> to vector<16x128xf32>
    %22 = vector.extract_strided_slice %20 {offsets = [0, 128], sizes = [16, 128], strides = [1, 1]} : vector<16x256xf32> to vector<16x128xf32>
    %c0_17 = arith.constant 0 : index
    %c0_18 = arith.constant 0 : index
    %23 = vector.load %arg2[%c0_17, %c0_18] : memref<16x128xf32, #tpu.memory_space<vmem>>, vector<16x128xf32>
    %cst_19 = arith.constant 5.000000e-01 : f32
    %24 = vector.broadcast %cst_19 : f32 to vector<16x128xf32>
    %25 = arith.mulf %24, %22 : vector<16x128xf32>
    %26 = math.exp %25 : vector<16x128xf32>
    %27 = arith.mulf %23, %26 : vector<16x128xf32>
    %28 = arith.addf %21, %27 : vector<16x128xf32>
    %29 = arith.truncf %28 : vector<16x128xf32> to vector<16x128xbf16>
    %c0_20 = arith.constant 0 : index
    %c0_21 = arith.constant 0 : index
    %30 = vector.load %arg9[%c0_20, %c0_21] : memref<128x128xbf16, #tpu.memory_space<vmem>>, vector<128x128xbf16>
    %cst_22 = arith.constant dense<0.000000e+00> : vector<16x128xf32>
    %31 = tpu.matmul %29, %30, %cst_22 {dimension_numbers = #tpu.dot_dimension_numbers<[1], [0], [0], [1], [0, 0, 1, 1], [], []>} : vector<16x128xbf16>, vector<128x128xbf16>, vector<16x128xf32> -> vector<16x128xf32>
    %c0_23 = arith.constant 0 : index
    %c0_24 = arith.constant 0 : index
    %32 = vector.load %arg10[%c0_23, %c0_24] : memref<1x128xf32, #tpu.memory_space<vmem>>, vector<1x128xf32>
    %33 = vector.broadcast %32 : vector<1x128xf32> to vector<16x128xf32>
    %34 = arith.addf %31, %33 : vector<16x128xf32>
    %cst_25 = arith.constant 0.000000e+00 : f32
    %35 = vector.broadcast %cst_25 : f32 to vector<16x128xf32>
    %36 = arith.maximumf %34, %35 : vector<16x128xf32>
    %37 = arith.truncf %36 : vector<16x128xf32> to vector<16x128xbf16>
    %c0_26 = arith.constant 0 : index
    %c0_27 = arith.constant 0 : index
    %38 = vector.load %arg11[%c0_26, %c0_27] : memref<128x256xbf16, #tpu.memory_space<vmem>>, vector<128x256xbf16>
    %cst_28 = arith.constant dense<0.000000e+00> : vector<16x256xf32>
    %39 = tpu.matmul %37, %38, %cst_28 {dimension_numbers = #tpu.dot_dimension_numbers<[1], [0], [0], [1], [0, 0, 1, 1], [], []>} : vector<16x128xbf16>, vector<128x256xbf16>, vector<16x256xf32> -> vector<16x256xf32>
    %c0_29 = arith.constant 0 : index
    %c0_30 = arith.constant 0 : index
    %40 = vector.load %arg12[%c0_29, %c0_30] : memref<1x256xf32, #tpu.memory_space<vmem>>, vector<1x256xf32>
    %41 = vector.broadcast %40 : vector<1x256xf32> to vector<16x256xf32>
    %42 = arith.addf %39, %41 : vector<16x256xf32>
    %cst_31 = arith.constant 0.000000e+00 : f32
    %43 = vector.broadcast %cst_31 : f32 to vector<16x256xf32>
    %44 = arith.maximumf %42, %43 : vector<16x256xf32>
    %45 = arith.truncf %44 : vector<16x256xf32> to vector<16x256xbf16>
    %c0_32 = arith.constant 0 : index
    %c0_33 = arith.constant 0 : index
    %46 = vector.load %arg13[%c0_32, %c0_33] : memref<256x512xbf16, #tpu.memory_space<vmem>>, vector<256x512xbf16>
    %cst_34 = arith.constant dense<0.000000e+00> : vector<16x512xf32>
    %47 = tpu.matmul %45, %46, %cst_34 {dimension_numbers = #tpu.dot_dimension_numbers<[1], [0], [0], [1], [0, 0, 1, 1], [], []>} : vector<16x256xbf16>, vector<256x512xbf16>, vector<16x512xf32> -> vector<16x512xf32>
    %c0_35 = arith.constant 0 : index
    %c0_36 = arith.constant 0 : index
    %48 = vector.load %arg14[%c0_35, %c0_36] : memref<1x512xf32, #tpu.memory_space<vmem>>, vector<1x512xf32>
    %49 = vector.broadcast %48 : vector<1x512xf32> to vector<16x512xf32>
    %50 = arith.addf %47, %49 : vector<16x512xf32>
    %51 = arith.negf %50 : vector<16x512xf32>
    %52 = math.exp %51 : vector<16x512xf32>
    %cst_37 = arith.constant 1.000000e+00 : f32
    %53 = vector.broadcast %cst_37 : f32 to vector<16x512xf32>
    %54 = arith.addf %53, %52 : vector<16x512xf32>
    %55 = arith.divf %53, %54 : vector<16x512xf32>
    %c0_38 = arith.constant 0 : index
    %c0_39 = arith.constant 0 : index
    %56 = vector.load %arg15[%c0_38, %c0_39] : memref<16x512xf32, #tpu.memory_space<vmem>>, vector<16x512xf32>
    tpu.vector_store %arg15[%c0_38, %c0_39], %55 {strides = array<i32>} : memref<16x512xf32, #tpu.memory_space<vmem>>, vector<16x512xf32>,
    %c0_40 = arith.constant 0 : index
    %c0_41 = arith.constant 0 : index
    %57 = vector.load %arg16[%c0_40, %c0_41] : memref<16x256xf32, #tpu.memory_space<vmem>>, vector<16x256xf32>
    tpu.vector_store %arg16[%c0_40, %c0_41], %20 {strides = array<i32>} : memref<16x256xf32, #tpu.memory_space<vmem>>, vector<16x256xf32>,
    return
  }
  func.func @transform_0(%arg0: i32) -> (i32, i32) {
    %c0_i32 = arith.constant 0 : i32
    %c0_i32_0 = arith.constant 0 : i32
    return %arg0, %c0_i32 : i32, i32
  }
  func.func @transform_1(%arg0: i32) -> (i32, i32) {
    %c0_i32 = arith.constant 0 : i32
    %c0_i32_0 = arith.constant 0 : i32
    return %arg0, %c0_i32 : i32, i32
  }
  func.func @transform_2(%arg0: i32) -> (i32, i32) {
    %c0_i32 = arith.constant 0 : i32
    %c0_i32_0 = arith.constant 0 : i32
    %c0_i32_1 = arith.constant 0 : i32
    return %c0_i32, %c0_i32_0 : i32, i32
  }
  func.func @transform_3(%arg0: i32) -> (i32, i32) {
    %c0_i32 = arith.constant 0 : i32
    %c0_i32_0 = arith.constant 0 : i32
    %c0_i32_1 = arith.constant 0 : i32
    return %c0_i32, %c0_i32_0 : i32, i32
  }
  func.func @transform_4(%arg0: i32) -> (i32, i32) {
    %c0_i32 = arith.constant 0 : i32
    %c0_i32_0 = arith.constant 0 : i32
    %c0_i32_1 = arith.constant 0 : i32
    return %c0_i32, %c0_i32_0 : i32, i32
  }
  func.func @transform_5(%arg0: i32) -> (i32, i32) {
    %c0_i32 = arith.constant 0 : i32
    %c0_i32_0 = arith.constant 0 : i32
    %c0_i32_1 = arith.constant 0 : i32
    return %c0_i32, %c0_i32_0 : i32, i32
  }
  func.func @transform_6(%arg0: i32) -> (i32, i32) {
    %c0_i32 = arith.constant 0 : i32
    %c0_i32_0 = arith.constant 0 : i32
    %c0_i32_1 = arith.constant 0 : i32
    return %c0_i32, %c0_i32_0 : i32, i32
  }
  func.func @transform_7(%arg0: i32) -> (i32, i32) {
    %c0_i32 = arith.constant 0 : i32
    %c0_i32_0 = arith.constant 0 : i32
    %c0_i32_1 = arith.constant 0 : i32
    return %c0_i32, %c0_i32_0 : i32, i32
  }
  func.func @transform_8(%arg0: i32) -> (i32, i32) {
    %c0_i32 = arith.constant 0 : i32
    %c0_i32_0 = arith.constant 0 : i32
    %c0_i32_1 = arith.constant 0 : i32
    return %c0_i32, %c0_i32_0 : i32, i32
  }
  func.func @transform_9(%arg0: i32) -> (i32, i32) {
    %c0_i32 = arith.constant 0 : i32
    %c0_i32_0 = arith.constant 0 : i32
    %c0_i32_1 = arith.constant 0 : i32
    return %c0_i32, %c0_i32_0 : i32, i32
  }
  func.func @transform_10(%arg0: i32) -> (i32, i32) {
    %c0_i32 = arith.constant 0 : i32
    %c0_i32_0 = arith.constant 0 : i32
    %c0_i32_1 = arith.constant 0 : i32
    return %c0_i32, %c0_i32_0 : i32, i32
  }
  func.func @transform_11(%arg0: i32) -> (i32, i32) {
    %c0_i32 = arith.constant 0 : i32
    %c0_i32_0 = arith.constant 0 : i32
    %c0_i32_1 = arith.constant 0 : i32
    return %c0_i32, %c0_i32_0 : i32, i32
  }
  func.func @transform_12(%arg0: i32) -> (i32, i32) {
    %c0_i32 = arith.constant 0 : i32
    %c0_i32_0 = arith.constant 0 : i32
    %c0_i32_1 = arith.constant 0 : i32
    return %c0_i32, %c0_i32_0 : i32, i32
  }
  func.func @transform_13(%arg0: i32) -> (i32, i32) {
    %c0_i32 = arith.constant 0 : i32
    %c0_i32_0 = arith.constant 0 : i32
    %c0_i32_1 = arith.constant 0 : i32
    return %c0_i32, %c0_i32_0 : i32, i32
  }
  func.func @transform_14(%arg0: i32) -> (i32, i32) {
    %c0_i32 = arith.constant 0 : i32
    %c0_i32_0 = arith.constant 0 : i32
    return %arg0, %c0_i32 : i32, i32
  }
  func.func @transform_15(%arg0: i32) -> (i32, i32) {
    %c0_i32 = arith.constant 0 : i32
    %c0_i32_0 = arith.constant 0 : i32
    return %arg0, %c0_i32 : i32, i32
  }
}

</mosaic_0001>

<llo_original>
// kernel: tpu_custom_call.1
$region0: #{tpu_custom_call.1}
  #allocation0 [shape = 'u32[]', space=smem, size = 0x4, offset = 0x4, fixed_abs, tag = 'smem constant byte address 0x4 - core index']
  #allocation1 [shape = 'u32[72,128]{1,0:T(1,128)}', space=vmem, size = 0x9000, scoped, tag = 'internal scratch']
  %s0 = inlined_call_operand.hbm [shape: bf16[32,512], index: 0, kind: input, shape index: {}]
  %s1 = inlined_call_operand.hbm [shape: f32[32,128], index: 1, kind: input, shape index: {}]
  %s2 = inlined_call_operand.hbm [shape: bf16[512,256], index: 2, kind: input, shape index: {}]
  %s3 = inlined_call_operand.vmem [shape: f32[1,256], index: 3, kind: input, shape index: {}]
  %s4 = inlined_call_operand.hbm [shape: bf16[256,128], index: 4, kind: input, shape index: {}]
  %s5 = inlined_call_operand.hbm [shape: f32[1,128], index: 5, kind: input, shape index: {}]
  %s6 = inlined_call_operand.hbm [shape: f32[128,256], index: 6, kind: input, shape index: {}]
  %s7 = inlined_call_operand.hbm [shape: f32[1,256], index: 7, kind: input, shape index: {}]
  %s8 = inlined_call_operand.hbm [shape: bf16[128,128], index: 8, kind: input, shape index: {}]
  %s9 = inlined_call_operand.hbm [shape: f32[1,128], index: 9, kind: input, shape index: {}]
  %s10 = inlined_call_operand.hbm [shape: bf16[128,256], index: 10, kind: input, shape index: {}]
  %s11 = inlined_call_operand.vmem [shape: f32[1,256], index: 11, kind: input, shape index: {}]
  %s12 = inlined_call_operand.hbm [shape: bf16[256,512], index: 12, kind: input, shape index: {}]
  %s13 = inlined_call_operand.vmem [shape: f32[1,512], index: 13, kind: input, shape index: {}]
  %s14 = inlined_call_operand.hbm [shape: f32[32,512], index: 14, kind: output, shape index: {0}]
  %s15 = inlined_call_operand.hbm [shape: f32[32,256], index: 15, kind: output, shape index: {1}]
  %16 = xla_tuple %s14, %s15
  %s17 = sld [smem:[#allocation0]]
  $region141: #{tpu_custom_call.1} parent=0
    _
  %s19 = ssub.s32 1, %s17
  %s20 = scalar_select 0, %s19, %s17
  $region1: #{tpu_custom_call.1} parent=0
    #allocation2 [shape = 'u8[32768]{0}', space=vmem, size = 0x8000, scoped, tag = 'input window, operand 0']
    #allocation3 [shape = 's32[2]{0}', space=sflag, size = 0x8, scoped, tag = 'scoped memory for tpu_custom_call.1']
    #allocation4 [shape = 's32[2]{0}', space=sflag, size = 0x8, scoped, tag = 'scoped memory for tpu_custom_call.1']
    #allocation5 [shape = 'u8[16384]{0}', space=vmem, size = 0x4000, scoped, tag = 'input window, operand 1']
    #allocation6 [shape = 's32[2]{0}', space=sflag, size = 0x8, scoped, tag = 'scoped memory for tpu_custom_call.1']
    #allocation7 [shape = 'u8[262144]{0}', space=vmem, size = 0x40000, scoped, tag = 'input window, operand 2, single buffered']
    #allocation8 [shape = 'u8[65536]{0}', space=vmem, size = 0x10000, scoped, tag = 'input window, operand 4, single buffered']
    #allocation9 [shape = 's32[1]{0}', space=sflag, size = 0x4, scoped, tag = 'scoped memory for tpu_custom_call.1']
    #allocation10 [shape = 'u8[512]{0}', space=vmem, size = 0x400, scoped, tag = 'input window, operand 5, single buffered']
    #allocation11 [shape = 'u8[131072]{0}', space=vmem, size = 0x20000, scoped, tag = 'input window, operand 6, single buffered']
    #allocation12 [shape = 's32[1]{0}', space=sflag, size = 0x4, scoped, tag = 'scoped memory for tpu_custom_call.1']
    #allocation13 [shape = 'u8[1024]{0}', space=vmem, size = 0x400, scoped, tag = 'input window, operand 7, single buffered']
    #allocation14 [shape = 'u8[32768]{0}', space=vmem, size = 0x8000, scoped, tag = 'input window, operand 8, single buffered']
    #allocation15 [shape = 's32[1]{0}', space=sflag, size = 0x4, scoped, tag = 'scoped memory for tpu_custom_call.1']
    #allocation16 [shape = 'u8[512]{0}', space=vmem, size = 0x400, scoped, tag = 'input window, operand 9, single buffered']
    #allocation17 [shape = 'u8[65536]{0}', space=vmem, size = 0x10000, scoped, tag = 'input window, operand 10, single buffered']
    #allocation18 [shape = 's32[1]{0}', space=sflag, size = 0x4, scoped, tag = 'scoped memory for tpu_custom_call.1']
    #allocation19 [shape = 'u8[262144]{0}', space=vmem, size = 0x40000, scoped, tag = 'input window, operand 12, single buffered']
    #allocation20 [shape = 'u8[65536]{0}', space=vmem, size = 0x10000, scoped, tag = 'output window, operand 0']
    #allocation21 [shape = 'u8[32768]{0}', space=vmem, size = 0x8000, scoped, tag = 'output window, operand 1']
    #allocation22 [shape = 's32[2]{0}', space=sflag, size = 0x8, scoped, tag = 'scoped memory for tpu_custom_call.1']
    %21 = vsyncpa [#allocation3], 0
    %s22 = scalar_lea.sflag [#allocation3], 1
    %23 = vsyncpa %s22, 0
    %24 = vsyncpa [#allocation6], 0
    %s25 = scalar_lea.sflag [#allocation6], 1
    %26 = vsyncpa %s25, 0
    %27 = vsyncpa [#allocation9], 0
    %28 = vsyncpa [#allocation12], 0
    %29 = vsyncpa [#allocation15], 0
    %30 = vsyncpa [#allocation18], 0
    %31 = vsyncpa [#allocation4], 0
    %s32 = scalar_lea.sflag [#allocation4], 1
    %33 = vsyncpa %s32, 0
    %34 = vsyncpa [#allocation22], 0
    %s35 = scalar_lea.sflag [#allocation22], 1
    %36 = vsyncpa %s35, 0
    loop: start=0, step=1, limit=4
    $region2: #{tpu_custom_call.1} parent=1 // loop_pre_header
      _
    $region3: #{tpu_custom_call.1} parent=1 // loop_header
      %s38 = sphi 0, %s42
      %p39 = scmp.ge.s32.totalorder %s38, 4
      %s48 = sphi 0, %s50
      %s51 = sphi 0, %s48
      %s52 = sphi 0, %s51
      %s68 = sphi 0, %s52
      %s74 = sphi 0, %s76
      %s77 = sphi 0, %s74
      %s78 = sphi 0, %s77
      %s94 = sphi 0, %s78
      %s98 = sphi 0, %s98
      %s100 = sphi 0, %s98
      %s101 = sphi 0, %s100
      %s115 = sphi 0, %s101
      %s119 = sphi 0, %s119
      %s121 = sphi 0, %s119
      %s122 = sphi 0, %s121
      %s136 = sphi 0, %s122
      %s140 = sphi 0, %s140
      %s142 = sphi 0, %s140
      %s143 = sphi 0, %s142
      %s157 = sphi 0, %s143
      %s161 = sphi 0, %s161
      %s163 = sphi 0, %s161
      %s164 = sphi 0, %s163
      %s178 = sphi 0, %s164
      %s182 = sphi 0, %s182
      %s184 = sphi 0, %s182
      %s185 = sphi 0, %s184
      %s199 = sphi 0, %s185
      %s203 = sphi 0, %s203
      %s205 = sphi 0, %s203
      %s206 = sphi 0, %s205
      %s220 = sphi 0, %s206
      %s224 = sphi 0, %s224
      %s226 = sphi 0, %s224
      %s227 = sphi 0, %s226
      %s241 = sphi 0, %s227
      %s245 = sphi 0, %s245
      %s247 = sphi 0, %s245
      %s248 = sphi 0, %s247
      %s262 = sphi 0, %s248
      %s266 = sphi 0, %s266
      %s268 = sphi 0, %s266
      %s269 = sphi 0, %s268
      %s283 = sphi 0, %s269
      %s287 = sphi 0, %s287
      %s289 = sphi 0, %s287
      %s290 = sphi 0, %s289
      %s304 = sphi 0, %s290
      %s308 = sphi 0, %s308
      %s310 = sphi 0, %s308
      %s311 = sphi 0, %s310
      %s325 = sphi 0, %s311
      %s329 = sphi 0, %s329
      %s331 = sphi 0, %s329
      %s332 = sphi 0, %s331
      %s346 = sphi 0, %s332
      %s352 = sphi 0, %s354
      %s355 = sphi 0, %s352
      %s356 = sphi 0, %s355
      %s372 = sphi 0, %s356
      %s378 = sphi 0, %s380
      %s381 = sphi 0, %s378
      %s382 = sphi 0, %s381
      %s398 = sphi 0, %s382
    $region4: #{tpu_custom_call.1} parent=1 // loop_header_branch
      %41 = sbr.rel (%p39) target = $region8
    $region5: #{tpu_custom_call.1} parent=1 // loop_body
      %s43 = ssub.s32 %s38, 1
      %s44 = ssub.s32 %s38, 2
      %s45 = sadd.s32 %s38, 1
      %s46 = ssub.s32 %s38, %s45
      %p47 = scmp.eq.s32.totalorder %s46, 0
      %s49 = sadd.s32 %s48, 1
      %s50 = scalar_select %p47, %s48, %s49
      %p53 = pneg %p47
      %p54 = scmp.eq.s32.totalorder %s38, 1
      %p55 = por %p53, %p54
      %p56 = scmp.ne.s32.totalorder %s48, %s51
      %p57 = scmp.eq.s32.totalorder %s38, 0
      %p58 = por %p56, %p57
      %p59 = scmp.ne.s32.totalorder %s48, %s51
      %p60 = scmp.eq.s32.totalorder %s43, 1
      %p61 = por %p59, %p60
      %p62 = scmp.ne.s32.totalorder %s51, %s52
      %p63 = scmp.eq.s32.totalorder %s43, 0
      %p64 = por %p62, %p63
      %p65 = scmp.ne.s32.totalorder %s51, %s52
      %p66 = scmp.eq.s32.totalorder %s44, 1
      %p67 = por %p65, %p66
      %p69 = scmp.ne.s32.totalorder %s52, %s68
      %p70 = scmp.eq.s32.totalorder %s44, 0
      %p71 = por %p69, %p70
      %s72 = ssub.s32 %s38, %s45
      %p73 = scmp.eq.s32.totalorder %s72, 0
      %s75 = sadd.s32 %s74, 1
      %s76 = scalar_select %p73, %s74, %s75
      %p79 = pneg %p73
      %p80 = scmp.eq.s32.totalorder %s38, 1
      %p81 = por %p79, %p80
      %p82 = scmp.ne.s32.totalorder %s74, %s77
      %p83 = scmp.eq.s32.totalorder %s38, 0
      %p84 = por %p82, %p83
      %p85 = scmp.ne.s32.totalorder %s74, %s77
      %p86 = scmp.eq.s32.totalorder %s43, 1
      %p87 = por %p85, %p86
      %p88 = scmp.ne.s32.totalorder %s77, %s78
      %p89 = scmp.eq.s32.totalorder %s43, 0
      %p90 = por %p88, %p89
      %p91 = scmp.ne.s32.totalorder %s77, %s78
      %p92 = scmp.eq.s32.totalorder %s44, 1
      %p93 = por %p91, %p92
      %p95 = scmp.ne.s32.totalorder %s78, %s94
      %p96 = scmp.eq.s32.totalorder %s44, 0
      %p97 = por %p95, %p96
      %s99 = sadd.s32 %s98, 1
      %p102 = scmp.eq.s32.totalorder %s38, 1
      %p103 = scmp.ne.s32.totalorder %s98, %s100
      %p104 = scmp.eq.s32.totalorder %s38, 0
      %p105 = por %p103, %p104
      %p106 = scmp.ne.s32.totalorder %s98, %s100
      %p107 = scmp.eq.s32.totalorder %s43, 1
      %p108 = por %p106, %p107
      %p109 = scmp.ne.s32.totalorder %s100, %s101
      %p110 = scmp.eq.s32.totalorder %s43, 0
      %p111 = por %p109, %p110
      %p112 = scmp.ne.s32.totalorder %s100, %s101
      %p113 = scmp.eq.s32.totalorder %s44, 1
      %p114 = por %p112, %p113
      %p116 = scmp.ne.s32.totalorder %s101, %s115
      %p117 = scmp.eq.s32.totalorder %s44, 0
      %p118 = por %p116, %p117
      %s120 = sadd.s32 %s119, 1
      %p123 = scmp.eq.s32.totalorder %s38, 1
      %p124 = scmp.ne.s32.totalorder %s119, %s121
      %p125 = scmp.eq.s32.totalorder %s38, 0
      %p126 = por %p124, %p125
      %p127 = scmp.ne.s32.totalorder %s119, %s121
      %p128 = scmp.eq.s32.totalorder %s43, 1
      %p129 = por %p127, %p128
      %p130 = scmp.ne.s32.totalorder %s121, %s122
      %p131 = scmp.eq.s32.totalorder %s43, 0
      %p132 = por %p130, %p131
      %p133 = scmp.ne.s32.totalorder %s121, %s122
      %p134 = scmp.eq.s32.totalorder %s44, 1
      %p135 = por %p133, %p134
      %p137 = scmp.ne.s32.totalorder %s122, %s136
      %p138 = scmp.eq.s32.totalorder %s44, 0
      %p139 = por %p137, %p138
      %s141 = sadd.s32 %s140, 1
      %p144 = scmp.eq.s32.totalorder %s38, 1
      %p145 = scmp.ne.s32.totalorder %s140, %s142
      %p146 = scmp.eq.s32.totalorder %s38, 0
      %p147 = por %p145, %p146
      %p148 = scmp.ne.s32.totalorder %s140, %s142
      %p149 = scmp.eq.s32.totalorder %s43, 1
      %p150 = por %p148, %p149
      %p151 = scmp.ne.s32.totalorder %s142, %s143
      %p152 = scmp.eq.s32.totalorder %s43, 0
      %p153 = por %p151, %p152
      %p154 = scmp.ne.s32.totalorder %s142, %s143
      %p155 = scmp.eq.s32.totalorder %s44, 1
      %p156 = por %p154, %p155
      %p158 = scmp.ne.s32.totalorder %s143, %s157
      %p159 = scmp.eq.s32.totalorder %s44, 0
      %p160 = por %p158, %p159
      %s162 = sadd.s32 %s161, 1
      %p165 = scmp.eq.s32.totalorder %s38, 1
      %p166 = scmp.ne.s32.totalorder %s161, %s163
      %p167 = scmp.eq.s32.totalorder %s38, 0
      %p168 = por %p166, %p167
      %p169 = scmp.ne.s32.totalorder %s161, %s163
      %p170 = scmp.eq.s32.totalorder %s43, 1
      %p171 = por %p169, %p170
      %p172 = scmp.ne.s32.totalorder %s163, %s164
      %p173 = scmp.eq.s32.totalorder %s43, 0
      %p174 = por %p172, %p173
      %p175 = scmp.ne.s32.totalorder %s163, %s164
      %p176 = scmp.eq.s32.totalorder %s44, 1
      %p177 = por %p175, %p176
      %p179 = scmp.ne.s32.totalorder %s164, %s178
      %p180 = scmp.eq.s32.totalorder %s44, 0
      %p181 = por %p179, %p180
      %s183 = sadd.s32 %s182, 1
      %p186 = scmp.eq.s32.totalorder %s38, 1
      %p187 = scmp.ne.s32.totalorder %s182, %s184
      %p188 = scmp.eq.s32.totalorder %s38, 0
      %p189 = por %p187, %p188
      %p190 = scmp.ne.s32.totalorder %s182, %s184
      %p191 = scmp.eq.s32.totalorder %s43, 1
      %p192 = por %p190, %p191
      %p193 = scmp.ne.s32.totalorder %s184, %s185
      %p194 = scmp.eq.s32.totalorder %s43, 0
      %p195 = por %p193, %p194
      %p196 = scmp.ne.s32.totalorder %s184, %s185
      %p197 = scmp.eq.s32.totalorder %s44, 1
      %p198 = por %p196, %p197
      %p200 = scmp.ne.s32.totalorder %s185, %s199
      %p201 = scmp.eq.s32.totalorder %s44, 0
      %p202 = por %p200, %p201
      %s204 = sadd.s32 %s203, 1
      %p207 = scmp.eq.s32.totalorder %s38, 1
      %p208 = scmp.ne.s32.totalorder %s203, %s205
      %p209 = scmp.eq.s32.totalorder %s38, 0
      %p210 = por %p208, %p209
      %p211 = scmp.ne.s32.totalorder %s203, %s205
      %p212 = scmp.eq.s32.totalorder %s43, 1
      %p213 = por %p211, %p212
      %p214 = scmp.ne.s32.totalorder %s205, %s206
      %p215 = scmp.eq.s32.totalorder %s43, 0
      %p216 = por %p214, %p215
      %p217 = scmp.ne.s32.totalorder %s205, %s206
      %p218 = scmp.eq.s32.totalorder %s44, 1
      %p219 = por %p217, %p218
      %p221 = scmp.ne.s32.totalorder %s206, %s220
      %p222 = scmp.eq.s32.totalorder %s44, 0
      %p223 = por %p221, %p222
      %s225 = sadd.s32 %s224, 1
      %p228 = scmp.eq.s32.totalorder %s38, 1
      %p229 = scmp.ne.s32.totalorder %s224, %s226
      %p230 = scmp.eq.s32.totalorder %s38, 0
      %p231 = por %p229, %p230
      %p232 = scmp.ne.s32.totalorder %s224, %s226
      %p233 = scmp.eq.s32.totalorder %s43, 1
      %p234 = por %p232, %p233
      %p235 = scmp.ne.s32.totalorder %s226, %s227
      %p236 = scmp.eq.s32.totalorder %s43, 0
      %p237 = por %p235, %p236
      %p238 = scmp.ne.s32.totalorder %s226, %s227
      %p239 = scmp.eq.s32.totalorder %s44, 1
      %p240 = por %p238, %p239
      %p242 = scmp.ne.s32.totalorder %s227, %s241
      %p243 = scmp.eq.s32.totalorder %s44, 0
      %p244 = por %p242, %p243
      %s246 = sadd.s32 %s245, 1
      %p249 = scmp.eq.s32.totalorder %s38, 1
      %p250 = scmp.ne.s32.totalorder %s245, %s247
      %p251 = scmp.eq.s32.totalorder %s38, 0
      %p252 = por %p250, %p251
      %p253 = scmp.ne.s32.totalorder %s245, %s247
      %p254 = scmp.eq.s32.totalorder %s43, 1
      %p255 = por %p253, %p254
      %p256 = scmp.ne.s32.totalorder %s247, %s248
      %p257 = scmp.eq.s32.totalorder %s43, 0
      %p258 = por %p256, %p257
      %p259 = scmp.ne.s32.totalorder %s247, %s248
      %p260 = scmp.eq.s32.totalorder %s44, 1
      %p261 = por %p259, %p260
      %p263 = scmp.ne.s32.totalorder %s248, %s262
      %p264 = scmp.eq.s32.totalorder %s44, 0
      %p265 = por %p263, %p264
      %s267 = sadd.s32 %s266, 1
      %p270 = scmp.eq.s32.totalorder %s38, 1
      %p271 = scmp.ne.s32.totalorder %s266, %s268
      %p272 = scmp.eq.s32.totalorder %s38, 0
      %p273 = por %p271, %p272
      %p274 = scmp.ne.s32.totalorder %s266, %s268
      %p275 = scmp.eq.s32.totalorder %s43, 1
      %p276 = por %p274, %p275
      %p277 = scmp.ne.s32.totalorder %s268, %s269
      %p278 = scmp.eq.s32.totalorder %s43, 0
      %p279 = por %p277, %p278
      %p280 = scmp.ne.s32.totalorder %s268, %s269
      %p281 = scmp.eq.s32.totalorder %s44, 1
      %p282 = por %p280, %p281
      %p284 = scmp.ne.s32.totalorder %s269, %s283
      %p285 = scmp.eq.s32.totalorder %s44, 0
      %p286 = por %p284, %p285
      %s288 = sadd.s32 %s287, 1
      %p291 = scmp.eq.s32.totalorder %s38, 1
      %p292 = scmp.ne.s32.totalorder %s287, %s289
      %p293 = scmp.eq.s32.totalorder %s38, 0
      %p294 = por %p292, %p293
      %p295 = scmp.ne.s32.totalorder %s287, %s289
      %p296 = scmp.eq.s32.totalorder %s43, 1
      %p297 = por %p295, %p296
      %p298 = scmp.ne.s32.totalorder %s289, %s290
      %p299 = scmp.eq.s32.totalorder %s43, 0
      %p300 = por %p298, %p299
      %p301 = scmp.ne.s32.totalorder %s289, %s290
      %p302 = scmp.eq.s32.totalorder %s44, 1
      %p303 = por %p301, %p302
      %p305 = scmp.ne.s32.totalorder %s290, %s304
      %p306 = scmp.eq.s32.totalorder %s44, 0
      %p307 = por %p305, %p306
      %s309 = sadd.s32 %s308, 1
      %p312 = scmp.eq.s32.totalorder %s38, 1
      %p313 = scmp.ne.s32.totalorder %s308, %s310
      %p314 = scmp.eq.s32.totalorder %s38, 0
      %p315 = por %p313, %p314
      %p316 = scmp.ne.s32.totalorder %s308, %s310
      %p317 = scmp.eq.s32.totalorder %s43, 1
      %p318 = por %p316, %p317
      %p319 = scmp.ne.s32.totalorder %s310, %s311
      %p320 = scmp.eq.s32.totalorder %s43, 0
      %p321 = por %p319, %p320
      %p322 = scmp.ne.s32.totalorder %s310, %s311
      %p323 = scmp.eq.s32.totalorder %s44, 1
      %p324 = por %p322, %p323
      %p326 = scmp.ne.s32.totalorder %s311, %s325
      %p327 = scmp.eq.s32.totalorder %s44, 0
      %p328 = por %p326, %p327
      %s330 = sadd.s32 %s329, 1
      %p333 = scmp.eq.s32.totalorder %s38, 1
      %p334 = scmp.ne.s32.totalorder %s329, %s331
      %p335 = scmp.eq.s32.totalorder %s38, 0
      %p336 = por %p334, %p335
      %p337 = scmp.ne.s32.totalorder %s329, %s331
      %p338 = scmp.eq.s32.totalorder %s43, 1
      %p339 = por %p337, %p338
      %p340 = scmp.ne.s32.totalorder %s331, %s332
      %p341 = scmp.eq.s32.totalorder %s43, 0
      %p342 = por %p340, %p341
      %p343 = scmp.ne.s32.totalorder %s331, %s332
      %p344 = scmp.eq.s32.totalorder %s44, 1
      %p345 = por %p343, %p344
      %p347 = scmp.ne.s32.totalorder %s332, %s346
      %p348 = scmp.eq.s32.totalorder %s44, 0
      %p349 = por %p347, %p348
      %s350 = ssub.s32 %s38, %s45
      %p351 = scmp.eq.s32.totalorder %s350, 0
      %s353 = sadd.s32 %s352, 1
      %s354 = scalar_select %p351, %s352, %s353
      %p357 = pneg %p351
      %p358 = scmp.eq.s32.totalorder %s38, 1
      %p359 = por %p357, %p358
      %p360 = scmp.ne.s32.totalorder %s352, %s355
      %p361 = scmp.eq.s32.totalorder %s38, 0
      %p362 = por %p360, %p361
      %p363 = scmp.ne.s32.totalorder %s352, %s355
      %p364 = scmp.eq.s32.totalorder %s43, 1
      %p365 = por %p363, %p364
      %p366 = scmp.ne.s32.totalorder %s355, %s356
      %p367 = scmp.eq.s32.totalorder %s43, 0
      %p368 = por %p366, %p367
      %p369 = scmp.ne.s32.totalorder %s355, %s356
      %p370 = scmp.eq.s32.totalorder %s44, 1
      %p371 = por %p369, %p370
      %p373 = scmp.ne.s32.totalorder %s356, %s372
      %p374 = scmp.eq.s32.totalorder %s44, 0
      %p375 = por %p373, %p374
      %s376 = ssub.s32 %s38, %s45
      %p377 = scmp.eq.s32.totalorder %s376, 0
      %s379 = sadd.s32 %s378, 1
      %s380 = scalar_select %p377, %s378, %s379
      %p383 = pneg %p377
      %p384 = scmp.eq.s32.totalorder %s38, 1
      %p385 = por %p383, %p384
      %p386 = scmp.ne.s32.totalorder %s378, %s381
      %p387 = scmp.eq.s32.totalorder %s38, 0
      %p388 = por %p386, %p387
      %p389 = scmp.ne.s32.totalorder %s378, %s381
      %p390 = scmp.eq.s32.totalorder %s43, 1
      %p391 = por %p389, %p390
      %p392 = scmp.ne.s32.totalorder %s381, %s382
      %p393 = scmp.eq.s32.totalorder %s43, 0
      %p394 = por %p392, %p393
      %p395 = scmp.ne.s32.totalorder %s381, %s382
      %p396 = scmp.eq.s32.totalorder %s44, 1
      %p397 = por %p395, %p396
      %p399 = scmp.ne.s32.totalorder %s382, %s398
      %p400 = scmp.eq.s32.totalorder %s44, 0
      %p401 = por %p399, %p400
      %p402 = scmp.le.s32.totalorder 1, %s38
      %p403 = scmp.lt.s32.totalorder %s38, 3
      %p404 = pnand %p402, %p403
      %p405 = pneg %p404
      // Predicated region
      $region9: #{tpu_custom_call.1} parent=5 // pred_check
        _
      $region10: #{tpu_custom_call.1} parent=5 // pred_check_branch
        %407 = sbr.rel (%p404) target = $region12
      $region11: #{tpu_custom_call.1} parent=5 // pred_region
        %s408 = ssub.s32 %s38, 1
        // Predicated region
        $region13: #{tpu_custom_call.1} parent=11 // pred_check
          %p409 = pneg %p111
        $region14: #{tpu_custom_call.1} parent=11 // pred_check_branch
          %411 = sbr.rel (%p409) target = $region16
        $region15: #{tpu_custom_call.1} parent=11 // pred_region
          %413 = vsyncadd [#allocation6], 0
          %s414 = sshll.u32 %s2, 4
          %s415 = int_to_ptr.hbm [resolvable:$true] %s414
          %s416 = sshll.u32 [#allocation7], 4
          %s417 = int_to_ptr.vmem [resolvable:$true] %s416
          %422 = dma.hbm_to_vmem [thread:$0]  %s415, 8192, %s417, [#allocation6], 128, 128, 8
        $region16: #{tpu_custom_call.1} parent=11 // pred_fallthru
          _
        // Predicated region
        $region17: #{tpu_custom_call.1} parent=11 // pred_check
          %p423 = pneg %p132
        $region18: #{tpu_custom_call.1} parent=11 // pred_check_branch
          %425 = sbr.rel (%p423) target = $region20
        $region19: #{tpu_custom_call.1} parent=11 // pred_region
          _
        $region20: #{tpu_custom_call.1} parent=11 // pred_fallthru
          _
        // Predicated region
        $region21: #{tpu_custom_call.1} parent=11 // pred_check
          %p426 = pneg %p153
        $region22: #{tpu_custom_call.1} parent=11 // pred_check_branch
          %428 = sbr.rel (%p426) target = $region24
        $region23: #{tpu_custom_call.1} parent=11 // pred_region
          %430 = vsyncadd [#allocation9], 0
          %s431 = sshll.u32 %s4, 4
          %s432 = int_to_ptr.hbm [resolvable:$true] %s431
          %s433 = sshll.u32 [#allocation8], 4
          %s434 = int_to_ptr.vmem [resolvable:$true] %s433
          %439 = dma.hbm_to_vmem [thread:$0]  %s432, 2048, %s434, [#allocation9], 64, 64, 4
        $region24: #{tpu_custom_call.1} parent=11 // pred_fallthru
          _
        // Predicated region
        $region25: #{tpu_custom_call.1} parent=11 // pred_check
          %p440 = pneg %p174
        $region26: #{tpu_custom_call.1} parent=11 // pred_check_branch
          %442 = sbr.rel (%p440) target = $region28
        $region27: #{tpu_custom_call.1} parent=11 // pred_region
          %444 = vsyncadd [#allocation9], 0
          %s446 = sshll.u32 %s5, 4
          %s447 = int_to_ptr.hbm [resolvable:$true] %s446
          %s448 = sshll.u32 [#allocation10], 4
          %s449 = int_to_ptr.vmem [resolvable:$true] %s448
          %451 = dma.hbm_to_vmem [thread:$0]  %s447, 16, %s449, [#allocation9]
        $region28: #{tpu_custom_call.1} parent=11 // pred_fallthru
          _
        // Predicated region
        $region29: #{tpu_custom_call.1} parent=11 // pred_check
          %p452 = pneg %p195
        $region30: #{tpu_custom_call.1} parent=11 // pred_check_branch
          %454 = sbr.rel (%p452) target = $region32
        $region31: #{tpu_custom_call.1} parent=11 // pred_region
          %456 = vsyncadd [#allocation12], 0
          %s457 = sshll.u32 %s6, 4
          %s458 = int_to_ptr.hbm [resolvable:$true] %s457
          %s459 = sshll.u32 [#allocation11], 4
          %s460 = int_to_ptr.vmem [resolvable:$true] %s459
          %465 = dma.hbm_to_vmem [thread:$0]  %s458, 4096, %s460, [#allocation12], 256, 256, 16
        $region32: #{tpu_custom_call.1} parent=11 // pred_fallthru
          _
        // Predicated region
        $region33: #{tpu_custom_call.1} parent=11 // pred_check
          %p466 = pneg %p216
        $region34: #{tpu_custom_call.1} parent=11 // pred_check_branch
          %468 = sbr.rel (%p466) target = $region36
        $region35: #{tpu_custom_call.1} parent=11 // pred_region
          %470 = vsyncadd [#allocation12], 0
          %s472 = sshll.u32 %s7, 4
          %s473 = int_to_ptr.hbm [resolvable:$true] %s472
          %s474 = sshll.u32 [#allocation13], 4
          %s475 = int_to_ptr.vmem [resolvable:$true] %s474
          %477 = dma.hbm_to_vmem [thread:$0]  %s473, 32, %s475, [#allocation12]
        $region36: #{tpu_custom_call.1} parent=11 // pred_fallthru
          _
        // Predicated region
        $region37: #{tpu_custom_call.1} parent=11 // pred_check
          %p478 = pneg %p237
        $region38: #{tpu_custom_call.1} parent=11 // pred_check_branch
          %480 = sbr.rel (%p478) target = $region40
        $region39: #{tpu_custom_call.1} parent=11 // pred_region
          %482 = vsyncadd [#allocation15], 0
          %s483 = sshll.u32 %s8, 4
          %s484 = int_to_ptr.hbm [resolvable:$true] %s483
          %s485 = sshll.u32 [#allocation14], 4
          %s486 = int_to_ptr.vmem [resolvable:$true] %s485
          %491 = dma.hbm_to_vmem [thread:$0]  %s484, 1024, %s486, [#allocation15], 64, 64, 4
        $region40: #{tpu_custom_call.1} parent=11 // pred_fallthru
          _
        // Predicated region
        $region41: #{tpu_custom_call.1} parent=11 // pred_check
          %p492 = pneg %p258
        $region42: #{tpu_custom_call.1} parent=11 // pred_check_branch
          %494 = sbr.rel (%p492) target = $region44
        $region43: #{tpu_custom_call.1} parent=11 // pred_region
          %496 = vsyncadd [#allocation15], 0
          %s498 = sshll.u32 %s9, 4
          %s499 = int_to_ptr.hbm [resolvable:$true] %s498
          %s500 = sshll.u32 [#allocation16], 4
          %s501 = int_to_ptr.vmem [resolvable:$true] %s500
          %503 = dma.hbm_to_vmem [thread:$0]  %s499, 16, %s501, [#allocation15]
        $region44: #{tpu_custom_call.1} parent=11 // pred_fallthru
          _
        // Predicated region
        $region45: #{tpu_custom_call.1} parent=11 // pred_check
          %p504 = pneg %p279
        $region46: #{tpu_custom_call.1} parent=11 // pred_check_branch
          %506 = sbr.rel (%p504) target = $region48
        $region47: #{tpu_custom_call.1} parent=11 // pred_region
          %508 = vsyncadd [#allocation18], 0
          %s509 = sshll.u32 %s10, 4
          %s510 = int_to_ptr.hbm [resolvable:$true] %s509
          %s511 = sshll.u32 [#allocation17], 4
          %s512 = int_to_ptr.vmem [resolvable:$true] %s511
          %517 = dma.hbm_to_vmem [thread:$0]  %s510, 2048, %s512, [#allocation18], 128, 128, 8
        $region48: #{tpu_custom_call.1} parent=11 // pred_fallthru
          _
        // Predicated region
        $region49: #{tpu_custom_call.1} parent=11 // pred_check
          %p518 = pneg %p300
        $region50: #{tpu_custom_call.1} parent=11 // pred_check_branch
          %520 = sbr.rel (%p518) target = $region52
        $region51: #{tpu_custom_call.1} parent=11 // pred_region
          _
        $region52: #{tpu_custom_call.1} parent=11 // pred_fallthru
          _
        // Predicated region
        $region53: #{tpu_custom_call.1} parent=11 // pred_check
          %p521 = pneg %p321
        $region54: #{tpu_custom_call.1} parent=11 // pred_check_branch
          %523 = sbr.rel (%p521) target = $region56
        $region55: #{tpu_custom_call.1} parent=11 // pred_region
          %525 = vsyncadd [#allocation18], 0
          %s526 = sshll.u32 %s12, 4
          %s527 = int_to_ptr.hbm [resolvable:$true] %s526
          %s528 = sshll.u32 [#allocation19], 4
          %s529 = int_to_ptr.vmem [resolvable:$true] %s528
          %534 = dma.hbm_to_vmem [thread:$0]  %s527, 8192, %s529, [#allocation18], 256, 256, 16
        $region56: #{tpu_custom_call.1} parent=11 // pred_fallthru
          _
        // Predicated region
        $region57: #{tpu_custom_call.1} parent=11 // pred_check
          %p535 = pneg %p342
        $region58: #{tpu_custom_call.1} parent=11 // pred_check_branch
          %537 = sbr.rel (%p535) target = $region60
        $region59: #{tpu_custom_call.1} parent=11 // pred_region
          _
        $region60: #{tpu_custom_call.1} parent=11 // pred_fallthru
          _
      $region12: #{tpu_custom_call.1} parent=5 // pred_fallthru
        _
      %p538 = scmp.lt.s32.totalorder %s38, 2
      // Predicated region
      $region61: #{tpu_custom_call.1} parent=5 // pred_check
        %p539 = pneg %p538
      $region62: #{tpu_custom_call.1} parent=5 // pred_check_branch
        %541 = sbr.rel (%p539) target = $region64
      $region63: #{tpu_custom_call.1} parent=5 // pred_region
        // Predicated region
        $region65: #{tpu_custom_call.1} parent=63 // pred_check
          %p542 = pneg %p58
        $region66: #{tpu_custom_call.1} parent=63 // pred_check_branch
          %544 = sbr.rel (%p542) target = $region68
        $region67: #{tpu_custom_call.1} parent=63 // pred_region
          %s545 = sand.u32 %s48, 1
          %s546 = scalar_lea.sflag [#allocation3], %s545
          %s547 = sand.u32 %s48, 1
          %s548 = smul.addr %s547, 32
          %s549 = scalar_lea.vmem [#allocation2], %s548
          %s550 = smul.u32 2, %s38
          %552 = vsyncadd %s546, 0
          %s553 = smul.addr %s550, 4
          %s554 = smul.addr %s553, 4
          %s555 = scalar_lea.hbm %s0, %s554
          %s556 = sshll.u32 %s555, 4
          %s557 = int_to_ptr.hbm [resolvable:$true] %s556
          %s558 = sshll.u32 %s549, 4
          %s559 = int_to_ptr.vmem [resolvable:$true] %s558
          %564 = dma.hbm_to_vmem [thread:$0]  %s557, 512, %s559, %s546, 256, 256, 16
        $region68: #{tpu_custom_call.1} parent=63 // pred_fallthru
          _
        // Predicated region
        $region69: #{tpu_custom_call.1} parent=63 // pred_check
          %p565 = pneg %p84
        $region70: #{tpu_custom_call.1} parent=63 // pred_check_branch
          %567 = sbr.rel (%p565) target = $region72
        $region71: #{tpu_custom_call.1} parent=63 // pred_region
          %s568 = sand.u32 %s38, 1
          %s569 = scalar_lea.sflag [#allocation6], %s568
          %s570 = sand.u32 %s74, 1
          %s571 = smul.addr %s570, 16
          %s572 = scalar_lea.vmem [#allocation5], %s571
          %s573 = smul.u32 2, %s38
          %575 = vsyncadd %s569, 0
          %s576 = smul.addr %s573, 8
          %s577 = scalar_lea.hbm %s1, %s576
          %s578 = sshll.u32 %s577, 4
          %s579 = int_to_ptr.hbm [resolvable:$true] %s578
          %s580 = sshll.u32 %s572, 4
          %s581 = int_to_ptr.vmem [resolvable:$true] %s580
          %586 = dma.hbm_to_vmem [thread:$0]  %s579, 256, %s581, %s569, 128, 128, 8
        $region72: #{tpu_custom_call.1} parent=63 // pred_fallthru
          _
      $region64: #{tpu_custom_call.1} parent=5 // pred_fallthru
        _
      %p587 = scmp.le.s32.totalorder 1, %s38
      %p588 = scmp.lt.s32.totalorder %s38, 3
      %p589 = pnand %p587, %p588
      %p590 = pneg %p589
      // Predicated region
      $region73: #{tpu_custom_call.1} parent=5 // pred_check
        _
      $region74: #{tpu_custom_call.1} parent=5 // pred_check_branch
        %592 = sbr.rel (%p589) target = $region76
      $region75: #{tpu_custom_call.1} parent=5 // pred_region
        %s593 = ssub.s32 %s38, 1
        %s594 = sand.u32 %s51, 1
        %s595 = scalar_lea.sflag [#allocation3], %s594
        %s596 = sand.u32 %s51, 1
        %s597 = smul.addr %s596, 32
        %s598 = scalar_lea.vmem [#allocation2], %s597
        // Predicated region
        $region77: #{tpu_custom_call.1} parent=75 // pred_check
          %p599 = pneg %p64
        $region78: #{tpu_custom_call.1} parent=75 // pred_check_branch
          %601 = sbr.rel (%p599) target = $region80
        $region79: #{tpu_custom_call.1} parent=75 // pred_region
          %603 = dma.done %s595, 512
        $region80: #{tpu_custom_call.1} parent=75 // pred_fallthru
          _
        %s604 = sand.u32 %s43, 1
        %s605 = scalar_lea.sflag [#allocation6], %s604
        %s606 = sand.u32 %s77, 1
        %s607 = smul.addr %s606, 16
        %s608 = scalar_lea.vmem [#allocation5], %s607
        // Predicated region
        $region81: #{tpu_custom_call.1} parent=75 // pred_check
          %p609 = pneg %p90
        $region82: #{tpu_custom_call.1} parent=75 // pred_check_branch
          %611 = sbr.rel (%p609) target = $region84
        $region83: #{tpu_custom_call.1} parent=75 // pred_region
          %613 = dma.done %s605, 256
        $region84: #{tpu_custom_call.1} parent=75 // pred_fallthru
          _
        // Predicated region
        $region85: #{tpu_custom_call.1} parent=75 // pred_check
          %p614 = pneg %p111
        $region86: #{tpu_custom_call.1} parent=75 // pred_check_branch
          %616 = sbr.rel (%p614) target = $region88
        $region87: #{tpu_custom_call.1} parent=75 // pred_region
          %618 = dma.done [#allocation6], 8192
        $region88: #{tpu_custom_call.1} parent=75 // pred_fallthru
          _
        // Predicated region
        $region89: #{tpu_custom_call.1} parent=75 // pred_check
          %p619 = pneg %p153
        $region90: #{tpu_custom_call.1} parent=75 // pred_check_branch
          %621 = sbr.rel (%p619) target = $region92
        $region91: #{tpu_custom_call.1} parent=75 // pred_region
          %623 = dma.done [#allocation9], 2048
        $region92: #{tpu_custom_call.1} parent=75 // pred_fallthru
          _
        // Predicated region
        $region93: #{tpu_custom_call.1} parent=75 // pred_check
          %p624 = pneg %p174
        $region94: #{tpu_custom_call.1} parent=75 // pred_check_branch
          %626 = sbr.rel (%p624) target = $region96
        $region95: #{tpu_custom_call.1} parent=75 // pred_region
          %628 = dma.done [#allocation9], 16
        $region96: #{tpu_custom_call.1} parent=75 // pred_fallthru
          _
        // Predicated region
        $region97: #{tpu_custom_call.1} parent=75 // pred_check
          %p629 = pneg %p195
        $region98: #{tpu_custom_call.1} parent=75 // pred_check_branch
          %631 = sbr.rel (%p629) target = $region100
        $region99: #{tpu_custom_call.1} parent=75 // pred_region
          %633 = dma.done [#allocation12], 4096
        $region100: #{tpu_custom_call.1} parent=75 // pred_fallthru
          _
        // Predicated region
        $region101: #{tpu_custom_call.1} parent=75 // pred_check
          %p634 = pneg %p216
        $region102: #{tpu_custom_call.1} parent=75 // pred_check_branch
          %636 = sbr.rel (%p634) target = $region104
        $region103: #{tpu_custom_call.1} parent=75 // pred_region
          %638 = dma.done [#allocation12], 32
        $region104: #{tpu_custom_call.1} parent=75 // pred_fallthru
          _
        // Predicated region
        $region105: #{tpu_custom_call.1} parent=75 // pred_check
          %p639 = pneg %p237
        $region106: #{tpu_custom_call.1} parent=75 // pred_check_branch
          %641 = sbr.rel (%p639) target = $region108
        $region107: #{tpu_custom_call.1} parent=75 // pred_region
          %643 = dma.done [#allocation15], 1024
        $region108: #{tpu_custom_call.1} parent=75 // pred_fallthru
          _
        // Predicated region
        $region109: #{tpu_custom_call.1} parent=75 // pred_check
          %p644 = pneg %p258
        $region110: #{tpu_custom_call.1} parent=75 // pred_check_branch
          %646 = sbr.rel (%p644) target = $region112
        $region111: #{tpu_custom_call.1} parent=75 // pred_region
          %648 = dma.done [#allocation15], 16
        $region112: #{tpu_custom_call.1} parent=75 // pred_fallthru
          _
        // Predicated region
        $region113: #{tpu_custom_call.1} parent=75 // pred_check
          %p649 = pneg %p279
        $region114: #{tpu_custom_call.1} parent=75 // pred_check_branch
          %651 = sbr.rel (%p649) target = $region116
        $region115: #{tpu_custom_call.1} parent=75 // pred_region
          %653 = dma.done [#allocation18], 2048
        $region116: #{tpu_custom_call.1} parent=75 // pred_fallthru
          _
        // Predicated region
        $region117: #{tpu_custom_call.1} parent=75 // pred_check
          %p654 = pneg %p321
        $region118: #{tpu_custom_call.1} parent=75 // pred_check_branch
          %656 = sbr.rel (%p654) target = $region120
        $region119: #{tpu_custom_call.1} parent=75 // pred_region
          %658 = dma.done [#allocation18], 8192
        $region120: #{tpu_custom_call.1} parent=75 // pred_fallthru
          _
        %s659 = sand.u32 %s51, 1
        %s660 = scalar_lea.sflag [#allocation3], %s659
        %s661 = sand.u32 %s51, 1
        %s662 = smul.addr %s661, 32
        %s663 = scalar_lea.vmem [#allocation2], %s662
        %p664 = pneg %p64
        %p665 = pneg %p61
        %s666 = sand.u32 %s43, 1
        %s667 = scalar_lea.sflag [#allocation6], %s666
        %s668 = sand.u32 %s77, 1
        %s669 = smul.addr %s668, 16
        %s670 = scalar_lea.vmem [#allocation5], %s669
        %p671 = pneg %p90
        %p672 = pneg %p87
        %p673 = pneg %p111
        %p674 = pneg %p108
        %p675 = pneg %p132
        %p676 = pneg %p129
        %p677 = pneg %p153
        %p678 = pneg %p150
        %p679 = pneg %p174
        %p680 = pneg %p171
        %p681 = pneg %p195
        %p682 = pneg %p192
        %p683 = pneg %p216
        %p684 = pneg %p213
        %p685 = pneg %p237
        %p686 = pneg %p234
        %p687 = pneg %p258
        %p688 = pneg %p255
        %p689 = pneg %p279
        %p690 = pneg %p276
        %p691 = pneg %p300
        %p692 = pneg %p297
        %p693 = pneg %p321
        %p694 = pneg %p318
        %p695 = pneg %p342
        %p696 = pneg %p339
        %p697 = pneg %p368
        %p698 = pneg %p365
        %s699 = sand.u32 %s355, 1
        %s700 = scalar_lea.sflag [#allocation4], %s699
        %s701 = sand.u32 %s355, 1
        %s702 = smul.addr %s701, 64
        %s703 = scalar_lea.vmem [#allocation20], %s702
        %p704 = pneg %p394
        %p705 = pneg %p391
        %s706 = sand.u32 %s381, 1
        %s707 = scalar_lea.sflag [#allocation22], %s706
        %s708 = sand.u32 %s381, 1
        %s709 = smul.addr %s708, 32
        %s710 = scalar_lea.vmem [#allocation21], %s709
        %s711 = smul.u32 2, %s43
        %s712 = smul.u32 2, %s43
        %s713 = smul.u32 2, %s43
        %s714 = smul.u32 2, %s43
        %v715 = vld [vmem:[%s598] sm:$0xff]
        %v716 = vld [vmem:[%s598 + $0x8] sm:$0xff]
        %v717 = vld [vmem:[%s598 + $0x10] sm:$0xff]
        %v718 = vld [vmem:[%s598 + $0x18] sm:$0xff]
        %v719 = vld [vmem:[#allocation7] sm:$0xff]
        %v720 = vld [vmem:[#allocation7 + $0x8] sm:$0xff]
        %v721 = vld [vmem:[#allocation7 + $0x10] sm:$0xff]
        %v722 = vld [vmem:[#allocation7 + $0x18] sm:$0xff]
        %v723 = vld [vmem:[#allocation7 + $0x20] sm:$0xff]
        %v724 = vld [vmem:[#allocation7 + $0x28] sm:$0xff]
        %v725 = vld [vmem:[#allocation7 + $0x30] sm:$0xff]
        %v726 = vld [vmem:[#allocation7 + $0x38] sm:$0xff]
        %v727 = vld [vmem:[#allocation7 + $0x40] sm:$0xff]
        %v728 = vld [vmem:[#allocation7 + $0x48] sm:$0xff]
        %v729 = vld [vmem:[#allocation7 + $0x50] sm:$0xff]
        %v730 = vld [vmem:[#allocation7 + $0x58] sm:$0xff]
        %v731 = vld [vmem:[#allocation7 + $0x60] sm:$0xff]
        %v732 = vld [vmem:[#allocation7 + $0x68] sm:$0xff]
        %v733 = vld [vmem:[#allocation7 + $0x70] sm:$0xff]
        %v734 = vld [vmem:[#allocation7 + $0x78] sm:$0xff]
        %v735 = vld [vmem:[#allocation7 + $0x80] sm:$0xff]
        %v736 = vld [vmem:[#allocation7 + $0x88] sm:$0xff]
        %v737 = vld [vmem:[#allocation7 + $0x90] sm:$0xff]
        %v738 = vld [vmem:[#allocation7 + $0x98] sm:$0xff]
        %v739 = vld [vmem:[#allocation7 + $0xa0] sm:$0xff]
        %v740 = vld [vmem:[#allocation7 + $0xa8] sm:$0xff]
        %v741 = vld [vmem:[#allocation7 + $0xb0] sm:$0xff]
        %v742 = vld [vmem:[#allocation7 + $0xb8] sm:$0xff]
        %v743 = vld [vmem:[#allocation7 + $0xc0] sm:$0xff]
        %v744 = vld [vmem:[#allocation7 + $0xc8] sm:$0xff]
        %v745 = vld [vmem:[#allocation7 + $0xd0] sm:$0xff]
        %v746 = vld [vmem:[#allocation7 + $0xd8] sm:$0xff]
        %v747 = vld [vmem:[#allocation7 + $0xe0] sm:$0xff]
        %v748 = vld [vmem:[#allocation7 + $0xe8] sm:$0xff]
        %v749 = vld [vmem:[#allocation7 + $0xf0] sm:$0xff]
        %v750 = vld [vmem:[#allocation7 + $0xf8] sm:$0xff]
        %v751 = vld [vmem:[#allocation7 + $0x100] sm:$0xff]
        %v752 = vld [vmem:[#allocation7 + $0x108] sm:$0xff]
        %v753 = vld [vmem:[#allocation7 + $0x110] sm:$0xff]
        %v754 = vld [vmem:[#allocation7 + $0x118] sm:$0xff]
        %v755 = vld [vmem:[#allocation7 + $0x120] sm:$0xff]
        %v756 = vld [vmem:[#allocation7 + $0x128] sm:$0xff]
        %v757 = vld [vmem:[#allocation7 + $0x130] sm:$0xff]
        %v758 = vld [vmem:[#allocation7 + $0x138] sm:$0xff]
        %v759 = vld [vmem:[#allocation7 + $0x140] sm:$0xff]
        %v760 = vld [vmem:[#allocation7 + $0x148] sm:$0xff]
        %v761 = vld [vmem:[#allocation7 + $0x150] sm:$0xff]
        %v762 = vld [vmem:[#allocation7 + $0x158] sm:$0xff]
        %v763 = vld [vmem:[#allocation7 + $0x160] sm:$0xff]
        %v764 = vld [vmem:[#allocation7 + $0x168] sm:$0xff]
        %v765 = vld [vmem:[#allocation7 + $0x170] sm:$0xff]
        %v766 = vld [vmem:[#allocation7 + $0x178] sm:$0xff]
        %v767 = vld [vmem:[#allocation7 + $0x180] sm:$0xff]
        %v768 = vld [vmem:[#allocation7 + $0x188] sm:$0xff]
        %v769 = vld [vmem:[#allocation7 + $0x190] sm:$0xff]
        %v770 = vld [vmem:[#allocation7 + $0x198] sm:$0xff]
        %v771 = vld [vmem:[#allocation7 + $0x1a0] sm:$0xff]
        %v772 = vld [vmem:[#allocation7 + $0x1a8] sm:$0xff]
        %v773 = vld [vmem:[#allocation7 + $0x1b0] sm:$0xff]
        %v774 = vld [vmem:[#allocation7 + $0x1b8] sm:$0xff]
        %v775 = vld [vmem:[#allocation7 + $0x1c0] sm:$0xff]
        %v776 = vld [vmem:[#allocation7 + $0x1c8] sm:$0xff]
        %v777 = vld [vmem:[#allocation7 + $0x1d0] sm:$0xff]
        %v778 = vld [vmem:[#allocation7 + $0x1d8] sm:$0xff]
        %v779 = vld [vmem:[#allocation7 + $0x1e0] sm:$0xff]
        %v780 = vld [vmem:[#allocation7 + $0x1e8] sm:$0xff]
        %v781 = vld [vmem:[#allocation7 + $0x1f0] sm:$0xff]
        %v782 = vld [vmem:[#allocation7 + $0x1f8] sm:$0xff]
        %v783 = vld [vmem:[%s3] sm:$0x3]
        %v785 = vperm.slane %v783, 0
        %v786 = vperm.slane %v783, 1
        %v793 = vunpack.c.l.b16 %v715
        %v794 = vunpack.c.h.b16 %v715
        %v795 = vunpack.c.l.b16 %v716
        %v796 = vunpack.c.h.b16 %v716
        %v797 = vunpack.c.l.b16 %v717
        %v798 = vunpack.c.h.b16 %v717
        %v799 = vunpack.c.l.b16 %v718
        %v800 = vunpack.c.h.b16 %v718
        %v801 = vpack.c.b16 %v797, %v793
        %v802 = vpack.c.b16 %v798, %v794
        %v803 = vpack.c.b16 %v799, %v795
        %v804 = vpack.c.b16 %v800, %v796
        %v873 = vunpack.c.l.b16 %v719
        %v874 = vunpack.c.h.b16 %v719
        %v875 = vunpack.c.l.b16 %v720
        %v876 = vunpack.c.h.b16 %v720
        %v877 = vunpack.c.l.b16 %v721
        %v878 = vunpack.c.h.b16 %v721
        %v879 = vunpack.c.l.b16 %v722
        %v880 = vunpack.c.h.b16 %v722
        %v881 = vunpack.c.l.b16 %v723
        %v882 = vunpack.c.h.b16 %v723
        %v883 = vunpack.c.l.b16 %v724
        %v884 = vunpack.c.h.b16 %v724
        %v885 = vunpack.c.l.b16 %v725
        %v886 = vunpack.c.h.b16 %v725
        %v887 = vunpack.c.l.b16 %v726
        %v888 = vunpack.c.h.b16 %v726
        %v889 = vunpack.c.l.b16 %v727
        %v890 = vunpack.c.h.b16 %v727
        %v891 = vunpack.c.l.b16 %v728
        %v892 = vunpack.c.h.b16 %v728
        %v893 = vunpack.c.l.b16 %v729
        %v894 = vunpack.c.h.b16 %v729
        %v895 = vunpack.c.l.b16 %v730
        %v896 = vunpack.c.h.b16 %v730
        %v897 = vunpack.c.l.b16 %v731
        %v898 = vunpack.c.h.b16 %v731
        %v899 = vunpack.c.l.b16 %v732
        %v900 = vunpack.c.h.b16 %v732
        %v901 = vunpack.c.l.b16 %v733
        %v902 = vunpack.c.h.b16 %v733
        %v903 = vunpack.c.l.b16 %v734
        %v904 = vunpack.c.h.b16 %v734
        %v905 = vunpack.c.l.b16 %v735
        %v906 = vunpack.c.h.b16 %v735
        %v907 = vunpack.c.l.b16 %v736
        %v908 = vunpack.c.h.b16 %v736
        %v909 = vunpack.c.l.b16 %v737
        %v910 = vunpack.c.h.b16 %v737
        %v911 = vunpack.c.l.b16 %v738
        %v912 = vunpack.c.h.b16 %v738
        %v913 = vunpack.c.l.b16 %v739
        %v914 = vunpack.c.h.b16 %v739
        %v915 = vunpack.c.l.b16 %v740
        %v916 = vunpack.c.h.b16 %v740
        %v917 = vunpack.c.l.b16 %v741
        %v918 = vunpack.c.h.b16 %v741
        %v919 = vunpack.c.l.b16 %v742
        %v920 = vunpack.c.h.b16 %v742
        %v921 = vunpack.c.l.b16 %v743
        %v922 = vunpack.c.h.b16 %v743
        %v923 = vunpack.c.l.b16 %v744
        %v924 = vunpack.c.h.b16 %v744
        %v925 = vunpack.c.l.b16 %v745
        %v926 = vunpack.c.h.b16 %v745
        %v927 = vunpack.c.l.b16 %v746
        %v928 = vunpack.c.h.b16 %v746
        %v929 = vunpack.c.l.b16 %v747
        %v930 = vunpack.c.h.b16 %v747
        %v931 = vunpack.c.l.b16 %v748
        %v932 = vunpack.c.h.b16 %v748
        %v933 = vunpack.c.l.b16 %v749
        %v934 = vunpack.c.h.b16 %v749
        %v935 = vunpack.c.l.b16 %v750
        %v936 = vunpack.c.h.b16 %v750
        %v937 = vunpack.c.l.b16 %v751
        %v938 = vunpack.c.h.b16 %v751
        %v939 = vunpack.c.l.b16 %v752
        %v940 = vunpack.c.h.b16 %v752
        %v941 = vunpack.c.l.b16 %v753
        %v942 = vunpack.c.h.b16 %v753
        %v943 = vunpack.c.l.b16 %v754
        %v944 = vunpack.c.h.b16 %v754
        %v945 = vunpack.c.l.b16 %v755
        %v946 = vunpack.c.h.b16 %v755
        %v947 = vunpack.c.l.b16 %v756
        %v948 = vunpack.c.h.b16 %v756
        %v949 = vunpack.c.l.b16 %v757
        %v950 = vunpack.c.h.b16 %v757
        %v951 = vunpack.c.l.b16 %v758
        %v952 = vunpack.c.h.b16 %v758
        %v953 = vunpack.c.l.b16 %v759
        %v954 = vunpack.c.h.b16 %v759
        %v955 = vunpack.c.l.b16 %v760
        %v956 = vunpack.c.h.b16 %v760
        %v957 = vunpack.c.l.b16 %v761
        %v958 = vunpack.c.h.b16 %v761
        %v959 = vunpack.c.l.b16 %v762
        %v960 = vunpack.c.h.b16 %v762
        %v961 = vunpack.c.l.b16 %v763
        %v962 = vunpack.c.h.b16 %v763
        %v963 = vunpack.c.l.b16 %v764
        %v964 = vunpack.c.h.b16 %v764
        %v965 = vunpack.c.l.b16 %v765
        %v966 = vunpack.c.h.b16 %v765
        %v967 = vunpack.c.l.b16 %v766
        %v968 = vunpack.c.h.b16 %v766
        %v969 = vunpack.c.l.b16 %v767
        %v970 = vunpack.c.h.b16 %v767
        %v971 = vunpack.c.l.b16 %v768
        %v972 = vunpack.c.h.b16 %v768
        %v973 = vunpack.c.l.b16 %v769
        %v974 = vunpack.c.h.b16 %v769
        %v975 = vunpack.c.l.b16 %v770
        %v976 = vunpack.c.h.b16 %v770
        %v977 = vunpack.c.l.b16 %v771
        %v978 = vunpack.c.h.b16 %v771
        %v979 = vunpack.c.l.b16 %v772
        %v980 = vunpack.c.h.b16 %v772
        %v981 = vunpack.c.l.b16 %v773
        %v982 = vunpack.c.h.b16 %v773
        %v983 = vunpack.c.l.b16 %v774
        %v984 = vunpack.c.h.b16 %v774
        %v985 = vunpack.c.l.b16 %v775
        %v986 = vunpack.c.h.b16 %v775
        %v987 = vunpack.c.l.b16 %v776
        %v988 = vunpack.c.h.b16 %v776
        %v989 = vunpack.c.l.b16 %v777
        %v990 = vunpack.c.h.b16 %v777
        %v991 = vunpack.c.l.b16 %v778
        %v992 = vunpack.c.h.b16 %v778
        %v993 = vunpack.c.l.b16 %v779
        %v994 = vunpack.c.h.b16 %v779
        %v995 = vunpack.c.l.b16 %v780
        %v996 = vunpack.c.h.b16 %v780
        %v997 = vunpack.c.l.b16 %v781
        %v998 = vunpack.c.h.b16 %v781
        %v999 = vunpack.c.l.b16 %v782
        %v1000 = vunpack.c.h.b16 %v782
        %v1001 = vpack.c.b16 %v875, %v873
        %v1002 = vpack.c.b16 %v876, %v874
        %v1003 = vpack.c.b16 %v879, %v877
        %v1004 = vpack.c.b16 %v880, %v878
        %v1005 = vpack.c.b16 %v883, %v881
        %v1006 = vpack.c.b16 %v884, %v882
        %v1007 = vpack.c.b16 %v887, %v885
        %v1008 = vpack.c.b16 %v888, %v886
        %v1009 = vpack.c.b16 %v891, %v889
        %v1010 = vpack.c.b16 %v892, %v890
        %v1011 = vpack.c.b16 %v895, %v893
        %v1012 = vpack.c.b16 %v896, %v894
        %v1013 = vpack.c.b16 %v899, %v897
        %v1014 = vpack.c.b16 %v900, %v898
        %v1015 = vpack.c.b16 %v903, %v901
        %v1016 = vpack.c.b16 %v904, %v902
        %v1017 = vpack.c.b16 %v907, %v905
        %v1018 = vpack.c.b16 %v908, %v906
        %v1019 = vpack.c.b16 %v911, %v909
        %v1020 = vpack.c.b16 %v912, %v910
        %v1021 = vpack.c.b16 %v915, %v913
        %v1022 = vpack.c.b16 %v916, %v914
        %v1023 = vpack.c.b16 %v919, %v917
        %v1024 = vpack.c.b16 %v920, %v918
        %v1025 = vpack.c.b16 %v923, %v921
        %v1026 = vpack.c.b16 %v924, %v922
        %v1027 = vpack.c.b16 %v927, %v925
        %v1028 = vpack.c.b16 %v928, %v926
        %v1029 = vpack.c.b16 %v931, %v929
        %v1030 = vpack.c.b16 %v932, %v930
        %v1031 = vpack.c.b16 %v935, %v933
        %v1032 = vpack.c.b16 %v936, %v934
        %v1033 = vpack.c.b16 %v939, %v937
        %v1034 = vpack.c.b16 %v940, %v938
        %v1035 = vpack.c.b16 %v943, %v941
        %v1036 = vpack.c.b16 %v944, %v942
        %v1037 = vpack.c.b16 %v947, %v945
        %v1038 = vpack.c.b16 %v948, %v946
        %v1039 = vpack.c.b16 %v951, %v949
        %v1040 = vpack.c.b16 %v952, %v950
        %v1041 = vpack.c.b16 %v955, %v953
        %v1042 = vpack.c.b16 %v956, %v954
        %v1043 = vpack.c.b16 %v959, %v957
        %v1044 = vpack.c.b16 %v960, %v958
        %v1045 = vpack.c.b16 %v963, %v961
        %v1046 = vpack.c.b16 %v964, %v962
        %v1047 = vpack.c.b16 %v967, %v965
        %v1048 = vpack.c.b16 %v968, %v966
        %v1049 = vpack.c.b16 %v971, %v969
        %v1050 = vpack.c.b16 %v972, %v970
        %v1051 = vpack.c.b16 %v975, %v973
        %v1052 = vpack.c.b16 %v976, %v974
        %v1053 = vpack.c.b16 %v979, %v977
        %v1054 = vpack.c.b16 %v980, %v978
        %v1055 = vpack.c.b16 %v983, %v981
        %v1056 = vpack.c.b16 %v984, %v982
        %v1057 = vpack.c.b16 %v987, %v985
        %v1058 = vpack.c.b16 %v988, %v986
        %v1059 = vpack.c.b16 %v991, %v989
        %v1060 = vpack.c.b16 %v992, %v990
        %v1061 = vpack.c.b16 %v995, %v993
        %v1062 = vpack.c.b16 %v996, %v994
        %v1063 = vpack.c.b16 %v999, %v997
        %v1064 = vpack.c.b16 %v1000, %v998
        %1129 = vmatpush.bf16.msra.mxu0 %v1015
        %1130 = vmatpush.bf16.msra.mxu0 %v1013
        %1131 = vmatpush.bf16.msra.mxu0 %v1011
        %1132 = vmatpush.bf16.msra.mxu0 %v1009
        %1133 = vmatpush.bf16.msra.mxu0 %v1007
        %1134 = vmatpush.bf16.msra.mxu0 %v1005
        %1135 = vmatpush.bf16.msra.mxu0 %v1003
        %1136 = vmatpush.bf16.msra.mxu0 %v1001
        %1137 = vmatmul.bf16.gmra.mxu0 %v801
        %v1138 = vpop.f32.mrf.mxu0
        %v1139 = vadd.f32 %v785, %v1138
        %v1140 = vpop.f32.mrf.mxu0
        %v1141 = vadd.f32 %v785, %v1140
        %1142 = vdwg.mxu0
        %1143 = vmatpush.bf16.msra.mxu0 %v1031
        %1144 = vmatpush.bf16.msra.mxu0 %v1029
        %1145 = vmatpush.bf16.msra.mxu0 %v1027
        %1146 = vmatpush.bf16.msra.mxu0 %v1025
        %1147 = vmatpush.bf16.msra.mxu0 %v1023
        %1148 = vmatpush.bf16.msra.mxu0 %v1021
        %1149 = vmatpush.bf16.msra.mxu0 %v1019
        %1150 = vmatpush.bf16.msra.mxu0 %v1017
        %1151 = vmatmul.bf16.gmra.mxu0 %v802
        %v1152 = vpop.f32.mrf.mxu0
        %v1153 = vadd.f32 %v1139, %v1152
        %v1154 = vpop.f32.mrf.mxu0
        %v1155 = vadd.f32 %v1141, %v1154
        %1156 = vdwg.mxu0
        %1157 = vmatpush.bf16.msra.mxu0 %v1047
        %1158 = vmatpush.bf16.msra.mxu0 %v1045
        %1159 = vmatpush.bf16.msra.mxu0 %v1043
        %1160 = vmatpush.bf16.msra.mxu0 %v1041
        %1161 = vmatpush.bf16.msra.mxu0 %v1039
        %1162 = vmatpush.bf16.msra.mxu0 %v1037
        %1163 = vmatpush.bf16.msra.mxu0 %v1035
        %1164 = vmatpush.bf16.msra.mxu0 %v1033
        %1165 = vmatmul.bf16.gmra.mxu0 %v803
        %v1166 = vpop.f32.mrf.mxu0
        %v1167 = vadd.f32 %v1153, %v1166
        %v1168 = vpop.f32.mrf.mxu0
        %v1169 = vadd.f32 %v1155, %v1168
        %1170 = vdwg.mxu0
        %1171 = vmatpush.bf16.msra.mxu0 %v1063
        %1172 = vmatpush.bf16.msra.mxu0 %v1061
        %1173 = vmatpush.bf16.msra.mxu0 %v1059
        %1174 = vmatpush.bf16.msra.mxu0 %v1057
        %1175 = vmatpush.bf16.msra.mxu0 %v1055
        %1176 = vmatpush.bf16.msra.mxu0 %v1053
        %1177 = vmatpush.bf16.msra.mxu0 %v1051
        %1178 = vmatpush.bf16.msra.mxu0 %v1049
        %1179 = vmatmul.bf16.gmra.mxu0 %v804
        %v1180 = vpop.f32.mrf.mxu0
        %v1181 = vadd.f32 %v1167, %v1180
        %v1182 = vpop.f32.mrf.mxu0
        %v1183 = vadd.f32 %v1169, %v1182
        %1184 = vdwg.mxu0
        %1185 = vmatpush.bf16.msra.mxu0 %v1016
        %1186 = vmatpush.bf16.msra.mxu0 %v1014
        %1187 = vmatpush.bf16.msra.mxu0 %v1012
        %1188 = vmatpush.bf16.msra.mxu0 %v1010
        %1189 = vmatpush.bf16.msra.mxu0 %v1008
        %1190 = vmatpush.bf16.msra.mxu0 %v1006
        %1191 = vmatpush.bf16.msra.mxu0 %v1004
        %1192 = vmatpush.bf16.msra.mxu0 %v1002
        %1193 = vmatmul.bf16.gmra.mxu0 %v801
        %v1194 = vpop.f32.mrf.mxu0
        %v1195 = vadd.f32 %v786, %v1194
        %v1196 = vpop.f32.mrf.mxu0
        %v1197 = vadd.f32 %v786, %v1196
        %1198 = vdwg.mxu0
        %1199 = vmatpush.bf16.msra.mxu0 %v1032
        %1200 = vmatpush.bf16.msra.mxu0 %v1030
        %1201 = vmatpush.bf16.msra.mxu0 %v1028
        %1202 = vmatpush.bf16.msra.mxu0 %v1026
        %1203 = vmatpush.bf16.msra.mxu0 %v1024
        %1204 = vmatpush.bf16.msra.mxu0 %v1022
        %1205 = vmatpush.bf16.msra.mxu0 %v1020
        %1206 = vmatpush.bf16.msra.mxu0 %v1018
        %1207 = vmatmul.bf16.gmra.mxu0 %v802
        %v1208 = vpop.f32.mrf.mxu0
        %v1209 = vadd.f32 %v1195, %v1208
        %v1210 = vpop.f32.mrf.mxu0
        %v1211 = vadd.f32 %v1197, %v1210
        %1212 = vdwg.mxu0
        %1213 = vmatpush.bf16.msra.mxu0 %v1048
        %1214 = vmatpush.bf16.msra.mxu0 %v1046
        %1215 = vmatpush.bf16.msra.mxu0 %v1044
        %1216 = vmatpush.bf16.msra.mxu0 %v1042
        %1217 = vmatpush.bf16.msra.mxu0 %v1040
        %1218 = vmatpush.bf16.msra.mxu0 %v1038
        %1219 = vmatpush.bf16.msra.mxu0 %v1036
        %1220 = vmatpush.bf16.msra.mxu0 %v1034
        %1221 = vmatmul.bf16.gmra.mxu0 %v803
        %v1222 = vpop.f32.mrf.mxu0
        %v1223 = vadd.f32 %v1209, %v1222
        %v1224 = vpop.f32.mrf.mxu0
        %v1225 = vadd.f32 %v1211, %v1224
        %1226 = vdwg.mxu0
        %1227 = vmatpush.bf16.msra.mxu0 %v1064
        %1228 = vmatpush.bf16.msra.mxu0 %v1062
        %1229 = vmatpush.bf16.msra.mxu0 %v1060
        %1230 = vmatpush.bf16.msra.mxu0 %v1058
        %1231 = vmatpush.bf16.msra.mxu0 %v1056
        %1232 = vmatpush.bf16.msra.mxu0 %v1054
        %1233 = vmatpush.bf16.msra.mxu0 %v1052
        %1234 = vmatpush.bf16.msra.mxu0 %v1050
        %1235 = vmatmul.bf16.gmra.mxu0 %v804
        %v1236 = vpop.f32.mrf.mxu0
        %v1237 = vadd.f32 %v1223, %v1236
        %v1238 = vpop.f32.mrf.mxu0
        %v1239 = vadd.f32 %v1225, %v1238
        %1240 = vdwg.mxu0
        %v1241 = vmax.f32 %v1181, 0.0
        %v1242 = vmax.f32 %v1237, 0.0
        %v1243 = vmax.f32 %v1183, 0.0
        %v1244 = vmax.f32 %v1239, 0.0
        %v1245 = vpack.c.bf16 %v1243, %v1241
        %v1246 = vpack.c.bf16 %v1244, %v1242
        %v1247 = vld [vmem:[#allocation8] sm:$0xf]
        %v1248 = vld [vmem:[#allocation8 + $0x4] sm:$0xf]
        %v1249 = vld [vmem:[#allocation8 + $0x8] sm:$0xf]
        %v1250 = vld [vmem:[#allocation8 + $0xc] sm:$0xf]
        %v1251 = vld [vmem:[#allocation8 + $0x10] sm:$0xf]
        %v1252 = vld [vmem:[#allocation8 + $0x14] sm:$0xf]
        %v1253 = vld [vmem:[#allocation8 + $0x18] sm:$0xf]
        %v1254 = vld [vmem:[#allocation8 + $0x1c] sm:$0xf]
        %v1255 = vld [vmem:[#allocation8 + $0x20] sm:$0xf]
        %v1256 = vld [vmem:[#allocation8 + $0x24] sm:$0xf]
        %v1257 = vld [vmem:[#allocation8 + $0x28] sm:$0xf]
        %v1258 = vld [vmem:[#allocation8 + $0x2c] sm:$0xf]
        %v1259 = vld [vmem:[#allocation8 + $0x30] sm:$0xf]
        %v1260 = vld [vmem:[#allocation8 + $0x34] sm:$0xf]
        %v1261 = vld [vmem:[#allocation8 + $0x38] sm:$0xf]
        %v1262 = vld [vmem:[#allocation8 + $0x3c] sm:$0xf]
        %v1263 = vld [vmem:[#allocation8 + $0x40] sm:$0xf]
        %v1264 = vld [vmem:[#allocation8 + $0x44] sm:$0xf]
        %v1265 = vld [vmem:[#allocation8 + $0x48] sm:$0xf]
        %v1266 = vld [vmem:[#allocation8 + $0x4c] sm:$0xf]
        %v1267 = vld [vmem:[#allocation8 + $0x50] sm:$0xf]
        %v1268 = vld [vmem:[#allocation8 + $0x54] sm:$0xf]
        %v1269 = vld [vmem:[#allocation8 + $0x58] sm:$0xf]
        %v1270 = vld [vmem:[#allocation8 + $0x5c] sm:$0xf]
        %v1271 = vld [vmem:[#allocation8 + $0x60] sm:$0xf]
        %v1272 = vld [vmem:[#allocation8 + $0x64] sm:$0xf]
        %v1273 = vld [vmem:[#allocation8 + $0x68] sm:$0xf]
        %v1274 = vld [vmem:[#allocation8 + $0x6c] sm:$0xf]
        %v1275 = vld [vmem:[#allocation8 + $0x70] sm:$0xf]
        %v1276 = vld [vmem:[#allocation8 + $0x74] sm:$0xf]
        %v1277 = vld [vmem:[#allocation8 + $0x78] sm:$0xf]
        %v1278 = vld [vmem:[#allocation8 + $0x7c] sm:$0xf]
        %v1279 = vld [vmem:[#allocation10] sm:$0x1]
        %v1281 = vperm.slane %v1279, 0
        %v1315 = vunpack.c.l.b16 %v1247
        %v1316 = vunpack.c.l.b16 %v1248
        %v1317 = vunpack.c.l.b16 %v1249
        %v1318 = vunpack.c.l.b16 %v1250
        %v1319 = vunpack.c.l.b16 %v1251
        %v1320 = vunpack.c.l.b16 %v1252
        %v1321 = vunpack.c.l.b16 %v1253
        %v1322 = vunpack.c.l.b16 %v1254
        %v1323 = vunpack.c.l.b16 %v1255
        %v1324 = vunpack.c.l.b16 %v1256
        %v1325 = vunpack.c.l.b16 %v1257
        %v1326 = vunpack.c.l.b16 %v1258
        %v1327 = vunpack.c.l.b16 %v1259
        %v1328 = vunpack.c.l.b16 %v1260
        %v1329 = vunpack.c.l.b16 %v1261
        %v1330 = vunpack.c.l.b16 %v1262
        %v1331 = vunpack.c.l.b16 %v1263
        %v1332 = vunpack.c.l.b16 %v1264
        %v1333 = vunpack.c.l.b16 %v1265
        %v1334 = vunpack.c.l.b16 %v1266
        %v1335 = vunpack.c.l.b16 %v1267
        %v1336 = vunpack.c.l.b16 %v1268
        %v1337 = vunpack.c.l.b16 %v1269
        %v1338 = vunpack.c.l.b16 %v1270
        %v1339 = vunpack.c.l.b16 %v1271
        %v1340 = vunpack.c.l.b16 %v1272
        %v1341 = vunpack.c.l.b16 %v1273
        %v1342 = vunpack.c.l.b16 %v1274
        %v1343 = vunpack.c.l.b16 %v1275
        %v1344 = vunpack.c.l.b16 %v1276
        %v1345 = vunpack.c.l.b16 %v1277
        %v1346 = vunpack.c.l.b16 %v1278
        %v1347 = vpack.c.b16 %v1316, %v1315
        %v1348 = vpack.c.b16 %v1318, %v1317
        %v1349 = vpack.c.b16 %v1320, %v1319
        %v1350 = vpack.c.b16 %v1322, %v1321
        %v1351 = vpack.c.b16 %v1324, %v1323
        %v1352 = vpack.c.b16 %v1326, %v1325
        %v1353 = vpack.c.b16 %v1328, %v1327
        %v1354 = vpack.c.b16 %v1330, %v1329
        %v1355 = vpack.c.b16 %v1332, %v1331
        %v1356 = vpack.c.b16 %v1334, %v1333
        %v1357 = vpack.c.b16 %v1336, %v1335
        %v1358 = vpack.c.b16 %v1338, %v1337
        %v1359 = vpack.c.b16 %v1340, %v1339
        %v1360 = vpack.c.b16 %v1342, %v1341
        %v1361 = vpack.c.b16 %v1344, %v1343
        %v1362 = vpack.c.b16 %v1346, %v1345
        %1379 = vmatpush.bf16.msra.mxu0 %v1354
        %1380 = vmatpush.bf16.msra.mxu0 %v1353
        %1381 = vmatpush.bf16.msra.mxu0 %v1352
        %1382 = vmatpush.bf16.msra.mxu0 %v1351
        %1383 = vmatpush.bf16.msra.mxu0 %v1350
        %1384 = vmatpush.bf16.msra.mxu0 %v1349
        %1385 = vmatpush.bf16.msra.mxu0 %v1348
        %1386 = vmatpush.bf16.msra.mxu0 %v1347
        %1387 = vmatmul.bf16.gmra.mxu0 %v1245
        %v1388 = vpop.f32.mrf.mxu0
        %v1389 = vadd.f32 %v1281, %v1388
        %v1390 = vpop.f32.mrf.mxu0
        %v1391 = vadd.f32 %v1281, %v1390
        %1392 = vdwg.mxu0
        %1393 = vmatpush.bf16.msra.mxu0 %v1362
        %1394 = vmatpush.bf16.msra.mxu0 %v1361
        %1395 = vmatpush.bf16.msra.mxu0 %v1360
        %1396 = vmatpush.bf16.msra.mxu0 %v1359
        %1397 = vmatpush.bf16.msra.mxu0 %v1358
        %1398 = vmatpush.bf16.msra.mxu0 %v1357
        %1399 = vmatpush.bf16.msra.mxu0 %v1356
        %1400 = vmatpush.bf16.msra.mxu0 %v1355
        %1401 = vmatmul.bf16.gmra.mxu0 %v1246
        %v1402 = vpop.f32.mrf.mxu0
        %v1403 = vadd.f32 %v1389, %v1402
        %v1404 = vpop.f32.mrf.mxu0
        %v1405 = vadd.f32 %v1391, %v1404
        %1406 = vdwg.mxu0
        %v1407 = vmax.f32 %v1403, 0.0
        %v1408 = vmax.f32 %v1405, 0.0
        %v1409 = vld [vmem:[#allocation11] sm:$0xff]
        %v1410 = vld [vmem:[#allocation11 + $0x8] sm:$0xff]
        %v1411 = vld [vmem:[#allocation11 + $0x10] sm:$0xff]
        %v1412 = vld [vmem:[#allocation11 + $0x18] sm:$0xff]
        %v1413 = vld [vmem:[#allocation11 + $0x20] sm:$0xff]
        %v1414 = vld [vmem:[#allocation11 + $0x28] sm:$0xff]
        %v1415 = vld [vmem:[#allocation11 + $0x30] sm:$0xff]
        %v1416 = vld [vmem:[#allocation11 + $0x38] sm:$0xff]
        %v1417 = vld [vmem:[#allocation11 + $0x40] sm:$0xff]
        %v1418 = vld [vmem:[#allocation11 + $0x48] sm:$0xff]
        %v1419 = vld [vmem:[#allocation11 + $0x50] sm:$0xff]
        %v1420 = vld [vmem:[#allocation11 + $0x58] sm:$0xff]
        %v1421 = vld [vmem:[#allocation11 + $0x60] sm:$0xff]
        %v1422 = vld [vmem:[#allocation11 + $0x68] sm:$0xff]
        %v1423 = vld [vmem:[#allocation11 + $0x70] sm:$0xff]
        %v1424 = vld [vmem:[#allocation11 + $0x78] sm:$0xff]
        %v1425 = vld [vmem:[#allocation11 + $0x80] sm:$0xff]
        %v1426 = vld [vmem:[#allocation11 + $0x88] sm:$0xff]
        %v1427 = vld [vmem:[#allocation11 + $0x90] sm:$0xff]
        %v1428 = vld [vmem:[#allocation11 + $0x98] sm:$0xff]
        %v1429 = vld [vmem:[#allocation11 + $0xa0] sm:$0xff]
        %v1430 = vld [vmem:[#allocation11 + $0xa8] sm:$0xff]
        %v1431 = vld [vmem:[#allocation11 + $0xb0] sm:$0xff]
        %v1432 = vld [vmem:[#allocation11 + $0xb8] sm:$0xff]
        %v1433 = vld [vmem:[#allocation11 + $0xc0] sm:$0xff]
        %v1434 = vld [vmem:[#allocation11 + $0xc8] sm:$0xff]
        %v1435 = vld [vmem:[#allocation11 + $0xd0] sm:$0xff]
        %v1436 = vld [vmem:[#allocation11 + $0xd8] sm:$0xff]
        %v1437 = vld [vmem:[#allocation11 + $0xe0] sm:$0xff]
        %v1438 = vld [vmem:[#allocation11 + $0xe8] sm:$0xff]
        %v1439 = vld [vmem:[#allocation11 + $0xf0] sm:$0xff]
        %v1440 = vld [vmem:[#allocation11 + $0xf8] sm:$0xff]
        %v1441 = vld [vmem:[#allocation13] sm:$0x3]
        %v1443 = vperm.slane %v1441, 0
        %v1444 = vperm.slane %v1441, 1
        %1447 = vmatpush.msra.mxu0 %v1439
        %1448 = vmatpush.msra.mxu0 %v1437
        %1449 = vmatpush.msra.mxu0 %v1435
        %1450 = vmatpush.msra.mxu0 %v1433
        %1451 = vmatpush.msra.mxu0 %v1431
        %1452 = vmatpush.msra.mxu0 %v1429
        %1453 = vmatpush.msra.mxu0 %v1427
        %1454 = vmatpush.msra.mxu0 %v1425
        %1455 = vmatpush.msra.mxu0 %v1423
        %1456 = vmatpush.msra.mxu0 %v1421
        %1457 = vmatpush.msra.mxu0 %v1419
        %1458 = vmatpush.msra.mxu0 %v1417
        %1459 = vmatpush.msra.mxu0 %v1415
        %1460 = vmatpush.msra.mxu0 %v1413
        %1461 = vmatpush.msra.mxu0 %v1411
        %1462 = vmatpush.msra.mxu0 %v1409
        %1463 = vmatmul.f32.gmra.mxu0 %v1407
        %v1464 = vpop.f32.mrf.mxu0
        %v1465 = vadd.f32 %v1443, %v1464
        %1466 = vmatmul.f32.gmra.mxu0 %v1408
        %v1467 = vpop.f32.mrf.mxu0
        %v1468 = vadd.f32 %v1443, %v1467
        %1469 = vdwg.mxu0
        %1470 = vmatpush.msra.mxu0 %v1440
        %1471 = vmatpush.msra.mxu0 %v1438
        %1472 = vmatpush.msra.mxu0 %v1436
        %1473 = vmatpush.msra.mxu0 %v1434
        %1474 = vmatpush.msra.mxu0 %v1432
        %1475 = vmatpush.msra.mxu0 %v1430
        %1476 = vmatpush.msra.mxu0 %v1428
        %1477 = vmatpush.msra.mxu0 %v1426
        %1478 = vmatpush.msra.mxu0 %v1424
        %1479 = vmatpush.msra.mxu0 %v1422
        %1480 = vmatpush.msra.mxu0 %v1420
        %1481 = vmatpush.msra.mxu0 %v1418
        %1482 = vmatpush.msra.mxu0 %v1416
        %1483 = vmatpush.msra.mxu0 %v1414
        %1484 = vmatpush.msra.mxu0 %v1412
        %1485 = vmatpush.msra.mxu0 %v1410
        %1486 = vmatmul.f32.gmra.mxu0 %v1407
        %v1487 = vpop.f32.mrf.mxu0
        %v1488 = vadd.f32 %v1444, %v1487
        %1489 = vmatmul.f32.gmra.mxu0 %v1408
        %v1490 = vpop.f32.mrf.mxu0
        %v1491 = vadd.f32 %v1444, %v1490
        %1492 = vdwg.mxu0
        %v1493 = vld [vmem:[%s608] sm:$0xff]
        %v1494 = vld [vmem:[%s608 + $0x8] sm:$0xff]
        %v1495 = vmul.f32 %v1488, 0.5
        %v1496 = vmul.f32 %v1491, 0.5
        %v1497 = vmul.f32 %v1495, 1.442695
        %v1498 = vpow.pop %v1497
        %v1499 = vmul.f32 %v1496, 1.442695
        %v1500 = vpow.pop %v1499
        %v1501 = vmul.f32 %v1493, %v1498
        %v1502 = vmul.f32 %v1494, %v1500
        %v1503 = vadd.f32 %v1465, %v1501
        %v1504 = vadd.f32 %v1468, %v1502
        %v1505 = vpack.c.bf16 %v1504, %v1503
        %v1506 = vld [vmem:[#allocation14] sm:$0xf]
        %v1507 = vld [vmem:[#allocation14 + $0x4] sm:$0xf]
        %v1508 = vld [vmem:[#allocation14 + $0x8] sm:$0xf]
        %v1509 = vld [vmem:[#allocation14 + $0xc] sm:$0xf]
        %v1510 = vld [vmem:[#allocation14 + $0x10] sm:$0xf]
        %v1511 = vld [vmem:[#allocation14 + $0x14] sm:$0xf]
        %v1512 = vld [vmem:[#allocation14 + $0x18] sm:$0xf]
        %v1513 = vld [vmem:[#allocation14 + $0x1c] sm:$0xf]
        %v1514 = vld [vmem:[#allocation14 + $0x20] sm:$0xf]
        %v1515 = vld [vmem:[#allocation14 + $0x24] sm:$0xf]
        %v1516 = vld [vmem:[#allocation14 + $0x28] sm:$0xf]
        %v1517 = vld [vmem:[#allocation14 + $0x2c] sm:$0xf]
        %v1518 = vld [vmem:[#allocation14 + $0x30] sm:$0xf]
        %v1519 = vld [vmem:[#allocation14 + $0x34] sm:$0xf]
        %v1520 = vld [vmem:[#allocation14 + $0x38] sm:$0xf]
        %v1521 = vld [vmem:[#allocation14 + $0x3c] sm:$0xf]
        %v1522 = vld [vmem:[#allocation16] sm:$0x1]
        %v1524 = vperm.slane %v1522, 0
        %v1542 = vunpack.c.l.b16 %v1506
        %v1543 = vunpack.c.l.b16 %v1507
        %v1544 = vunpack.c.l.b16 %v1508
        %v1545 = vunpack.c.l.b16 %v1509
        %v1546 = vunpack.c.l.b16 %v1510
        %v1547 = vunpack.c.l.b16 %v1511
        %v1548 = vunpack.c.l.b16 %v1512
        %v1549 = vunpack.c.l.b16 %v1513
        %v1550 = vunpack.c.l.b16 %v1514
        %v1551 = vunpack.c.l.b16 %v1515
        %v1552 = vunpack.c.l.b16 %v1516
        %v1553 = vunpack.c.l.b16 %v1517
        %v1554 = vunpack.c.l.b16 %v1518
        %v1555 = vunpack.c.l.b16 %v1519
        %v1556 = vunpack.c.l.b16 %v1520
        %v1557 = vunpack.c.l.b16 %v1521
        %v1558 = vpack.c.b16 %v1543, %v1542
        %v1559 = vpack.c.b16 %v1545, %v1544
        %v1560 = vpack.c.b16 %v1547, %v1546
        %v1561 = vpack.c.b16 %v1549, %v1548
        %v1562 = vpack.c.b16 %v1551, %v1550
        %v1563 = vpack.c.b16 %v1553, %v1552
        %v1564 = vpack.c.b16 %v1555, %v1554
        %v1565 = vpack.c.b16 %v1557, %v1556
        %1574 = vmatpush.bf16.msra.mxu0 %v1565
        %1575 = vmatpush.bf16.msra.mxu0 %v1564
        %1576 = vmatpush.bf16.msra.mxu0 %v1563
        %1577 = vmatpush.bf16.msra.mxu0 %v1562
        %1578 = vmatpush.bf16.msra.mxu0 %v1561
        %1579 = vmatpush.bf16.msra.mxu0 %v1560
        %1580 = vmatpush.bf16.msra.mxu0 %v1559
        %1581 = vmatpush.bf16.msra.mxu0 %v1558
        %1582 = vmatmul.bf16.gmra.mxu0 %v1505
        %v1583 = vpop.f32.mrf.mxu0
        %v1584 = vadd.f32 %v1524, %v1583
        %v1585 = vpop.f32.mrf.mxu0
        %v1586 = vadd.f32 %v1524, %v1585
        %1587 = vdwg.mxu0
        %v1588 = vmax.f32 %v1584, 0.0
        %v1589 = vmax.f32 %v1586, 0.0
        %v1590 = vpack.c.bf16 %v1589, %v1588
        %v1591 = vld [vmem:[#allocation17] sm:$0xff]
        %v1592 = vld [vmem:[#allocation17 + $0x8] sm:$0xff]
        %v1593 = vld [vmem:[#allocation17 + $0x10] sm:$0xff]
        %v1594 = vld [vmem:[#allocation17 + $0x18] sm:$0xff]
        %v1595 = vld [vmem:[#allocation17 + $0x20] sm:$0xff]
        %v1596 = vld [vmem:[#allocation17 + $0x28] sm:$0xff]
        %v1597 = vld [vmem:[#allocation17 + $0x30] sm:$0xff]
        %v1598 = vld [vmem:[#allocation17 + $0x38] sm:$0xff]
        %v1599 = vld [vmem:[#allocation17 + $0x40] sm:$0xff]
        %v1600 = vld [vmem:[#allocation17 + $0x48] sm:$0xff]
        %v1601 = vld [vmem:[#allocation17 + $0x50] sm:$0xff]
        %v1602 = vld [vmem:[#allocation17 + $0x58] sm:$0xff]
        %v1603 = vld [vmem:[#allocation17 + $0x60] sm:$0xff]
        %v1604 = vld [vmem:[#allocation17 + $0x68] sm:$0xff]
        %v1605 = vld [vmem:[#allocation17 + $0x70] sm:$0xff]
        %v1606 = vld [vmem:[#allocation17 + $0x78] sm:$0xff]
        %v1607 = vld [vmem:[%s11] sm:$0x3]
        %v1609 = vperm.slane %v1607, 0
        %v1610 = vperm.slane %v1607, 1
        %v1629 = vunpack.c.l.b16 %v1591
        %v1630 = vunpack.c.h.b16 %v1591
        %v1631 = vunpack.c.l.b16 %v1592
        %v1632 = vunpack.c.h.b16 %v1592
        %v1633 = vunpack.c.l.b16 %v1593
        %v1634 = vunpack.c.h.b16 %v1593
        %v1635 = vunpack.c.l.b16 %v1594
        %v1636 = vunpack.c.h.b16 %v1594
        %v1637 = vunpack.c.l.b16 %v1595
        %v1638 = vunpack.c.h.b16 %v1595
        %v1639 = vunpack.c.l.b16 %v1596
        %v1640 = vunpack.c.h.b16 %v1596
        %v1641 = vunpack.c.l.b16 %v1597
        %v1642 = vunpack.c.h.b16 %v1597
        %v1643 = vunpack.c.l.b16 %v1598
        %v1644 = vunpack.c.h.b16 %v1598
        %v1645 = vunpack.c.l.b16 %v1599
        %v1646 = vunpack.c.h.b16 %v1599
        %v1647 = vunpack.c.l.b16 %v1600
        %v1648 = vunpack.c.h.b16 %v1600
        %v1649 = vunpack.c.l.b16 %v1601
        %v1650 = vunpack.c.h.b16 %v1601
        %v1651 = vunpack.c.l.b16 %v1602
        %v1652 = vunpack.c.h.b16 %v1602
        %v1653 = vunpack.c.l.b16 %v1603
        %v1654 = vunpack.c.h.b16 %v1603
        %v1655 = vunpack.c.l.b16 %v1604
        %v1656 = vunpack.c.h.b16 %v1604
        %v1657 = vunpack.c.l.b16 %v1605
        %v1658 = vunpack.c.h.b16 %v1605
        %v1659 = vunpack.c.l.b16 %v1606
        %v1660 = vunpack.c.h.b16 %v1606
        %v1661 = vpack.c.b16 %v1631, %v1629
        %v1662 = vpack.c.b16 %v1632, %v1630
        %v1663 = vpack.c.b16 %v1635, %v1633
        %v1664 = vpack.c.b16 %v1636, %v1634
        %v1665 = vpack.c.b16 %v1639, %v1637
        %v1666 = vpack.c.b16 %v1640, %v1638
        %v1667 = vpack.c.b16 %v1643, %v1641
        %v1668 = vpack.c.b16 %v1644, %v1642
        %v1669 = vpack.c.b16 %v1647, %v1645
        %v1670 = vpack.c.b16 %v1648, %v1646
        %v1671 = vpack.c.b16 %v1651, %v1649
        %v1672 = vpack.c.b16 %v1652, %v1650
        %v1673 = vpack.c.b16 %v1655, %v1653
        %v1674 = vpack.c.b16 %v1656, %v1654
        %v1675 = vpack.c.b16 %v1659, %v1657
        %v1676 = vpack.c.b16 %v1660, %v1658
        %1693 = vmatpush.bf16.msra.mxu0 %v1675
        %1694 = vmatpush.bf16.msra.mxu0 %v1673
        %1695 = vmatpush.bf16.msra.mxu0 %v1671
        %1696 = vmatpush.bf16.msra.mxu0 %v1669
        %1697 = vmatpush.bf16.msra.mxu0 %v1667
        %1698 = vmatpush.bf16.msra.mxu0 %v1665
        %1699 = vmatpush.bf16.msra.mxu0 %v1663
        %1700 = vmatpush.bf16.msra.mxu0 %v1661
        %1701 = vmatmul.bf16.gmra.mxu0 %v1590
        %v1702 = vpop.f32.mrf.mxu0
        %v1703 = vadd.f32 %v1609, %v1702
        %v1704 = vpop.f32.mrf.mxu0
        %v1705 = vadd.f32 %v1609, %v1704
        %1706 = vdwg.mxu0
        %1707 = vmatpush.bf16.msra.mxu0 %v1676
        %1708 = vmatpush.bf16.msra.mxu0 %v1674
        %1709 = vmatpush.bf16.msra.mxu0 %v1672
        %1710 = vmatpush.bf16.msra.mxu0 %v1670
        %1711 = vmatpush.bf16.msra.mxu0 %v1668
        %1712 = vmatpush.bf16.msra.mxu0 %v1666
        %1713 = vmatpush.bf16.msra.mxu0 %v1664
        %1714 = vmatpush.bf16.msra.mxu0 %v1662
        %1715 = vmatmul.bf16.gmra.mxu0 %v1590
        %v1716 = vpop.f32.mrf.mxu0
        %v1717 = vadd.f32 %v1610, %v1716
        %v1718 = vpop.f32.mrf.mxu0
        %v1719 = vadd.f32 %v1610, %v1718
        %1720 = vdwg.mxu0
        %v1721 = vmax.f32 %v1703, 0.0
        %v1722 = vmax.f32 %v1717, 0.0
        %v1723 = vmax.f32 %v1705, 0.0
        %v1724 = vmax.f32 %v1719, 0.0
        %v1725 = vpack.c.bf16 %v1723, %v1721
        %v1726 = vpack.c.bf16 %v1724, %v1722
        %v1727 = vld [vmem:[#allocation19] sm:$0xff]
        %v1728 = vld [vmem:[#allocation19 + $0x8] sm:$0xff]
        %v1729 = vld [vmem:[#allocation19 + $0x10] sm:$0xff]
        %v1730 = vld [vmem:[#allocation19 + $0x18] sm:$0xff]
        %v1731 = vld [vmem:[#allocation19 + $0x20] sm:$0xff]
        %v1732 = vld [vmem:[#allocation19 + $0x28] sm:$0xff]
        %v1733 = vld [vmem:[#allocation19 + $0x30] sm:$0xff]
        %v1734 = vld [vmem:[#allocation19 + $0x38] sm:$0xff]
        %v1735 = vld [vmem:[#allocation19 + $0x40] sm:$0xff]
        %v1736 = vld [vmem:[#allocation19 + $0x48] sm:$0xff]
        %v1737 = vld [vmem:[#allocation19 + $0x50] sm:$0xff]
        %v1738 = vld [vmem:[#allocation19 + $0x58] sm:$0xff]
        %v1739 = vld [vmem:[#allocation19 + $0x60] sm:$0xff]
        %v1740 = vld [vmem:[#allocation19 + $0x68] sm:$0xff]
        %v1741 = vld [vmem:[#allocation19 + $0x70] sm:$0xff]
        %v1742 = vld [vmem:[#allocation19 + $0x78] sm:$0xff]
        %v1743 = vld [vmem:[#allocation19 + $0x80] sm:$0xff]
        %v1744 = vld [vmem:[#allocation19 + $0x88] sm:$0xff]
        %v1745 = vld [vmem:[#allocation19 + $0x90] sm:$0xff]
        %v1746 = vld [vmem:[#allocation19 + $0x98] sm:$0xff]
        %v1747 = vld [vmem:[#allocation19 + $0xa0] sm:$0xff]
        %v1748 = vld [vmem:[#allocation19 + $0xa8] sm:$0xff]
        %v1749 = vld [vmem:[#allocation19 + $0xb0] sm:$0xff]
        %v1750 = vld [vmem:[#allocation19 + $0xb8] sm:$0xff]
        %v1751 = vld [vmem:[#allocation19 + $0xc0] sm:$0xff]
        %v1752 = vld [vmem:[#allocation19 + $0xc8] sm:$0xff]
        %v1753 = vld [vmem:[#allocation19 + $0xd0] sm:$0xff]
        %v1754 = vld [vmem:[#allocation19 + $0xd8] sm:$0xff]
        %v1755 = vld [vmem:[#allocation19 + $0xe0] sm:$0xff]
        %v1756 = vld [vmem:[#allocation19 + $0xe8] sm:$0xff]
        %v1757 = vld [vmem:[#allocation19 + $0xf0] sm:$0xff]
        %v1758 = vld [vmem:[#allocation19 + $0xf8] sm:$0xff]
        %v1759 = vld [vmem:[#allocation19 + $0x100] sm:$0xff]
        %v1760 = vld [vmem:[#allocation19 + $0x108] sm:$0xff]
        %v1761 = vld [vmem:[#allocation19 + $0x110] sm:$0xff]
        %v1762 = vld [vmem:[#allocation19 + $0x118] sm:$0xff]
        %v1763 = vld [vmem:[#allocation19 + $0x120] sm:$0xff]
        %v1764 = vld [vmem:[#allocation19 + $0x128] sm:$0xff]
        %v1765 = vld [vmem:[#allocation19 + $0x130] sm:$0xff]
        %v1766 = vld [vmem:[#allocation19 + $0x138] sm:$0xff]
        %v1767 = vld [vmem:[#allocation19 + $0x140] sm:$0xff]
        %v1768 = vld [vmem:[#allocation19 + $0x148] sm:$0xff]
        %v1769 = vld [vmem:[#allocation19 + $0x150] sm:$0xff]
        %v1770 = vld [vmem:[#allocation19 + $0x158] sm:$0xff]
        %v1771 = vld [vmem:[#allocation19 + $0x160] sm:$0xff]
        %v1772 = vld [vmem:[#allocation19 + $0x168] sm:$0xff]
        %v1773 = vld [vmem:[#allocation19 + $0x170] sm:$0xff]
        %v1774 = vld [vmem:[#allocation19 + $0x178] sm:$0xff]
        %v1775 = vld [vmem:[#allocation19 + $0x180] sm:$0xff]
        %v1776 = vld [vmem:[#allocation19 + $0x188] sm:$0xff]
        %v1777 = vld [vmem:[#allocation19 + $0x190] sm:$0xff]
        %v1778 = vld [vmem:[#allocation19 + $0x198] sm:$0xff]
        %v1779 = vld [vmem:[#allocation19 + $0x1a0] sm:$0xff]
        %v1780 = vld [vmem:[#allocation19 + $0x1a8] sm:$0xff]
        %v1781 = vld [vmem:[#allocation19 + $0x1b0] sm:$0xff]
        %v1782 = vld [vmem:[#allocation19 + $0x1b8] sm:$0xff]
        %v1783 = vld [vmem:[#allocation19 + $0x1c0] sm:$0xff]
        %v1784 = vld [vmem:[#allocation19 + $0x1c8] sm:$0xff]
        %v1785 = vld [vmem:[#allocation19 + $0x1d0] sm:$0xff]
        %v1786 = vld [vmem:[#allocation19 + $0x1d8] sm:$0xff]
        %v1787 = vld [vmem:[#allocation19 + $0x1e0] sm:$0xff]
        %v1788 = vld [vmem:[#allocation19 + $0x1e8] sm:$0xff]
        %v1789 = vld [vmem:[#allocation19 + $0x1f0] sm:$0xff]
        %v1790 = vld [vmem:[#allocation19 + $0x1f8] sm:$0xff]
        %v1791 = vld [vmem:[%s13] sm:$0xf]
        %v1793 = vperm.slane %v1791, 0
        %v1794 = vperm.slane %v1791, 1
        %v1795 = vperm.slane %v1791, 2
        %v1796 = vperm.slane %v1791, 3
        %v1865 = vunpack.c.l.b16 %v1727
        %v1866 = vunpack.c.h.b16 %v1727
        %v1867 = vunpack.c.l.b16 %v1728
        %v1868 = vunpack.c.h.b16 %v1728
        %v1869 = vunpack.c.l.b16 %v1729
        %v1870 = vunpack.c.h.b16 %v1729
        %v1871 = vunpack.c.l.b16 %v1730
        %v1872 = vunpack.c.h.b16 %v1730
        %v1873 = vunpack.c.l.b16 %v1731
        %v1874 = vunpack.c.h.b16 %v1731
        %v1875 = vunpack.c.l.b16 %v1732
        %v1876 = vunpack.c.h.b16 %v1732
        %v1877 = vunpack.c.l.b16 %v1733
        %v1878 = vunpack.c.h.b16 %v1733
        %v1879 = vunpack.c.l.b16 %v1734
        %v1880 = vunpack.c.h.b16 %v1734
        %v1881 = vunpack.c.l.b16 %v1735
        %v1882 = vunpack.c.h.b16 %v1735
        %v1883 = vunpack.c.l.b16 %v1736
        %v1884 = vunpack.c.h.b16 %v1736
        %v1885 = vunpack.c.l.b16 %v1737
        %v1886 = vunpack.c.h.b16 %v1737
        %v1887 = vunpack.c.l.b16 %v1738
        %v1888 = vunpack.c.h.b16 %v1738
        %v1889 = vunpack.c.l.b16 %v1739
        %v1890 = vunpack.c.h.b16 %v1739
        %v1891 = vunpack.c.l.b16 %v1740
        %v1892 = vunpack.c.h.b16 %v1740
        %v1893 = vunpack.c.l.b16 %v1741
        %v1894 = vunpack.c.h.b16 %v1741
        %v1895 = vunpack.c.l.b16 %v1742
        %v1896 = vunpack.c.h.b16 %v1742
        %v1897 = vunpack.c.l.b16 %v1743
        %v1898 = vunpack.c.h.b16 %v1743
        %v1899 = vunpack.c.l.b16 %v1744
        %v1900 = vunpack.c.h.b16 %v1744
        %v1901 = vunpack.c.l.b16 %v1745
        %v1902 = vunpack.c.h.b16 %v1745
        %v1903 = vunpack.c.l.b16 %v1746
        %v1904 = vunpack.c.h.b16 %v1746
        %v1905 = vunpack.c.l.b16 %v1747
        %v1906 = vunpack.c.h.b16 %v1747
        %v1907 = vunpack.c.l.b16 %v1748
        %v1908 = vunpack.c.h.b16 %v1748
        %v1909 = vunpack.c.l.b16 %v1749
        %v1910 = vunpack.c.h.b16 %v1749
        %v1911 = vunpack.c.l.b16 %v1750
        %v1912 = vunpack.c.h.b16 %v1750
        %v1913 = vunpack.c.l.b16 %v1751
        %v1914 = vunpack.c.h.b16 %v1751
        %v1915 = vunpack.c.l.b16 %v1752
        %v1916 = vunpack.c.h.b16 %v1752
        %v1917 = vunpack.c.l.b16 %v1753
        %v1918 = vunpack.c.h.b16 %v1753
        %v1919 = vunpack.c.l.b16 %v1754
        %v1920 = vunpack.c.h.b16 %v1754
        %v1921 = vunpack.c.l.b16 %v1755
        %v1922 = vunpack.c.h.b16 %v1755
        %v1923 = vunpack.c.l.b16 %v1756
        %v1924 = vunpack.c.h.b16 %v1756
        %v1925 = vunpack.c.l.b16 %v1757
        %v1926 = vunpack.c.h.b16 %v1757
        %v1927 = vunpack.c.l.b16 %v1758
        %v1928 = vunpack.c.h.b16 %v1758
        %v1929 = vunpack.c.l.b16 %v1759
        %v1930 = vunpack.c.h.b16 %v1759
        %v1931 = vunpack.c.l.b16 %v1760
        %v1932 = vunpack.c.h.b16 %v1760
        %v1933 = vunpack.c.l.b16 %v1761
        %v1934 = vunpack.c.h.b16 %v1761
        %v1935 = vunpack.c.l.b16 %v1762
        %v1936 = vunpack.c.h.b16 %v1762
        %v1937 = vunpack.c.l.b16 %v1763
        %v1938 = vunpack.c.h.b16 %v1763
        %v1939 = vunpack.c.l.b16 %v1764
        %v1940 = vunpack.c.h.b16 %v1764
        %v1941 = vunpack.c.l.b16 %v1765
        %v1942 = vunpack.c.h.b16 %v1765
        %v1943 = vunpack.c.l.b16 %v1766
        %v1944 = vunpack.c.h.b16 %v1766
        %v1945 = vunpack.c.l.b16 %v1767
        %v1946 = vunpack.c.h.b16 %v1767
        %v1947 = vunpack.c.l.b16 %v1768
        %v1948 = vunpack.c.h.b16 %v1768
        %v1949 = vunpack.c.l.b16 %v1769
        %v1950 = vunpack.c.h.b16 %v1769
        %v1951 = vunpack.c.l.b16 %v1770
        %v1952 = vunpack.c.h.b16 %v1770
        %v1953 = vunpack.c.l.b16 %v1771
        %v1954 = vunpack.c.h.b16 %v1771
        %v1955 = vunpack.c.l.b16 %v1772
        %v1956 = vunpack.c.h.b16 %v1772
        %v1957 = vunpack.c.l.b16 %v1773
        %v1958 = vunpack.c.h.b16 %v1773
        %v1959 = vunpack.c.l.b16 %v1774
        %v1960 = vunpack.c.h.b16 %v1774
        %v1961 = vunpack.c.l.b16 %v1775
        %v1962 = vunpack.c.h.b16 %v1775
        %v1963 = vunpack.c.l.b16 %v1776
        %v1964 = vunpack.c.h.b16 %v1776
        %v1965 = vunpack.c.l.b16 %v1777
        %v1966 = vunpack.c.h.b16 %v1777
        %v1967 = vunpack.c.l.b16 %v1778
        %v1968 = vunpack.c.h.b16 %v1778
        %v1969 = vunpack.c.l.b16 %v1779
        %v1970 = vunpack.c.h.b16 %v1779
        %v1971 = vunpack.c.l.b16 %v1780
        %v1972 = vunpack.c.h.b16 %v1780
        %v1973 = vunpack.c.l.b16 %v1781
        %v1974 = vunpack.c.h.b16 %v1781
        %v1975 = vunpack.c.l.b16 %v1782
        %v1976 = vunpack.c.h.b16 %v1782
        %v1977 = vunpack.c.l.b16 %v1783
        %v1978 = vunpack.c.h.b16 %v1783
        %v1979 = vunpack.c.l.b16 %v1784
        %v1980 = vunpack.c.h.b16 %v1784
        %v1981 = vunpack.c.l.b16 %v1785
        %v1982 = vunpack.c.h.b16 %v1785
        %v1983 = vunpack.c.l.b16 %v1786
        %v1984 = vunpack.c.h.b16 %v1786
        %v1985 = vunpack.c.l.b16 %v1787
        %v1986 = vunpack.c.h.b16 %v1787
        %v1987 = vunpack.c.l.b16 %v1788
        %v1988 = vunpack.c.h.b16 %v1788
        %v1989 = vunpack.c.l.b16 %v1789
        %v1990 = vunpack.c.h.b16 %v1789
        %v1991 = vunpack.c.l.b16 %v1790
        %v1992 = vunpack.c.h.b16 %v1790
        %v1993 = vpack.c.b16 %v1869, %v1865
        %v1994 = vpack.c.b16 %v1870, %v1866
        %v1995 = vpack.c.b16 %v1871, %v1867
        %v1996 = vpack.c.b16 %v1872, %v1868
        %v1997 = vpack.c.b16 %v1877, %v1873
        %v1998 = vpack.c.b16 %v1878, %v1874
        %v1999 = vpack.c.b16 %v1879, %v1875
        %v2000 = vpack.c.b16 %v1880, %v1876
        %v2001 = vpack.c.b16 %v1885, %v1881
        %v2002 = vpack.c.b16 %v1886, %v1882
        %v2003 = vpack.c.b16 %v1887, %v1883
        %v2004 = vpack.c.b16 %v1888, %v1884
        %v2005 = vpack.c.b16 %v1893, %v1889
        %v2006 = vpack.c.b16 %v1894, %v1890
        %v2007 = vpack.c.b16 %v1895, %v1891
        %v2008 = vpack.c.b16 %v1896, %v1892
        %v2009 = vpack.c.b16 %v1901, %v1897
        %v2010 = vpack.c.b16 %v1902, %v1898
        %v2011 = vpack.c.b16 %v1903, %v1899
        %v2012 = vpack.c.b16 %v1904, %v1900
        %v2013 = vpack.c.b16 %v1909, %v1905
        %v2014 = vpack.c.b16 %v1910, %v1906
        %v2015 = vpack.c.b16 %v1911, %v1907
        %v2016 = vpack.c.b16 %v1912, %v1908
        %v2017 = vpack.c.b16 %v1917, %v1913
        %v2018 = vpack.c.b16 %v1918, %v1914
        %v2019 = vpack.c.b16 %v1919, %v1915
        %v2020 = vpack.c.b16 %v1920, %v1916
        %v2021 = vpack.c.b16 %v1925, %v1921
        %v2022 = vpack.c.b16 %v1926, %v1922
        %v2023 = vpack.c.b16 %v1927, %v1923
        %v2024 = vpack.c.b16 %v1928, %v1924
        %v2025 = vpack.c.b16 %v1933, %v1929
        %v2026 = vpack.c.b16 %v1934, %v1930
        %v2027 = vpack.c.b16 %v1935, %v1931
        %v2028 = vpack.c.b16 %v1936, %v1932
        %v2029 = vpack.c.b16 %v1941, %v1937
        %v2030 = vpack.c.b16 %v1942, %v1938
        %v2031 = vpack.c.b16 %v1943, %v1939
        %v2032 = vpack.c.b16 %v1944, %v1940
        %v2033 = vpack.c.b16 %v1949, %v1945
        %v2034 = vpack.c.b16 %v1950, %v1946
        %v2035 = vpack.c.b16 %v1951, %v1947
        %v2036 = vpack.c.b16 %v1952, %v1948
        %v2037 = vpack.c.b16 %v1957, %v1953
        %v2038 = vpack.c.b16 %v1958, %v1954
        %v2039 = vpack.c.b16 %v1959, %v1955
        %v2040 = vpack.c.b16 %v1960, %v1956
        %v2041 = vpack.c.b16 %v1965, %v1961
        %v2042 = vpack.c.b16 %v1966, %v1962
        %v2043 = vpack.c.b16 %v1967, %v1963
        %v2044 = vpack.c.b16 %v1968, %v1964
        %v2045 = vpack.c.b16 %v1973, %v1969
        %v2046 = vpack.c.b16 %v1974, %v1970
        %v2047 = vpack.c.b16 %v1975, %v1971
        %v2048 = vpack.c.b16 %v1976, %v1972
        %v2049 = vpack.c.b16 %v1981, %v1977
        %v2050 = vpack.c.b16 %v1982, %v1978
        %v2051 = vpack.c.b16 %v1983, %v1979
        %v2052 = vpack.c.b16 %v1984, %v1980
        %v2053 = vpack.c.b16 %v1989, %v1985
        %v2054 = vpack.c.b16 %v1990, %v1986
        %v2055 = vpack.c.b16 %v1991, %v1987
        %v2056 = vpack.c.b16 %v1992, %v1988
        %2121 = vmatpush.bf16.msra.mxu0 %v2021
        %2122 = vmatpush.bf16.msra.mxu0 %v2017
        %2123 = vmatpush.bf16.msra.mxu0 %v2013
        %2124 = vmatpush.bf16.msra.mxu0 %v2009
        %2125 = vmatpush.bf16.msra.mxu0 %v2005
        %2126 = vmatpush.bf16.msra.mxu0 %v2001
        %2127 = vmatpush.bf16.msra.mxu0 %v1997
        %2128 = vmatpush.bf16.msra.mxu0 %v1993
        %2129 = vmatmul.bf16.gmra.mxu0 %v1725
        %v2130 = vpop.f32.mrf.mxu0
        %v2131 = vadd.f32 %v1793, %v2130
        %v2132 = vpop.f32.mrf.mxu0
        %v2133 = vadd.f32 %v1793, %v2132
        %2134 = vdwg.mxu0
        %2135 = vmatpush.bf16.msra.mxu0 %v2053
        %2136 = vmatpush.bf16.msra.mxu0 %v2049
        %2137 = vmatpush.bf16.msra.mxu0 %v2045
        %2138 = vmatpush.bf16.msra.mxu0 %v2041
        %2139 = vmatpush.bf16.msra.mxu0 %v2037
        %2140 = vmatpush.bf16.msra.mxu0 %v2033
        %2141 = vmatpush.bf16.msra.mxu0 %v2029
        %2142 = vmatpush.bf16.msra.mxu0 %v2025
        %2143 = vmatmul.bf16.gmra.mxu0 %v1726
        %v2144 = vpop.f32.mrf.mxu0
        %v2145 = vadd.f32 %v2131, %v2144
        %v2146 = vpop.f32.mrf.mxu0
        %v2147 = vadd.f32 %v2133, %v2146
        %2148 = vdwg.mxu0
        %2149 = vmatpush.bf16.msra.mxu0 %v2022
        %2150 = vmatpush.bf16.msra.mxu0 %v2018
        %2151 = vmatpush.bf16.msra.mxu0 %v2014
        %2152 = vmatpush.bf16.msra.mxu0 %v2010
        %2153 = vmatpush.bf16.msra.mxu0 %v2006
        %2154 = vmatpush.bf16.msra.mxu0 %v2002
        %2155 = vmatpush.bf16.msra.mxu0 %v1998
        %2156 = vmatpush.bf16.msra.mxu0 %v1994
        %2157 = vmatmul.bf16.gmra.mxu0 %v1725
        %v2158 = vpop.f32.mrf.mxu0
        %v2159 = vadd.f32 %v1794, %v2158
        %v2160 = vpop.f32.mrf.mxu0
        %v2161 = vadd.f32 %v1794, %v2160
        %2162 = vdwg.mxu0
        %2163 = vmatpush.bf16.msra.mxu0 %v2054
        %2164 = vmatpush.bf16.msra.mxu0 %v2050
        %2165 = vmatpush.bf16.msra.mxu0 %v2046
        %2166 = vmatpush.bf16.msra.mxu0 %v2042
        %2167 = vmatpush.bf16.msra.mxu0 %v2038
        %2168 = vmatpush.bf16.msra.mxu0 %v2034
        %2169 = vmatpush.bf16.msra.mxu0 %v2030
        %2170 = vmatpush.bf16.msra.mxu0 %v2026
        %2171 = vmatmul.bf16.gmra.mxu0 %v1726
        %v2172 = vpop.f32.mrf.mxu0
        %v2173 = vadd.f32 %v2159, %v2172
        %v2174 = vpop.f32.mrf.mxu0
        %v2175 = vadd.f32 %v2161, %v2174
        %2176 = vdwg.mxu0
        %2177 = vmatpush.bf16.msra.mxu0 %v2023
        %2178 = vmatpush.bf16.msra.mxu0 %v2019
        %2179 = vmatpush.bf16.msra.mxu0 %v2015
        %2180 = vmatpush.bf16.msra.mxu0 %v2011
        %2181 = vmatpush.bf16.msra.mxu0 %v2007
        %2182 = vmatpush.bf16.msra.mxu0 %v2003
        %2183 = vmatpush.bf16.msra.mxu0 %v1999
        %2184 = vmatpush.bf16.msra.mxu0 %v1995
        %2185 = vmatmul.bf16.gmra.mxu0 %v1725
        %v2186 = vpop.f32.mrf.mxu0
        %v2187 = vadd.f32 %v1795, %v2186
        %v2188 = vpop.f32.mrf.mxu0
        %v2189 = vadd.f32 %v1795, %v2188
        %2190 = vdwg.mxu0
        %2191 = vmatpush.bf16.msra.mxu0 %v2055
        %2192 = vmatpush.bf16.msra.mxu0 %v2051
        %2193 = vmatpush.bf16.msra.mxu0 %v2047
        %2194 = vmatpush.bf16.msra.mxu0 %v2043
        %2195 = vmatpush.bf16.msra.mxu0 %v2039
        %2196 = vmatpush.bf16.msra.mxu0 %v2035
        %2197 = vmatpush.bf16.msra.mxu0 %v2031
        %2198 = vmatpush.bf16.msra.mxu0 %v2027
        %2199 = vmatmul.bf16.gmra.mxu0 %v1726
        %v2200 = vpop.f32.mrf.mxu0
        %v2201 = vadd.f32 %v2187, %v2200
        %v2202 = vpop.f32.mrf.mxu0
        %v2203 = vadd.f32 %v2189, %v2202
        %2204 = vdwg.mxu0
        %2205 = vmatpush.bf16.msra.mxu0 %v2024
        %2206 = vmatpush.bf16.msra.mxu0 %v2020
        %2207 = vmatpush.bf16.msra.mxu0 %v2016
        %2208 = vmatpush.bf16.msra.mxu0 %v2012
        %2209 = vmatpush.bf16.msra.mxu0 %v2008
        %2210 = vmatpush.bf16.msra.mxu0 %v2004
        %2211 = vmatpush.bf16.msra.mxu0 %v2000
        %2212 = vmatpush.bf16.msra.mxu0 %v1996
        %2213 = vmatmul.bf16.gmra.mxu0 %v1725
        %v2214 = vpop.f32.mrf.mxu0
        %v2215 = vadd.f32 %v1796, %v2214
        %v2216 = vpop.f32.mrf.mxu0
        %v2217 = vadd.f32 %v1796, %v2216
        %2218 = vdwg.mxu0
        %2219 = vmatpush.bf16.msra.mxu0 %v2056
        %2220 = vmatpush.bf16.msra.mxu0 %v2052
        %2221 = vmatpush.bf16.msra.mxu0 %v2048
        %2222 = vmatpush.bf16.msra.mxu0 %v2044
        %2223 = vmatpush.bf16.msra.mxu0 %v2040
        %2224 = vmatpush.bf16.msra.mxu0 %v2036
        %2225 = vmatpush.bf16.msra.mxu0 %v2032
        %2226 = vmatpush.bf16.msra.mxu0 %v2028
        %2227 = vmatmul.bf16.gmra.mxu0 %v1726
        %v2228 = vpop.f32.mrf.mxu0
        %v2229 = vadd.f32 %v2215, %v2228
        %v2230 = vpop.f32.mrf.mxu0
        %v2231 = vadd.f32 %v2217, %v2230
        %2232 = vdwg.mxu0
        %v2233 = vxor.u32 %v2145, 2147483648
        %v2234 = vxor.u32 %v2173, 2147483648
        %v2235 = vxor.u32 %v2201, 2147483648
        %v2236 = vxor.u32 %v2229, 2147483648
        %v2237 = vxor.u32 %v2147, 2147483648
        %v2238 = vxor.u32 %v2175, 2147483648
        %v2239 = vxor.u32 %v2203, 2147483648
        %v2240 = vxor.u32 %v2231, 2147483648
        %v2241 = vmul.f32 %v2233, 1.442695
        %v2242 = vpow.pop %v2241
        %v2243 = vmul.f32 %v2234, 1.442695
        %v2244 = vpow.pop %v2243
        %v2245 = vmul.f32 %v2235, 1.442695
        %v2246 = vpow.pop %v2245
        %v2247 = vmul.f32 %v2236, 1.442695
        %v2248 = vpow.pop %v2247
        %v2249 = vmul.f32 %v2237, 1.442695
        %v2250 = vpow.pop %v2249
        %v2251 = vmul.f32 %v2238, 1.442695
        %v2252 = vpow.pop %v2251
        %v2253 = vmul.f32 %v2239, 1.442695
        %v2254 = vpow.pop %v2253
        %v2255 = vmul.f32 %v2240, 1.442695
        %v2256 = vpow.pop %v2255
        %v2257 = vadd.f32 %v2242, 1.0
        %v2258 = vadd.f32 %v2244, 1.0
        %v2259 = vadd.f32 %v2246, 1.0
        %v2260 = vadd.f32 %v2248, 1.0
        %v2261 = vadd.f32 %v2250, 1.0
        %v2262 = vadd.f32 %v2252, 1.0
        %v2263 = vadd.f32 %v2254, 1.0
        %v2264 = vadd.f32 %v2256, 1.0
        %v2265 = vrcp.pop %v2257
        %v2266 = vmul.f32 %v2257, %v2265
        %v2267 = vsub.f32 1.0, %v2266
        %v2268 = vmul.f32 %v2265, %v2267
        %v2269 = vadd.f32 %v2265, %v2268
        %vm2270 = vweird.f32 %v2257
        %vm2271 = vweird.f32 %v2265
        %vm2272 = vmor %vm2270, %vm2271
        %v2273 = vsel %vm2272, %v2265, %v2269
        %v2274 = vand.u32 2147483647, %v2257
        %vm2275 = vcmp.eq.f32.partialorder %v2274, 8.507059e+37
        %v2276 = vand.u32 %v2257, 2147483648
        %v2277 = vor.u32 1.1754944e-38, %v2276
        %v2278 = vsel %vm2275, %v2277, %v2273
        %v2279 = vmul.f32 1.0, %v2278
        %v2280 = vrcp.pop %v2258
        %v2281 = vmul.f32 %v2258, %v2280
        %v2282 = vsub.f32 1.0, %v2281
        %v2283 = vmul.f32 %v2280, %v2282
        %v2284 = vadd.f32 %v2280, %v2283
        %vm2285 = vweird.f32 %v2258
        %vm2286 = vweird.f32 %v2280
        %vm2287 = vmor %vm2285, %vm2286
        %v2288 = vsel %vm2287, %v2280, %v2284
        %v2289 = vand.u32 2147483647, %v2258
        %vm2290 = vcmp.eq.f32.partialorder %v2289, 8.507059e+37
        %v2291 = vand.u32 %v2258, 2147483648
        %v2292 = vor.u32 1.1754944e-38, %v2291
        %v2293 = vsel %vm2290, %v2292, %v2288
        %v2294 = vmul.f32 1.0, %v2293
        %v2295 = vrcp.pop %v2259
        %v2296 = vmul.f32 %v2259, %v2295
        %v2297 = vsub.f32 1.0, %v2296
        %v2298 = vmul.f32 %v2295, %v2297
        %v2299 = vadd.f32 %v2295, %v2298
        %vm2300 = vweird.f32 %v2259
        %vm2301 = vweird.f32 %v2295
        %vm2302 = vmor %vm2300, %vm2301
        %v2303 = vsel %vm2302, %v2295, %v2299
        %v2304 = vand.u32 2147483647, %v2259
        %vm2305 = vcmp.eq.f32.partialorder %v2304, 8.507059e+37
        %v2306 = vand.u32 %v2259, 2147483648
        %v2307 = vor.u32 1.1754944e-38, %v2306
        %v2308 = vsel %vm2305, %v2307, %v2303
        %v2309 = vmul.f32 1.0, %v2308
        %v2310 = vrcp.pop %v2260
        %v2311 = vmul.f32 %v2260, %v2310
        %v2312 = vsub.f32 1.0, %v2311
        %v2313 = vmul.f32 %v2310, %v2312
        %v2314 = vadd.f32 %v2310, %v2313
        %vm2315 = vweird.f32 %v2260
        %vm2316 = vweird.f32 %v2310
        %vm2317 = vmor %vm2315, %vm2316
        %v2318 = vsel %vm2317, %v2310, %v2314
        %v2319 = vand.u32 2147483647, %v2260
        %vm2320 = vcmp.eq.f32.partialorder %v2319, 8.507059e+37
        %v2321 = vand.u32 %v2260, 2147483648
        %v2322 = vor.u32 1.1754944e-38, %v2321
        %v2323 = vsel %vm2320, %v2322, %v2318
        %v2324 = vmul.f32 1.0, %v2323
        %v2325 = vrcp.pop %v2261
        %v2326 = vmul.f32 %v2261, %v2325
        %v2327 = vsub.f32 1.0, %v2326
        %v2328 = vmul.f32 %v2325, %v2327
        %v2329 = vadd.f32 %v2325, %v2328
        %vm2330 = vweird.f32 %v2261
        %vm2331 = vweird.f32 %v2325
        %vm2332 = vmor %vm2330, %vm2331
        %v2333 = vsel %vm2332, %v2325, %v2329
        %v2334 = vand.u32 2147483647, %v2261
        %vm2335 = vcmp.eq.f32.partialorder %v2334, 8.507059e+37
        %v2336 = vand.u32 %v2261, 2147483648
        %v2337 = vor.u32 1.1754944e-38, %v2336
        %v2338 = vsel %vm2335, %v2337, %v2333
        %v2339 = vmul.f32 1.0, %v2338
        %v2340 = vrcp.pop %v2262
        %v2341 = vmul.f32 %v2262, %v2340
        %v2342 = vsub.f32 1.0, %v2341
        %v2343 = vmul.f32 %v2340, %v2342
        %v2344 = vadd.f32 %v2340, %v2343
        %vm2345 = vweird.f32 %v2262
        %vm2346 = vweird.f32 %v2340
        %vm2347 = vmor %vm2345, %vm2346
        %v2348 = vsel %vm2347, %v2340, %v2344
        %v2349 = vand.u32 2147483647, %v2262
        %vm2350 = vcmp.eq.f32.partialorder %v2349, 8.507059e+37
        %v2351 = vand.u32 %v2262, 2147483648
        %v2352 = vor.u32 1.1754944e-38, %v2351
        %v2353 = vsel %vm2350, %v2352, %v2348
        %v2354 = vmul.f32 1.0, %v2353
        %v2355 = vrcp.pop %v2263
        %v2356 = vmul.f32 %v2263, %v2355
        %v2357 = vsub.f32 1.0, %v2356
        %v2358 = vmul.f32 %v2355, %v2357
        %v2359 = vadd.f32 %v2355, %v2358
        %vm2360 = vweird.f32 %v2263
        %vm2361 = vweird.f32 %v2355
        %vm2362 = vmor %vm2360, %vm2361
        %v2363 = vsel %vm2362, %v2355, %v2359
        %v2364 = vand.u32 2147483647, %v2263
        %vm2365 = vcmp.eq.f32.partialorder %v2364, 8.507059e+37
        %v2366 = vand.u32 %v2263, 2147483648
        %v2367 = vor.u32 1.1754944e-38, %v2366
        %v2368 = vsel %vm2365, %v2367, %v2363
        %v2369 = vmul.f32 1.0, %v2368
        %v2370 = vrcp.pop %v2264
        %v2371 = vmul.f32 %v2264, %v2370
        %v2372 = vsub.f32 1.0, %v2371
        %v2373 = vmul.f32 %v2370, %v2372
        %v2374 = vadd.f32 %v2370, %v2373
        %vm2375 = vweird.f32 %v2264
        %vm2376 = vweird.f32 %v2370
        %vm2377 = vmor %vm2375, %vm2376
        %v2378 = vsel %vm2377, %v2370, %v2374
        %v2379 = vand.u32 2147483647, %v2264
        %vm2380 = vcmp.eq.f32.partialorder %v2379, 8.507059e+37
        %v2381 = vand.u32 %v2264, 2147483648
        %v2382 = vor.u32 1.1754944e-38, %v2381
        %v2383 = vsel %vm2380, %v2382, %v2378
        %v2384 = vmul.f32 1.0, %v2383
        %2385 = vst [vmem:[%s703] sm:$0xff] %v2279
        %2386 = vst [vmem:[%s703 + $0x8] sm:$0xff] %v2294
        %2387 = vst [vmem:[%s703 + $0x10] sm:$0xff] %v2309
        %2388 = vst [vmem:[%s703 + $0x18] sm:$0xff] %v2324
        %2389 = vst [vmem:[%s703 + $0x20] sm:$0xff] %v2339
        %2390 = vst [vmem:[%s703 + $0x28] sm:$0xff] %v2354
        %2391 = vst [vmem:[%s703 + $0x30] sm:$0xff] %v2369
        %2392 = vst [vmem:[%s703 + $0x38] sm:$0xff] %v2384
        %2393 = vst [vmem:[%s710] sm:$0xff] %v1465
        %2394 = vst [vmem:[%s710 + $0x8] sm:$0xff] %v1488
        %2395 = vst [vmem:[%s710 + $0x10] sm:$0xff] %v1468
        %2396 = vst [vmem:[%s710 + $0x18] sm:$0xff] %v1491
        %s2397 = sand.u32 %s355, 1
        %s2398 = scalar_lea.sflag [#allocation4], %s2397
        %s2399 = sand.u32 %s355, 1
        %s2400 = smul.addr %s2399, 64
        %s2401 = scalar_lea.vmem [#allocation20], %s2400
        %s2402 = sand.u32 %s381, 1
        %s2403 = scalar_lea.sflag [#allocation22], %s2402
        %s2404 = sand.u32 %s381, 1
        %s2405 = smul.addr %s2404, 32
        %s2406 = scalar_lea.vmem [#allocation21], %s2405
        // Predicated region
        $region121: #{tpu_custom_call.1} parent=75 // pred_check
          %p2407 = pneg %p365
        $region122: #{tpu_custom_call.1} parent=75 // pred_check_branch
          %2409 = sbr.rel (%p2407) target = $region124
        $region123: #{tpu_custom_call.1} parent=75 // pred_region
          %s2410 = smul.u32 2, %s43
          %2412 = vsyncadd %s2398, 0
          %s2413 = smul.addr %s2410, 4
          %s2414 = smul.addr %s2413, 8
          %s2415 = scalar_lea.hbm %s14, %s2414
          %s2416 = sshll.u32 %s2401, 4
          %s2417 = int_to_ptr.vmem [resolvable:$true] %s2416
          %s2418 = sshll.u32 %s2415, 4
          %s2419 = int_to_ptr.hbm [resolvable:$true] %s2418
          %2424 = dma.vmem_to_hbm [thread:$0]  %s2417, 1024, %s2419, %s2398, 512, 512, 32
        $region124: #{tpu_custom_call.1} parent=75 // pred_fallthru
          _
        // Predicated region
        $region125: #{tpu_custom_call.1} parent=75 // pred_check
          %p2425 = pneg %p391
        $region126: #{tpu_custom_call.1} parent=75 // pred_check_branch
          %2427 = sbr.rel (%p2425) target = $region128
        $region127: #{tpu_custom_call.1} parent=75 // pred_region
          %s2428 = smul.u32 2, %s43
          %2430 = vsyncadd %s2403, 0
          %s2431 = smul.addr %s2428, 2
          %s2432 = smul.addr %s2431, 8
          %s2433 = scalar_lea.hbm %s15, %s2432
          %s2434 = sshll.u32 %s2406, 4
          %s2435 = int_to_ptr.vmem [resolvable:$true] %s2434
          %s2436 = sshll.u32 %s2433, 4
          %s2437 = int_to_ptr.hbm [resolvable:$true] %s2436
          %2442 = dma.vmem_to_hbm [thread:$0]  %s2435, 512, %s2437, %s2403, 256, 256, 16
        $region128: #{tpu_custom_call.1} parent=75 // pred_fallthru
          _
      $region76: #{tpu_custom_call.1} parent=5 // pred_fallthru
        _
      %p2443 = scmp.le.s32.totalorder 2, %s38
      // Predicated region
      $region129: #{tpu_custom_call.1} parent=5 // pred_check
        %p2444 = pneg %p2443
      $region130: #{tpu_custom_call.1} parent=5 // pred_check_branch
        %2446 = sbr.rel (%p2444) target = $region132
      $region131: #{tpu_custom_call.1} parent=5 // pred_region
        %s2447 = ssub.s32 %s38, 2
        // Predicated region
        $region133: #{tpu_custom_call.1} parent=131 // pred_check
          %p2448 = pneg %p371
        $region134: #{tpu_custom_call.1} parent=131 // pred_check_branch
          %2450 = sbr.rel (%p2448) target = $region136
        $region135: #{tpu_custom_call.1} parent=131 // pred_region
          %s2451 = sand.u32 %s356, 1
          %s2452 = scalar_lea.sflag [#allocation4], %s2451
          %s2453 = sand.u32 %s356, 1
          %s2454 = smul.addr %s2453, 64
          %s2455 = scalar_lea.vmem [#allocation20], %s2454
          %2457 = dma.done %s2452, 1024
        $region136: #{tpu_custom_call.1} parent=131 // pred_fallthru
          _
        // Predicated region
        $region137: #{tpu_custom_call.1} parent=131 // pred_check
          %p2458 = pneg %p397
        $region138: #{tpu_custom_call.1} parent=131 // pred_check_branch
          %2460 = sbr.rel (%p2458) target = $region140
        $region139: #{tpu_custom_call.1} parent=131 // pred_region
          %s2461 = sand.u32 %s382, 1
          %s2462 = scalar_lea.sflag [#allocation22], %s2461
          %s2463 = sand.u32 %s382, 1
          %s2464 = smul.addr %s2463, 32
          %s2465 = scalar_lea.vmem [#allocation21], %s2464
          %2467 = dma.done %s2462, 512
        $region140: #{tpu_custom_call.1} parent=131 // pred_fallthru
          _
      $region132: #{tpu_custom_call.1} parent=5 // pred_fallthru
        _
    $region6: #{tpu_custom_call.1} parent=1 // loop_footer
      %s42 = sadd.s32 1, %s38
    $region7: #{tpu_custom_call.1} parent=1 // loop_footer_branch
      %37 = sbr.rel target = $region3
    $region8: #{tpu_custom_call.1} parent=1 // loop_exit
      _
    %2468 = vsyncpa [#allocation3], 1
    %s2469 = scalar_lea.sflag [#allocation3], 1
    %2470 = vsyncpa %s2469, 1
    %2471 = vsyncpa [#allocation6], 1
    %s2472 = scalar_lea.sflag [#allocation6], 1
    %2473 = vsyncpa %s2472, 1
    %2474 = vsyncpa [#allocation9], 1
    %2475 = vsyncpa [#allocation12], 1
    %2476 = vsyncpa [#allocation15], 1
    %2477 = vsyncpa [#allocation18], 1
    %2478 = vsyncpa [#allocation4], 1
    %s2479 = scalar_lea.sflag [#allocation4], 1
    %2480 = vsyncpa %s2479, 1
    %2481 = vsyncpa [#allocation22], 1
    %s2482 = scalar_lea.sflag [#allocation22], 1
    %2483 = vsyncpa %s2482, 1

// kernel: tpu_custom_call.1
$region0: #{tpu_custom_call.1}
  #allocation0 [shape = 'u32[]', space=smem, size = 0x4, offset = 0x4, fixed_abs, tag = 'smem constant byte address 0x4 - core index']
  #allocation1 [shape = 'u32[72,128]{1,0:T(1,128)}', space=vmem, size = 0x9000, scoped, tag = 'internal scratch']
  %s0 = inlined_call_operand.hbm [shape: bf16[32,512], index: 0, kind: input, shape index: {}]
  %s1 = inlined_call_operand.hbm [shape: f32[32,128], index: 1, kind: input, shape index: {}]
  %s2 = inlined_call_operand.hbm [shape: bf16[512,256], index: 2, kind: input, shape index: {}]
  %s3 = inlined_call_operand.vmem [shape: f32[1,256], index: 3, kind: input, shape index: {}]
  %s4 = inlined_call_operand.hbm [shape: bf16[256,128], index: 4, kind: input, shape index: {}]
  %s5 = inlined_call_operand.hbm [shape: f32[1,128], index: 5, kind: input, shape index: {}]
  %s6 = inlined_call_operand.hbm [shape: f32[128,256], index: 6, kind: input, shape index: {}]
  %s7 = inlined_call_operand.hbm [shape: f32[1,256], index: 7, kind: input, shape index: {}]
  %s8 = inlined_call_operand.hbm [shape: bf16[128,128], index: 8, kind: input, shape index: {}]
  %s9 = inlined_call_operand.hbm [shape: f32[1,128], index: 9, kind: input, shape index: {}]
  %s10 = inlined_call_operand.hbm [shape: bf16[128,256], index: 10, kind: input, shape index: {}]
  %s11 = inlined_call_operand.vmem [shape: f32[1,256], index: 11, kind: input, shape index: {}]
  %s12 = inlined_call_operand.hbm [shape: bf16[256,512], index: 12, kind: input, shape index: {}]
  %s13 = inlined_call_operand.vmem [shape: f32[1,512], index: 13, kind: input, shape index: {}]
  %s14 = inlined_call_operand.hbm [shape: f32[32,512], index: 14, kind: output, shape index: {0}]
  %s15 = inlined_call_operand.hbm [shape: f32[32,256], index: 15, kind: output, shape index: {1}]
  %16 = xla_tuple %s14, %s15
  %s17 = sld [smem:[#allocation0]]
  $region141: #{tpu_custom_call.1} parent=0
    _
  %s19 = ssub.s32 1, %s17
  %s20 = scalar_select 0, %s19, %s17
  $region1: #{tpu_custom_call.1} parent=0
    #allocation2 [shape = 'u8[32768]{0}', space=vmem, size = 0x8000, scoped, tag = 'input window, operand 0']
    #allocation3 [shape = 's32[2]{0}', space=sflag, size = 0x8, scoped, tag = 'scoped memory for tpu_custom_call.1']
    #allocation4 [shape = 's32[2]{0}', space=sflag, size = 0x8, scoped, tag = 'scoped memory for tpu_custom_call.1']
    #allocation5 [shape = 'u8[16384]{0}', space=vmem, size = 0x4000, scoped, tag = 'input window, operand 1']
    #allocation6 [shape = 's32[2]{0}', space=sflag, size = 0x8, scoped, tag = 'scoped memory for tpu_custom_call.1']
    #allocation7 [shape = 'u8[262144]{0}', space=vmem, size = 0x40000, scoped, tag = 'input window, operand 2, single buffered']
    #allocation8 [shape = 'u8[65536]{0}', space=vmem, size = 0x10000, scoped, tag = 'input window, operand 4, single buffered']
    #allocation9 [shape = 's32[1]{0}', space=sflag, size = 0x4, scoped, tag = 'scoped memory for tpu_custom_call.1']
    #allocation10 [shape = 'u8[512]{0}', space=vmem, size = 0x400, scoped, tag = 'input window, operand 5, single buffered']
    #allocation11 [shape = 'u8[131072]{0}', space=vmem, size = 0x20000, scoped, tag = 'input window, operand 6, single buffered']
    #allocation12 [shape = 's32[1]{0}', space=sflag, size = 0x4, scoped, tag = 'scoped memory for tpu_custom_call.1']
    #allocation13 [shape = 'u8[1024]{0}', space=vmem, size = 0x400, scoped, tag = 'input window, operand 7, single buffered']
    #allocation14 [shape = 'u8[32768]{0}', space=vmem, size = 0x8000, scoped, tag = 'input window, operand 8, single buffered']
    #allocation15 [shape = 's32[1]{0}', space=sflag, size = 0x4, scoped, tag = 'scoped memory for tpu_custom_call.1']
    #allocation16 [shape = 'u8[512]{0}', space=vmem, size = 0x400, scoped, tag = 'input window, operand 9, single buffered']
    #allocation17 [shape = 'u8[65536]{0}', space=vmem, size = 0x10000, scoped, tag = 'input window, operand 10, single buffered']
    #allocation18 [shape = 's32[1]{0}', space=sflag, size = 0x4, scoped, tag = 'scoped memory for tpu_custom_call.1']
    #allocation19 [shape = 'u8[262144]{0}', space=vmem, size = 0x40000, scoped, tag = 'input window, operand 12, single buffered']
    #allocation20 [shape = 'u8[65536]{0}', space=vmem, size = 0x10000, scoped, tag = 'output window, operand 0']
    #allocation21 [shape = 'u8[32768]{0}', space=vmem, size = 0x8000, scoped, tag = 'output window, operand 1']
    #allocation22 [shape = 's32[2]{0}', space=sflag, size = 0x8, scoped, tag = 'scoped memory for tpu_custom_call.1']
    %21 = vsyncpa [#allocation3], 0
    %s22 = scalar_lea.sflag [#allocation3], 1
    %23 = vsyncpa %s22, 0
    %24 = vsyncpa [#allocation6], 0
    %s25 = scalar_lea.sflag [#allocation6], 1
    %26 = vsyncpa %s25, 0
    %27 = vsyncpa [#allocation9], 0
    %28 = vsyncpa [#allocation12], 0
    %29 = vsyncpa [#allocation15], 0
    %30 = vsyncpa [#allocation18], 0
    %31 = vsyncpa [#allocation4], 0
    %s32 = scalar_lea.sflag [#allocation4], 1
    %33 = vsyncpa %s32, 0
    %34 = vsyncpa [#allocation22], 0
    %s35 = scalar_lea.sflag [#allocation22], 1
    %36 = vsyncpa %s35, 0
    loop: start=0, step=1, limit=4
    $region2: #{tpu_custom_call.1} parent=1 // loop_pre_header
      _
    $region3: #{tpu_custom_call.1} parent=1 // loop_header
      %s38 = sphi 0, %s42
      %p39 = scmp.ge.s32.totalorder %s38, 4
      %s48 = sphi 0, %s50
      %s51 = sphi 0, %s48
      %s52 = sphi 0, %s51
      %s68 = sphi 0, %s52
      %s74 = sphi 0, %s76
      %s77 = sphi 0, %s74
      %s78 = sphi 0, %s77
      %s94 = sphi 0, %s78
      %s98 = sphi 0, %s98
      %s100 = sphi 0, %s98
      %s101 = sphi 0, %s100
      %s115 = sphi 0, %s101
      %s119 = sphi 0, %s119
      %s121 = sphi 0, %s119
      %s122 = sphi 0, %s121
      %s136 = sphi 0, %s122
      %s140 = sphi 0, %s140
      %s142 = sphi 0, %s140
      %s143 = sphi 0, %s142
      %s157 = sphi 0, %s143
      %s161 = sphi 0, %s161
      %s163 = sphi 0, %s161
      %s164 = sphi 0, %s163
      %s178 = sphi 0, %s164
      %s182 = sphi 0, %s182
      %s184 = sphi 0, %s182
      %s185 = sphi 0, %s184
      %s199 = sphi 0, %s185
      %s203 = sphi 0, %s203
      %s205 = sphi 0, %s203
      %s206 = sphi 0, %s205
      %s220 = sphi 0, %s206
      %s224 = sphi 0, %s224
      %s226 = sphi 0, %s224
      %s227 = sphi 0, %s226
      %s241 = sphi 0, %s227
      %s245 = sphi 0, %s245
      %s247 = sphi 0, %s245
      %s248 = sphi 0, %s247
      %s262 = sphi 0, %s248
      %s266 = sphi 0, %s266
      %s268 = sphi 0, %s266
      %s269 = sphi 0, %s268
      %s283 = sphi 0, %s269
      %s287 = sphi 0, %s287
      %s289 = sphi 0, %s287
      %s290 = sphi 0, %s289
      %s304 = sphi 0, %s290
      %s308 = sphi 0, %s308
      %s310 = sphi 0, %s308
      %s311 = sphi 0, %s310
      %s325 = sphi 0, %s311
      %s329 = sphi 0, %s329
      %s331 = sphi 0, %s329
      %s332 = sphi 0, %s331
      %s346 = sphi 0, %s332
      %s352 = sphi 0, %s354
      %s355 = sphi 0, %s352
      %s356 = sphi 0, %s355
      %s372 = sphi 0, %s356
      %s378 = sphi 0, %s380
      %s381 = sphi 0, %s378
      %s382 = sphi 0, %s381
      %s398 = sphi 0, %s382
    $region4: #{tpu_custom_call.1} parent=1 // loop_header_branch
      %41 = sbr.rel (%p39) target = $region8
    $region5: #{tpu_custom_call.1} parent=1 // loop_body
      %s43 = ssub.s32 %s38, 1
      %s44 = ssub.s32 %s38, 2
      %s45 = sadd.s32 %s38, 1
      %s46 = ssub.s32 %s38, %s45
      %p47 = scmp.eq.s32.totalorder %s46, 0
      %s49 = sadd.s32 %s48, 1
      %s50 = scalar_select %p47, %s48, %s49
      %p53 = pneg %p47
      %p54 = scmp.eq.s32.totalorder %s38, 1
      %p55 = por %p53, %p54
      %p56 = scmp.ne.s32.totalorder %s48, %s51
      %p57 = scmp.eq.s32.totalorder %s38, 0
      %p58 = por %p56, %p57
      %p59 = scmp.ne.s32.totalorder %s48, %s51
      %p60 = scmp.eq.s32.totalorder %s43, 1
      %p61 = por %p59, %p60
      %p62 = scmp.ne.s32.totalorder %s51, %s52
      %p63 = scmp.eq.s32.totalorder %s43, 0
      %p64 = por %p62, %p63
      %p65 = scmp.ne.s32.totalorder %s51, %s52
      %p66 = scmp.eq.s32.totalorder %s44, 1
      %p67 = por %p65, %p66
      %p69 = scmp.ne.s32.totalorder %s52, %s68
      %p70 = scmp.eq.s32.totalorder %s44, 0
      %p71 = por %p69, %p70
      %s72 = ssub.s32 %s38, %s45
      %p73 = scmp.eq.s32.totalorder %s72, 0
      %s75 = sadd.s32 %s74, 1
      %s76 = scalar_select %p73, %s74, %s75
      %p79 = pneg %p73
      %p80 = scmp.eq.s32.totalorder %s38, 1
      %p81 = por %p79, %p80
      %p82 = scmp.ne.s32.totalorder %s74, %s77
      %p83 = scmp.eq.s32.totalorder %s38, 0
      %p84 = por %p82, %p83
      %p85 = scmp.ne.s32.totalorder %s74, %s77
      %p86 = scmp.eq.s32.totalorder %s43, 1
      %p87 = por %p85, %p86
      %p88 = scmp.ne.s32.totalorder %s77, %s78
      %p89 = scmp.eq.s32.totalorder %s43, 0
      %p90 = por %p88, %p89
      %p91 = scmp.ne.s32.totalorder %s77, %s78
      %p92 = scmp.eq.s32.totalorder %s44, 1
      %p93 = por %p91, %p92
      %p95 = scmp.ne.s32.totalorder %s78, %s94
      %p96 = scmp.eq.s32.totalorder %s44, 0
      %p97 = por %p95, %p96
      %s99 = sadd.s32 %s98, 1
      %p102 = scmp.eq.s32.totalorder %s38, 1
      %p103 = scmp.ne.s32.totalorder %s98, %s100
      %p104 = scmp.eq.s32.totalorder %s38, 0
      %p105 = por %p103, %p104
      %p106 = scmp.ne.s32.totalorder %s98, %s100
      %p107 = scmp.eq.s32.totalorder %s43, 1
      %p108 = por %p106, %p107
      %p109 = scmp.ne.s32.totalorder %s100, %s101
      %p110 = scmp.eq.s32.totalorder %s43, 0
      %p111 = por %p109, %p110
      %p112 = scmp.ne.s32.totalorder %s100, %s101
      %p113 = scmp.eq.s32.totalorder %s44, 1
      %p114 = por %p112, %p113
      %p116 = scmp.ne.s32.totalorder %s101, %s115
      %p117 = scmp.eq.s32.totalorder %s44, 0
      %p118 = por %p116, %p117
      %s120 = sadd.s32 %s119, 1
      %p123 = scmp.eq.s32.totalorder %s38, 1
      %p124 = scmp.ne.s32.totalorder %s119, %s121
      %p125 = scmp.eq.s32.totalorder %s38, 0
      %p126 = por %p124, %p125
      %p127 = scmp.ne.s32.totalorder %s119, %s121
      %p128 = scmp.eq.s32.totalorder %s43, 1
      %p129 = por %p127, %p128
      %p130 = scmp.ne.s32.totalorder %s121, %s122
      %p131 = scmp.eq.s32.totalorder %s43, 0
      %p132 = por %p130, %p131
      %p133 = scmp.ne.s32.totalorder %s121, %s122
      %p134 = scmp.eq.s32.totalorder %s44, 1
      %p135 = por %p133, %p134
      %p137 = scmp.ne.s32.totalorder %s122, %s136
      %p138 = scmp.eq.s32.totalorder %s44, 0
      %p139 = por %p137, %p138
      %s141 = sadd.s32 %s140, 1
      %p144 = scmp.eq.s32.totalorder %s38, 1
      %p145 = scmp.ne.s32.totalorder %s140, %s142
      %p146 = scmp.eq.s32.totalorder %s38, 0
      %p147 = por %p145, %p146
      %p148 = scmp.ne.s32.totalorder %s140, %s142
      %p149 = scmp.eq.s32.totalorder %s43, 1
      %p150 = por %p148, %p149
      %p151 = scmp.ne.s32.totalorder %s142, %s143
      %p152 = scmp.eq.s32.totalorder %s43, 0
      %p153 = por %p151, %p152
      %p154 = scmp.ne.s32.totalorder %s142, %s143
      %p155 = scmp.eq.s32.totalorder %s44, 1
      %p156 = por %p154, %p155
      %p158 = scmp.ne.s32.totalorder %s143, %s157
      %p159 = scmp.eq.s32.totalorder %s44, 0
      %p160 = por %p158, %p159
      %s162 = sadd.s32 %s161, 1
      %p165 = scmp.eq.s32.totalorder %s38, 1
      %p166 = scmp.ne.s32.totalorder %s161, %s163
      %p167 = scmp.eq.s32.totalorder %s38, 0
      %p168 = por %p166, %p167
      %p169 = scmp.ne.s32.totalorder %s161, %s163
      %p170 = scmp.eq.s32.totalorder %s43, 1
      %p171 = por %p169, %p170
      %p172 = scmp.ne.s32.totalorder %s163, %s164
      %p173 = scmp.eq.s32.totalorder %s43, 0
      %p174 = por %p172, %p173
      %p175 = scmp.ne.s32.totalorder %s163, %s164
      %p176 = scmp.eq.s32.totalorder %s44, 1
      %p177 = por %p175, %p176
      %p179 = scmp.ne.s32.totalorder %s164, %s178
      %p180 = scmp.eq.s32.totalorder %s44, 0
      %p181 = por %p179, %p180
      %s183 = sadd.s32 %s182, 1
      %p186 = scmp.eq.s32.totalorder %s38, 1
      %p187 = scmp.ne.s32.totalorder %s182, %s184
      %p188 = scmp.eq.s32.totalorder %s38, 0
      %p189 = por %p187, %p188
      %p190 = scmp.ne.s32.totalorder %s182, %s184
      %p191 = scmp.eq.s32.totalorder %s43, 1
      %p192 = por %p190, %p191
      %p193 = scmp.ne.s32.totalorder %s184, %s185
      %p194 = scmp.eq.s32.totalorder %s43, 0
      %p195 = por %p193, %p194
      %p196 = scmp.ne.s32.totalorder %s184, %s185
      %p197 = scmp.eq.s32.totalorder %s44, 1
      %p198 = por %p196, %p197
      %p200 = scmp.ne.s32.totalorder %s185, %s199
      %p201 = scmp.eq.s32.totalorder %s44, 0
      %p202 = por %p200, %p201
      %s204 = sadd.s32 %s203, 1
      %p207 = scmp.eq.s32.totalorder %s38, 1
      %p208 = scmp.ne.s32.totalorder %s203, %s205
      %p209 = scmp.eq.s32.totalorder %s38, 0
      %p210 = por %p208, %p209
      %p211 = scmp.ne.s32.totalorder %s203, %s205
      %p212 = scmp.eq.s32.totalorder %s43, 1
      %p213 = por %p211, %p212
      %p214 = scmp.ne.s32.totalorder %s205, %s206
      %p215 = scmp.eq.s32.totalorder %s43, 0
      %p216 = por %p214, %p215
      %p217 = scmp.ne.s32.totalorder %s205, %s206
      %p218 = scmp.eq.s32.totalorder %s44, 1
      %p219 = por %p217, %p218
      %p221 = scmp.ne.s32.totalorder %s206, %s220
      %p222 = scmp.eq.s32.totalorder %s44, 0
      %p223 = por %p221, %p222
      %s225 = sadd.s32 %s224, 1
      %p228 = scmp.eq.s32.totalorder %s38, 1
      %p229 = scmp.ne.s32.totalorder %s224, %s226
      %p230 = scmp.eq.s32.totalorder %s38, 0
      %p231 = por %p229, %p230
      %p232 = scmp.ne.s32.totalorder %s224, %s226
      %p233 = scmp.eq.s32.totalorder %s43, 1
      %p234 = por %p232, %p233
      %p235 = scmp.ne.s32.totalorder %s226, %s227
      %p236 = scmp.eq.s32.totalorder %s43, 0
      %p237 = por %p235, %p236
      %p238 = scmp.ne.s32.totalorder %s226, %s227
      %p239 = scmp.eq.s32.totalorder %s44, 1
      %p240 = por %p238, %p239
      %p242 = scmp.ne.s32.totalorder %s227, %s241
      %p243 = scmp.eq.s32.totalorder %s44, 0
      %p244 = por %p242, %p243
      %s246 = sadd.s32 %s245, 1
      %p249 = scmp.eq.s32.totalorder %s38, 1
      %p250 = scmp.ne.s32.totalorder %s245, %s247
      %p251 = scmp.eq.s32.totalorder %s38, 0
      %p252 = por %p250, %p251
      %p253 = scmp.ne.s32.totalorder %s245, %s247
      %p254 = scmp.eq.s32.totalorder %s43, 1
      %p255 = por %p253, %p254
      %p256 = scmp.ne.s32.totalorder %s247, %s248
      %p257 = scmp.eq.s32.totalorder %s43, 0
      %p258 = por %p256, %p257
      %p259 = scmp.ne.s32.totalorder %s247, %s248
      %p260 = scmp.eq.s32.totalorder %s44, 1
      %p261 = por %p259, %p260
      %p263 = scmp.ne.s32.totalorder %s248, %s262
      %p264 = scmp.eq.s32.totalorder %s44, 0
      %p265 = por %p263, %p264
      %s267 = sadd.s32 %s266, 1
      %p270 = scmp.eq.s32.totalorder %s38, 1
      %p271 = scmp.ne.s32.totalorder %s266, %s268
      %p272 = scmp.eq.s32.totalorder %s38, 0
      %p273 = por %p271, %p272
      %p274 = scmp.ne.s32.totalorder %s266, %s268
      %p275 = scmp.eq.s32.totalorder %s43, 1
      %p276 = por %p274, %p275
      %p277 = scmp.ne.s32.totalorder %s268, %s269
      %p278 = scmp.eq.s32.totalorder %s43, 0
      %p279 = por %p277, %p278
      %p280 = scmp.ne.s32.totalorder %s268, %s269
      %p281 = scmp.eq.s32.totalorder %s44, 1
      %p282 = por %p280, %p281
      %p284 = scmp.ne.s32.totalorder %s269, %s283
      %p285 = scmp.eq.s32.totalorder %s44, 0
      %p286 = por %p284, %p285
      %s288 = sadd.s32 %s287, 1
      %p291 = scmp.eq.s32.totalorder %s38, 1
      %p292 = scmp.ne.s32.totalorder %s287, %s289
      %p293 = scmp.eq.s32.totalorder %s38, 0
      %p294 = por %p292, %p293
      %p295 = scmp.ne.s32.totalorder %s287, %s289
      %p296 = scmp.eq.s32.totalorder %s43, 1
      %p297 = por %p295, %p296
      %p298 = scmp.ne.s32.totalorder %s289, %s290
      %p299 = scmp.eq.s32.totalorder %s43, 0
      %p300 = por %p298, %p299
      %p301 = scmp.ne.s32.totalorder %s289, %s290
      %p302 = scmp.eq.s32.totalorder %s44, 1
      %p303 = por %p301, %p302
      %p305 = scmp.ne.s32.totalorder %s290, %s304
      %p306 = scmp.eq.s32.totalorder %s44, 0
      %p307 = por %p305, %p306
      %s309 = sadd.s32 %s308, 1
      %p312 = scmp.eq.s32.totalorder %s38, 1
      %p313 = scmp.ne.s32.totalorder %s308, %s310
      %p314 = scmp.eq.s32.totalorder %s38, 0
      %p315 = por %p313, %p314
      %p316 = scmp.ne.s32.totalorder %s308, %s310
      %p317 = scmp.eq.s32.totalorder %s43, 1
      %p318 = por %p316, %p317
      %p319 = scmp.ne.s32.totalorder %s310, %s311
      %p320 = scmp.eq.s32.totalorder %s43, 0
      %p321 = por %p319, %p320
      %p322 = scmp.ne.s32.totalorder %s310, %s311
      %p323 = scmp.eq.s32.totalorder %s44, 1
      %p324 = por %p322, %p323
      %p326 = scmp.ne.s32.totalorder %s311, %s325
      %p327 = scmp.eq.s32.totalorder %s44, 0
      %p328 = por %p326, %p327
      %s330 = sadd.s32 %s329, 1
      %p333 = scmp.eq.s32.totalorder %s38, 1
      %p334 = scmp.ne.s32.totalorder %s329, %s331
      %p335 = scmp.eq.s32.totalorder %s38, 0
      %p336 = por %p334, %p335
      %p337 = scmp.ne.s32.totalorder %s329, %s331
      %p338 = scmp.eq.s32.totalorder %s43, 1
      %p339 = por %p337, %p338
      %p340 = scmp.ne.s32.totalorder %s331, %s332
      %p341 = scmp.eq.s32.totalorder %s43, 0
      %p342 = por %p340, %p341
      %p343 = scmp.ne.s32.totalorder %s331, %s332
      %p344 = scmp.eq.s32.totalorder %s44, 1
      %p345 = por %p343, %p344
      %p347 = scmp.ne.s32.totalorder %s332, %s346
      %p348 = scmp.eq.s32.totalorder %s44, 0
      %p349 = por %p347, %p348
      %s350 = ssub.s32 %s38, %s45
      %p351 = scmp.eq.s32.totalorder %s350, 0
      %s353 = sadd.s32 %s352, 1
      %s354 = scalar_select %p351, %s352, %s353
      %p357 = pneg %p351
      %p358 = scmp.eq.s32.totalorder %s38, 1
      %p359 = por %p357, %p358
      %p360 = scmp.ne.s32.totalorder %s352, %s355
      %p361 = scmp.eq.s32.totalorder %s38, 0
      %p362 = por %p360, %p361
      %p363 = scmp.ne.s32.totalorder %s352, %s355
      %p364 = scmp.eq.s32.totalorder %s43, 1
      %p365 = por %p363, %p364
      %p366 = scmp.ne.s32.totalorder %s355, %s356
      %p367 = scmp.eq.s32.totalorder %s43, 0
      %p368 = por %p366, %p367
      %p369 = scmp.ne.s32.totalorder %s355, %s356
      %p370 = scmp.eq.s32.totalorder %s44, 1
      %p371 = por %p369, %p370
      %p373 = scmp.ne.s32.totalorder %s356, %s372
      %p374 = scmp.eq.s32.totalorder %s44, 0
      %p375 = por %p373, %p374
      %s376 = ssub.s32 %s38, %s45
      %p377 = scmp.eq.s32.totalorder %s376, 0
      %s379 = sadd.s32 %s378, 1
      %s380 = scalar_select %p377, %s378, %s379
      %p383 = pneg %p377
      %p384 = scmp.eq.s32.totalorder %s38, 1
      %p385 = por %p383, %p384
      %p386 = scmp.ne.s32.totalorder %s378, %s381
      %p387 = scmp.eq.s32.totalorder %s38, 0
      %p388 = por %p386, %p387
      %p389 = scmp.ne.s32.totalorder %s378, %s381
      %p390 = scmp.eq.s32.totalorder %s43, 1
      %p391 = por %p389, %p390
      %p392 = scmp.ne.s32.totalorder %s381, %s382
      %p393 = scmp.eq.s32.totalorder %s43, 0
      %p394 = por %p392, %p393
      %p395 = scmp.ne.s32.totalorder %s381, %s382
      %p396 = scmp.eq.s32.totalorder %s44, 1
      %p397 = por %p395, %p396
      %p399 = scmp.ne.s32.totalorder %s382, %s398
      %p400 = scmp.eq.s32.totalorder %s44, 0
      %p401 = por %p399, %p400
      %p402 = scmp.le.s32.totalorder 1, %s38
      %p403 = scmp.lt.s32.totalorder %s38, 3
      %p404 = pnand %p402, %p403
      %p405 = pneg %p404
      // Predicated region
      $region9: #{tpu_custom_call.1} parent=5 // pred_check
        _
      $region10: #{tpu_custom_call.1} parent=5 // pred_check_branch
        %407 = sbr.rel (%p404) target = $region12
      $region11: #{tpu_custom_call.1} parent=5 // pred_region
        %s408 = ssub.s32 %s38, 1
        // Predicated region
        $region13: #{tpu_custom_call.1} parent=11 // pred_check
          %p409 = pneg %p111
        $region14: #{tpu_custom_call.1} parent=11 // pred_check_branch
          %411 = sbr.rel (%p409) target = $region16
        $region15: #{tpu_custom_call.1} parent=11 // pred_region
          %413 = vsyncadd [#allocation6], 0
          %s414 = sshll.u32 %s2, 4
          %s415 = int_to_ptr.hbm [resolvable:$true] %s414
          %s416 = sshll.u32 [#allocation7], 4
          %s417 = int_to_ptr.vmem [resolvable:$true] %s416
          %422 = dma.hbm_to_vmem [thread:$0]  %s415, 8192, %s417, [#allocation6], 128, 128, 8
        $region16: #{tpu_custom_call.1} parent=11 // pred_fallthru
          _
        // Predicated region
        $region17: #{tpu_custom_call.1} parent=11 // pred_check
          %p423 = pneg %p132
        $region18: #{tpu_custom_call.1} parent=11 // pred_check_branch
          %425 = sbr.rel (%p423) target = $region20
        $region19: #{tpu_custom_call.1} parent=11 // pred_region
          _
        $region20: #{tpu_custom_call.1} parent=11 // pred_fallthru
          _
        // Predicated region
        $region21: #{tpu_custom_call.1} parent=11 // pred_check
          %p426 = pneg %p153
        $region22: #{tpu_custom_call.1} parent=11 // pred_check_branch
          %428 = sbr.rel (%p426) target = $region24
        $region23: #{tpu_custom_call.1} parent=11 // pred_region
          %430 = vsyncadd [#allocation9], 0
          %s431 = sshll.u32 %s4, 4
          %s432 = int_to_ptr.hbm [resolvable:$true] %s431
          %s433 = sshll.u32 [#allocation8], 4
          %s434 = int_to_ptr.vmem [resolvable:$true] %s433
          %439 = dma.hbm_to_vmem [thread:$0]  %s432, 2048, %s434, [#allocation9], 64, 64, 4
        $region24: #{tpu_custom_call.1} parent=11 // pred_fallthru
          _
        // Predicated region
        $region25: #{tpu_custom_call.1} parent=11 // pred_check
          %p440 = pneg %p174
        $region26: #{tpu_custom_call.1} parent=11 // pred_check_branch
          %442 = sbr.rel (%p440) target = $region28
        $region27: #{tpu_custom_call.1} parent=11 // pred_region
          %444 = vsyncadd [#allocation9], 0
          %s446 = sshll.u32 %s5, 4
          %s447 = int_to_ptr.hbm [resolvable:$true] %s446
          %s448 = sshll.u32 [#allocation10], 4
          %s449 = int_to_ptr.vmem [resolvable:$true] %s448
          %451 = dma.hbm_to_vmem [thread:$0]  %s447, 16, %s449, [#allocation9]
        $region28: #{tpu_custom_call.1} parent=11 // pred_fallthru
          _
        // Predicated region
        $region29: #{tpu_custom_call.1} parent=11 // pred_check
          %p452 = pneg %p195
        $region30: #{tpu_custom_call.1} parent=11 // pred_check_branch
          %454 = sbr.rel (%p452) target = $region32
        $region31: #{tpu_custom_call.1} parent=11 // pred_region
          %456 = vsyncadd [#allocation12], 0
          %s457 = sshll.u32 %s6, 4
          %s458 = int_to_ptr.hbm [resolvable:$true] %s457
          %s459 = sshll.u32 [#allocation11], 4
          %s460 = int_to_ptr.vmem [resolvable:$true] %s459
          %465 = dma.hbm_to_vmem [thread:$0]  %s458, 4096, %s460, [#allocation12], 256, 256, 16
        $region32: #{tpu_custom_call.1} parent=11 // pred_fallthru
          _
        // Predicated region
        $region33: #{tpu_custom_call.1} parent=11 // pred_check
          %p466 = pneg %p216
        $region34: #{tpu_custom_call.1} parent=11 // pred_check_branch
          %468 = sbr.rel (%p466) target = $region36
        $region35: #{tpu_custom_call.1} parent=11 // pred_region
          %470 = vsyncadd [#allocation12], 0
          %s472 = sshll.u32 %s7, 4
          %s473 = int_to_ptr.hbm [resolvable:$true] %s472
          %s474 = sshll.u32 [#allocation13], 4
          %s475 = int_to_ptr.vmem [resolvable:$true] %s474
          %477 = dma.hbm_to_vmem [thread:$0]  %s473, 32, %s475, [#allocation12]
        $region36: #{tpu_custom_call.1} parent=11 // pred_fallthru
          _
        // Predicated region
        $region37: #{tpu_custom_call.1} parent=11 // pred_check
          %p478 = pneg %p237
        $region38: #{tpu_custom_call.1} parent=11 // pred_check_branch
          %480 = sbr.rel (%p478) target = $region40
        $region39: #{tpu_custom_call.1} parent=11 // pred_region
          %482 = vsyncadd [#allocation15], 0
          %s483 = sshll.u32 %s8, 4
          %s484 = int_to_ptr.hbm [resolvable:$true] %s483
          %s485 = sshll.u32 [#allocation14], 4
          %s486 = int_to_ptr.vmem [resolvable:$true] %s485
          %491 = dma.hbm_to_vmem [thread:$0]  %s484, 1024, %s486, [#allocation15], 64, 64, 4
        $region40: #{tpu_custom_call.1} parent=11 // pred_fallthru
          _
        // Predicated region
        $region41: #{tpu_custom_call.1} parent=11 // pred_check
          %p492 = pneg %p258
        $region42: #{tpu_custom_call.1} parent=11 // pred_check_branch
          %494 = sbr.rel (%p492) target = $region44
        $region43: #{tpu_custom_call.1} parent=11 // pred_region
          %496 = vsyncadd [#allocation15], 0
          %s498 = sshll.u32 %s9, 4
          %s499 = int_to_ptr.hbm [resolvable:$true] %s498
          %s500 = sshll.u32 [#allocation16], 4
          %s501 = int_to_ptr.vmem [resolvable:$true] %s500
          %503 = dma.hbm_to_vmem [thread:$0]  %s499, 16, %s501, [#allocation15]
        $region44: #{tpu_custom_call.1} parent=11 // pred_fallthru
          _
        // Predicated region
        $region45: #{tpu_custom_call.1} parent=11 // pred_check
          %p504 = pneg %p279
        $region46: #{tpu_custom_call.1} parent=11 // pred_check_branch
          %506 = sbr.rel (%p504) target = $region48
        $region47: #{tpu_custom_call.1} parent=11 // pred_region
          %508 = vsyncadd [#allocation18], 0
          %s509 = sshll.u32 %s10, 4
          %s510 = int_to_ptr.hbm [resolvable:$true] %s509
          %s511 = sshll.u32 [#allocation17], 4
          %s512 = int_to_ptr.vmem [resolvable:$true] %s511
          %517 = dma.hbm_to_vmem [thread:$0]  %s510, 2048, %s512, [#allocation18], 128, 128, 8
        $region48: #{tpu_custom_call.1} parent=11 // pred_fallthru
          _
        // Predicated region
        $region49: #{tpu_custom_call.1} parent=11 // pred_check
          %p518 = pneg %p300
        $region50: #{tpu_custom_call.1} parent=11 // pred_check_branch
          %520 = sbr.rel (%p518) target = $region52
        $region51: #{tpu_custom_call.1} parent=11 // pred_region
          _
        $region52: #{tpu_custom_call.1} parent=11 // pred_fallthru
          _
        // Predicated region
        $region53: #{tpu_custom_call.1} parent=11 // pred_check
          %p521 = pneg %p321
        $region54: #{tpu_custom_call.1} parent=11 // pred_check_branch
          %523 = sbr.rel (%p521) target = $region56
        $region55: #{tpu_custom_call.1} parent=11 // pred_region
          %525 = vsyncadd [#allocation18], 0
          %s526 = sshll.u32 %s12, 4
          %s527 = int_to_ptr.hbm [resolvable:$true] %s526
          %s528 = sshll.u32 [#allocation19], 4
          %s529 = int_to_ptr.vmem [resolvable:$true] %s528
          %534 = dma.hbm_to_vmem [thread:$0]  %s527, 8192, %s529, [#allocation18], 256, 256, 16
        $region56: #{tpu_custom_call.1} parent=11 // pred_fallthru
          _
        // Predicated region
        $region57: #{tpu_custom_call.1} parent=11 // pred_check
          %p535 = pneg %p342
        $region58: #{tpu_custom_call.1} parent=11 // pred_check_branch
          %537 = sbr.rel (%p535) target = $region60
        $region59: #{tpu_custom_call.1} parent=11 // pred_region
          _
        $region60: #{tpu_custom_call.1} parent=11 // pred_fallthru
          _
      $region12: #{tpu_custom_call.1} parent=5 // pred_fallthru
        _
      %p538 = scmp.lt.s32.totalorder %s38, 2
      // Predicated region
      $region61: #{tpu_custom_call.1} parent=5 // pred_check
        %p539 = pneg %p538
      $region62: #{tpu_custom_call.1} parent=5 // pred_check_branch
        %541 = sbr.rel (%p539) target = $region64
      $region63: #{tpu_custom_call.1} parent=5 // pred_region
        // Predicated region
        $region65: #{tpu_custom_call.1} parent=63 // pred_check
          %p542 = pneg %p58
        $region66: #{tpu_custom_call.1} parent=63 // pred_check_branch
          %544 = sbr.rel (%p542) target = $region68
        $region67: #{tpu_custom_call.1} parent=63 // pred_region
          %s545 = sand.u32 %s48, 1
          %s546 = scalar_lea.sflag [#allocation3], %s545
          %s547 = sand.u32 %s48, 1
          %s548 = smul.addr %s547, 32
          %s549 = scalar_lea.vmem [#allocation2], %s548
          %s550 = smul.u32 2, %s38
          %552 = vsyncadd %s546, 0
          %s553 = smul.addr %s550, 4
          %s554 = smul.addr %s553, 4
          %s555 = scalar_lea.hbm %s0, %s554
          %s556 = sshll.u32 %s555, 4
          %s557 = int_to_ptr.hbm [resolvable:$true] %s556
          %s558 = sshll.u32 %s549, 4
          %s559 = int_to_ptr.vmem [resolvable:$true] %s558
          %564 = dma.hbm_to_vmem [thread:$0]  %s557, 512, %s559, %s546, 256, 256, 16
        $region68: #{tpu_custom_call.1} parent=63 // pred_fallthru
          _
        // Predicated region
        $region69: #{tpu_custom_call.1} parent=63 // pred_check
          %p565 = pneg %p84
        $region70: #{tpu_custom_call.1} parent=63 // pred_check_branch
          %567 = sbr.rel (%p565) target = $region72
        $region71: #{tpu_custom_call.1} parent=63 // pred_region
          %s568 = sand.u32 %s38, 1
          %s569 = scalar_lea.sflag [#allocation6], %s568
          %s570 = sand.u32 %s74, 1
          %s571 = smul.addr %s570, 16
          %s572 = scalar_lea.vmem [#allocation5], %s571
          %s573 = smul.u32 2, %s38
          %575 = vsyncadd %s569, 0
          %s576 = smul.addr %s573, 8
          %s577 = scalar_lea.hbm %s1, %s576
          %s578 = sshll.u32 %s577, 4
          %s579 = int_to_ptr.hbm [resolvable:$true] %s578
          %s580 = sshll.u32 %s572, 4
          %s581 = int_to_ptr.vmem [resolvable:$true] %s580
          %586 = dma.hbm_to_vmem [thread:$0]  %s579, 256, %s581, %s569, 128, 128, 8
        $region72: #{tpu_custom_call.1} parent=63 // pred_fallthru
          _
      $region64: #{tpu_custom_call.1} parent=5 // pred_fallthru
        _
      %p587 = scmp.le.s32.totalorder 1, %s38
      %p588 = scmp.lt.s32.totalorder %s38, 3
      %p589 = pnand %p587, %p588
      %p590 = pneg %p589
      // Predicated region
      $region73: #{tpu_custom_call.1} parent=5 // pred_check
        _
      $region74: #{tpu_custom_call.1} parent=5 // pred_check_branch
        %592 = sbr.rel (%p589) target = $region76
      $region75: #{tpu_custom_call.1} parent=5 // pred_region
        %s593 = ssub.s32 %s38, 1
        %s594 = sand.u32 %s51, 1
        %s595 = scalar_lea.sflag [#allocation3], %s594
        %s596 = sand.u32 %s51, 1
        %s597 = smul.addr %s596, 32
        %s598 = scalar_lea.vmem [#allocation2], %s597
        // Predicated region
        $region77: #{tpu_custom_call.1} parent=75 // pred_check
          %p599 = pneg %p64
        $region78: #{tpu_custom_call.1} parent=75 // pred_check_branch
          %601 = sbr.rel (%p599) target = $region80
        $region79: #{tpu_custom_call.1} parent=75 // pred_region
          %603 = dma.done %s595, 512
        $region80: #{tpu_custom_call.1} parent=75 // pred_fallthru
          _
        %s604 = sand.u32 %s43, 1
        %s605 = scalar_lea.sflag [#allocation6], %s604
        %s606 = sand.u32 %s77, 1
        %s607 = smul.addr %s606, 16
        %s608 = scalar_lea.vmem [#allocation5], %s607
        // Predicated region
        $region81: #{tpu_custom_call.1} parent=75 // pred_check
          %p609 = pneg %p90
        $region82: #{tpu_custom_call.1} parent=75 // pred_check_branch
          %611 = sbr.rel (%p609) target = $region84
        $region83: #{tpu_custom_call.1} parent=75 // pred_region
          %613 = dma.done %s605, 256
        $region84: #{tpu_custom_call.1} parent=75 // pred_fallthru
          _
        // Predicated region
        $region85: #{tpu_custom_call.1} parent=75 // pred_check
          %p614 = pneg %p111
        $region86: #{tpu_custom_call.1} parent=75 // pred_check_branch
          %616 = sbr.rel (%p614) target = $region88
        $region87: #{tpu_custom_call.1} parent=75 // pred_region
          %618 = dma.done [#allocation6], 8192
        $region88: #{tpu_custom_call.1} parent=75 // pred_fallthru
          _
        // Predicated region
        $region89: #{tpu_custom_call.1} parent=75 // pred_check
          %p619 = pneg %p153
        $region90: #{tpu_custom_call.1} parent=75 // pred_check_branch
          %621 = sbr.rel (%p619) target = $region92
        $region91: #{tpu_custom_call.1} parent=75 // pred_region
          %623 = dma.done [#allocation9], 2048
        $region92: #{tpu_custom_call.1} parent=75 // pred_fallthru
          _
        // Predicated region
        $region93: #{tpu_custom_call.1} parent=75 // pred_check
          %p624 = pneg %p174
        $region94: #{tpu_custom_call.1} parent=75 // pred_check_branch
          %626 = sbr.rel (%p624) target = $region96
        $region95: #{tpu_custom_call.1} parent=75 // pred_region
          %628 = dma.done [#allocation9], 16
        $region96: #{tpu_custom_call.1} parent=75 // pred_fallthru
          _
        // Predicated region
        $region97: #{tpu_custom_call.1} parent=75 // pred_check
          %p629 = pneg %p195
        $region98: #{tpu_custom_call.1} parent=75 // pred_check_branch
          %631 = sbr.rel (%p629) target = $region100
        $region99: #{tpu_custom_call.1} parent=75 // pred_region
          %633 = dma.done [#allocation12], 4096
        $region100: #{tpu_custom_call.1} parent=75 // pred_fallthru
          _
        // Predicated region
        $region101: #{tpu_custom_call.1} parent=75 // pred_check
          %p634 = pneg %p216
        $region102: #{tpu_custom_call.1} parent=75 // pred_check_branch
          %636 = sbr.rel (%p634) target = $region104
        $region103: #{tpu_custom_call.1} parent=75 // pred_region
          %638 = dma.done [#allocation12], 32
        $region104: #{tpu_custom_call.1} parent=75 // pred_fallthru
          _
        // Predicated region
        $region105: #{tpu_custom_call.1} parent=75 // pred_check
          %p639 = pneg %p237
        $region106: #{tpu_custom_call.1} parent=75 // pred_check_branch
          %641 = sbr.rel (%p639) target = $region108
        $region107: #{tpu_custom_call.1} parent=75 // pred_region
          %643 = dma.done [#allocation15], 1024
        $region108: #{tpu_custom_call.1} parent=75 // pred_fallthru
          _
        // Predicated region
        $region109: #{tpu_custom_call.1} parent=75 // pred_check
          %p644 = pneg %p258
        $region110: #{tpu_custom_call.1} parent=75 // pred_check_branch
          %646 = sbr.rel (%p644) target = $region112
        $region111: #{tpu_custom_call.1} parent=75 // pred_region
          %648 = dma.done [#allocation15], 16
        $region112: #{tpu_custom_call.1} parent=75 // pred_fallthru
          _
        // Predicated region
        $region113: #{tpu_custom_call.1} parent=75 // pred_check
          %p649 = pneg %p279
        $region114: #{tpu_custom_call.1} parent=75 // pred_check_branch
          %651 = sbr.rel (%p649) target = $region116
        $region115: #{tpu_custom_call.1} parent=75 // pred_region
          %653 = dma.done [#allocation18], 2048
        $region116: #{tpu_custom_call.1} parent=75 // pred_fallthru
          _
        // Predicated region
        $region117: #{tpu_custom_call.1} parent=75 // pred_check
          %p654 = pneg %p321
        $region118: #{tpu_custom_call.1} parent=75 // pred_check_branch
          %656 = sbr.rel (%p654) target = $region120
        $region119: #{tpu_custom_call.1} parent=75 // pred_region
          %658 = dma.done [#allocation18], 8192
        $region120: #{tpu_custom_call.1} parent=75 // pred_fallthru
          _
        %s659 = sand.u32 %s51, 1
        %s660 = scalar_lea.sflag [#allocation3], %s659
        %s661 = sand.u32 %s51, 1
        %s662 = smul.addr %s661, 32
        %s663 = scalar_lea.vmem [#allocation2], %s662
        %p664 = pneg %p64
        %p665 = pneg %p61
        %s666 = sand.u32 %s43, 1
        %s667 = scalar_lea.sflag [#allocation6], %s666
        %s668 = sand.u32 %s77, 1
        %s669 = smul.addr %s668, 16
        %s670 = scalar_lea.vmem [#allocation5], %s669
        %p671 = pneg %p90
        %p672 = pneg %p87
        %p673 = pneg %p111
        %p674 = pneg %p108
        %p675 = pneg %p132
        %p676 = pneg %p129
        %p677 = pneg %p153
        %p678 = pneg %p150
        %p679 = pneg %p174
        %p680 = pneg %p171
        %p681 = pneg %p195
        %p682 = pneg %p192
        %p683 = pneg %p216
        %p684 = pneg %p213
        %p685 = pneg %p237
        %p686 = pneg %p234
        %p687 = pneg %p258
        %p688 = pneg %p255
        %p689 = pneg %p279
        %p690 = pneg %p276
        %p691 = pneg %p300
        %p692 = pneg %p297
        %p693 = pneg %p321
        %p694 = pneg %p318
        %p695 = pneg %p342
        %p696 = pneg %p339
        %p697 = pneg %p368
        %p698 = pneg %p365
        %s699 = sand.u32 %s355, 1
        %s700 = scalar_lea.sflag [#allocation4], %s699
        %s701 = sand.u32 %s355, 1
        %s702 = smul.addr %s701, 64
        %s703 = scalar_lea.vmem [#allocation20], %s702
        %p704 = pneg %p394
        %p705 = pneg %p391
        %s706 = sand.u32 %s381, 1
        %s707 = scalar_lea.sflag [#allocation22], %s706
        %s708 = sand.u32 %s381, 1
        %s709 = smul.addr %s708, 32
        %s710 = scalar_lea.vmem [#allocation21], %s709
        %s711 = smul.u32 2, %s43
        %s712 = smul.u32 2, %s43
        %s713 = smul.u32 2, %s43
        %s714 = smul.u32 2, %s43
        %v715 = vld [vmem:[%s598] sm:$0xff]
        %v716 = vld [vmem:[%s598 + $0x8] sm:$0xff]
        %v717 = vld [vmem:[%s598 + $0x10] sm:$0xff]
        %v718 = vld [vmem:[%s598 + $0x18] sm:$0xff]
        %v719 = vld [vmem:[#allocation7] sm:$0xff]
        %v720 = vld [vmem:[#allocation7 + $0x8] sm:$0xff]
        %v721 = vld [vmem:[#allocation7 + $0x10] sm:$0xff]
        %v722 = vld [vmem:[#allocation7 + $0x18] sm:$0xff]
        %v723 = vld [vmem:[#allocation7 + $0x20] sm:$0xff]
        %v724 = vld [vmem:[#allocation7 + $0x28] sm:$0xff]
        %v725 = vld [vmem:[#allocation7 + $0x30] sm:$0xff]
        %v726 = vld [vmem:[#allocation7 + $0x38] sm:$0xff]
        %v727 = vld [vmem:[#allocation7 + $0x40] sm:$0xff]
        %v728 = vld [vmem:[#allocation7 + $0x48] sm:$0xff]
        %v729 = vld [vmem:[#allocation7 + $0x50] sm:$0xff]
        %v730 = vld [vmem:[#allocation7 + $0x58] sm:$0xff]
        %v731 = vld [vmem:[#allocation7 + $0x60] sm:$0xff]
        %v732 = vld [vmem:[#allocation7 + $0x68] sm:$0xff]
        %v733 = vld [vmem:[#allocation7 + $0x70] sm:$0xff]
        %v734 = vld [vmem:[#allocation7 + $0x78] sm:$0xff]
        %v735 = vld [vmem:[#allocation7 + $0x80] sm:$0xff]
        %v736 = vld [vmem:[#allocation7 + $0x88] sm:$0xff]
        %v737 = vld [vmem:[#allocation7 + $0x90] sm:$0xff]
        %v738 = vld [vmem:[#allocation7 + $0x98] sm:$0xff]
        %v739 = vld [vmem:[#allocation7 + $0xa0] sm:$0xff]
        %v740 = vld [vmem:[#allocation7 + $0xa8] sm:$0xff]
        %v741 = vld [vmem:[#allocation7 + $0xb0] sm:$0xff]
        %v742 = vld [vmem:[#allocation7 + $0xb8] sm:$0xff]
        %v743 = vld [vmem:[#allocation7 + $0xc0] sm:$0xff]
        %v744 = vld [vmem:[#allocation7 + $0xc8] sm:$0xff]
        %v745 = vld [vmem:[#allocation7 + $0xd0] sm:$0xff]
        %v746 = vld [vmem:[#allocation7 + $0xd8] sm:$0xff]
        %v747 = vld [vmem:[#allocation7 + $0xe0] sm:$0xff]
        %v748 = vld [vmem:[#allocation7 + $0xe8] sm:$0xff]
        %v749 = vld [vmem:[#allocation7 + $0xf0] sm:$0xff]
        %v750 = vld [vmem:[#allocation7 + $0xf8] sm:$0xff]
        %v751 = vld [vmem:[#allocation7 + $0x100] sm:$0xff]
        %v752 = vld [vmem:[#allocation7 + $0x108] sm:$0xff]
        %v753 = vld [vmem:[#allocation7 + $0x110] sm:$0xff]
        %v754 = vld [vmem:[#allocation7 + $0x118] sm:$0xff]
        %v755 = vld [vmem:[#allocation7 + $0x120] sm:$0xff]
        %v756 = vld [vmem:[#allocation7 + $0x128] sm:$0xff]
        %v757 = vld [vmem:[#allocation7 + $0x130] sm:$0xff]
        %v758 = vld [vmem:[#allocation7 + $0x138] sm:$0xff]
        %v759 = vld [vmem:[#allocation7 + $0x140] sm:$0xff]
        %v760 = vld [vmem:[#allocation7 + $0x148] sm:$0xff]
        %v761 = vld [vmem:[#allocation7 + $0x150] sm:$0xff]
        %v762 = vld [vmem:[#allocation7 + $0x158] sm:$0xff]
        %v763 = vld [vmem:[#allocation7 + $0x160] sm:$0xff]
        %v764 = vld [vmem:[#allocation7 + $0x168] sm:$0xff]
        %v765 = vld [vmem:[#allocation7 + $0x170] sm:$0xff]
        %v766 = vld [vmem:[#allocation7 + $0x178] sm:$0xff]
        %v767 = vld [vmem:[#allocation7 + $0x180] sm:$0xff]
        %v768 = vld [vmem:[#allocation7 + $0x188] sm:$0xff]
        %v769 = vld [vmem:[#allocation7 + $0x190] sm:$0xff]
        %v770 = vld [vmem:[#allocation7 + $0x198] sm:$0xff]
        %v771 = vld [vmem:[#allocation7 + $0x1a0] sm:$0xff]
        %v772 = vld [vmem:[#allocation7 + $0x1a8] sm:$0xff]
        %v773 = vld [vmem:[#allocation7 + $0x1b0] sm:$0xff]
        %v774 = vld [vmem:[#allocation7 + $0x1b8] sm:$0xff]
        %v775 = vld [vmem:[#allocation7 + $0x1c0] sm:$0xff]
        %v776 = vld [vmem:[#allocation7 + $0x1c8] sm:$0xff]
        %v777 = vld [vmem:[#allocation7 + $0x1d0] sm:$0xff]
        %v778 = vld [vmem:[#allocation7 + $0x1d8] sm:$0xff]
        %v779 = vld [vmem:[#allocation7 + $0x1e0] sm:$0xff]
        %v780 = vld [vmem:[#allocation7 + $0x1e8] sm:$0xff]
        %v781 = vld [vmem:[#allocation7 + $0x1f0] sm:$0xff]
        %v782 = vld [vmem:[#allocation7 + $0x1f8] sm:$0xff]
        %v783 = vld [vmem:[%s3] sm:$0x3]
        %v785 = vperm.slane %v783, 0
        %v786 = vperm.slane %v783, 1
        %v793 = vunpack.c.l.b16 %v715
        %v794 = vunpack.c.h.b16 %v715
        %v795 = vunpack.c.l.b16 %v716
        %v796 = vunpack.c.h.b16 %v716
        %v797 = vunpack.c.l.b16 %v717
        %v798 = vunpack.c.h.b16 %v717
        %v799 = vunpack.c.l.b16 %v718
        %v800 = vunpack.c.h.b16 %v718
        %v801 = vpack.c.b16 %v797, %v793
        %v802 = vpack.c.b16 %v798, %v794
        %v803 = vpack.c.b16 %v799, %v795
        %v804 = vpack.c.b16 %v800, %v796
        %v873 = vunpack.c.l.b16 %v719
        %v874 = vunpack.c.h.b16 %v719
        %v875 = vunpack.c.l.b16 %v720
        %v876 = vunpack.c.h.b16 %v720
        %v877 = vunpack.c.l.b16 %v721
        %v878 = vunpack.c.h.b16 %v721
        %v879 = vunpack.c.l.b16 %v722
        %v880 = vunpack.c.h.b16 %v722
        %v881 = vunpack.c.l.b16 %v723
        %v882 = vunpack.c.h.b16 %v723
        %v883 = vunpack.c.l.b16 %v724
        %v884 = vunpack.c.h.b16 %v724
        %v885 = vunpack.c.l.b16 %v725
        %v886 = vunpack.c.h.b16 %v725
        %v887 = vunpack.c.l.b16 %v726
        %v888 = vunpack.c.h.b16 %v726
        %v889 = vunpack.c.l.b16 %v727
        %v890 = vunpack.c.h.b16 %v727
        %v891 = vunpack.c.l.b16 %v728
        %v892 = vunpack.c.h.b16 %v728
        %v893 = vunpack.c.l.b16 %v729
        %v894 = vunpack.c.h.b16 %v729
        %v895 = vunpack.c.l.b16 %v730
        %v896 = vunpack.c.h.b16 %v730
        %v897 = vunpack.c.l.b16 %v731
        %v898 = vunpack.c.h.b16 %v731
        %v899 = vunpack.c.l.b16 %v732
        %v900 = vunpack.c.h.b16 %v732
        %v901 = vunpack.c.l.b16 %v733
        %v902 = vunpack.c.h.b16 %v733
        %v903 = vunpack.c.l.b16 %v734
        %v904 = vunpack.c.h.b16 %v734
        %v905 = vunpack.c.l.b16 %v735
        %v906 = vunpack.c.h.b16 %v735
        %v907 = vunpack.c.l.b16 %v736
        %v908 = vunpack.c.h.b16 %v736
        %v909 = vunpack.c.l.b16 %v737
        %v910 = vunpack.c.h.b16 %v737
        %v911 = vunpack.c.l.b16 %v738
        %v912 = vunpack.c.h.b16 %v738
        %v913 = vunpack.c.l.b16 %v739
        %v914 = vunpack.c.h.b16 %v739
        %v915 = vunpack.c.l.b16 %v740
        %v916 = vunpack.c.h.b16 %v740
        %v917 = vunpack.c.l.b16 %v741
        %v918 = vunpack.c.h.b16 %v741
        %v919 = vunpack.c.l.b16 %v742
        %v920 = vunpack.c.h.b16 %v742
        %v921 = vunpack.c.l.b16 %v743
        %v922 = vunpack.c.h.b16 %v743
        %v923 = vunpack.c.l.b16 %v744
        %v924 = vunpack.c.h.b16 %v744
        %v925 = vunpack.c.l.b16 %v745
        %v926 = vunpack.c.h.b16 %v745
        %v927 = vunpack.c.l.b16 %v746
        %v928 = vunpack.c.h.b16 %v746
        %v929 = vunpack.c.l.b16 %v747
        %v930 = vunpack.c.h.b16 %v747
        %v931 = vunpack.c.l.b16 %v748
        %v932 = vunpack.c.h.b16 %v748
        %v933 = vunpack.c.l.b16 %v749
        %v934 = vunpack.c.h.b16 %v749
        %v935 = vunpack.c.l.b16 %v750
        %v936 = vunpack.c.h.b16 %v750
        %v937 = vunpack.c.l.b16 %v751
        %v938 = vunpack.c.h.b16 %v751
        %v939 = vunpack.c.l.b16 %v752
        %v940 = vunpack.c.h.b16 %v752
        %v941 = vunpack.c.l.b16 %v753
        %v942 = vunpack.c.h.b16 %v753
        %v943 = vunpack.c.l.b16 %v754
        %v944 = vunpack.c.h.b16 %v754
        %v945 = vunpack.c.l.b16 %v755
        %v946 = vunpack.c.h.b16 %v755
        %v947 = vunpack.c.l.b16 %v756
        %v948 = vunpack.c.h.b16 %v756
        %v949 = vunpack.c.l.b16 %v757
        %v950 = vunpack.c.h.b16 %v757
        %v951 = vunpack.c.l.b16 %v758
        %v952 = vunpack.c.h.b16 %v758
        %v953 = vunpack.c.l.b16 %v759
        %v954 = vunpack.c.h.b16 %v759
        %v955 = vunpack.c.l.b16 %v760
        %v956 = vunpack.c.h.b16 %v760
        %v957 = vunpack.c.l.b16 %v761
        %v958 = vunpack.c.h.b16 %v761
        %v959 = vunpack.c.l.b16 %v762
        %v960 = vunpack.c.h.b16 %v762
        %v961 = vunpack.c.l.b16 %v763
        %v962 = vunpack.c.h.b16 %v763
        %v963 = vunpack.c.l.b16 %v764
        %v964 = vunpack.c.h.b16 %v764
        %v965 = vunpack.c.l.b16 %v765
        %v966 = vunpack.c.h.b16 %v765
        %v967 = vunpack.c.l.b16 %v766
        %v968 = vunpack.c.h.b16 %v766
        %v969 = vunpack.c.l.b16 %v767
        %v970 = vunpack.c.h.b16 %v767
        %v971 = vunpack.c.l.b16 %v768
        %v972 = vunpack.c.h.b16 %v768
        %v973 = vunpack.c.l.b16 %v769
        %v974 = vunpack.c.h.b16 %v769
        %v975 = vunpack.c.l.b16 %v770
        %v976 = vunpack.c.h.b16 %v770
        %v977 = vunpack.c.l.b16 %v771
        %v978 = vunpack.c.h.b16 %v771
        %v979 = vunpack.c.l.b16 %v772
        %v980 = vunpack.c.h.b16 %v772
        %v981 = vunpack.c.l.b16 %v773
        %v982 = vunpack.c.h.b16 %v773
        %v983 = vunpack.c.l.b16 %v774
        %v984 = vunpack.c.h.b16 %v774
        %v985 = vunpack.c.l.b16 %v775
        %v986 = vunpack.c.h.b16 %v775
        %v987 = vunpack.c.l.b16 %v776
        %v988 = vunpack.c.h.b16 %v776
        %v989 = vunpack.c.l.b16 %v777
        %v990 = vunpack.c.h.b16 %v777
        %v991 = vunpack.c.l.b16 %v778
        %v992 = vunpack.c.h.b16 %v778
        %v993 = vunpack.c.l.b16 %v779
        %v994 = vunpack.c.h.b16 %v779
        %v995 = vunpack.c.l.b16 %v780
        %v996 = vunpack.c.h.b16 %v780
        %v997 = vunpack.c.l.b16 %v781
        %v998 = vunpack.c.h.b16 %v781
        %v999 = vunpack.c.l.b16 %v782
        %v1000 = vunpack.c.h.b16 %v782
        %v1001 = vpack.c.b16 %v875, %v873
        %v1002 = vpack.c.b16 %v876, %v874
        %v1003 = vpack.c.b16 %v879, %v877
        %v1004 = vpack.c.b16 %v880, %v878
        %v1005 = vpack.c.b16 %v883, %v881
        %v1006 = vpack.c.b16 %v884, %v882
        %v1007 = vpack.c.b16 %v887, %v885
        %v1008 = vpack.c.b16 %v888, %v886
        %v1009 = vpack.c.b16 %v891, %v889
        %v1010 = vpack.c.b16 %v892, %v890
        %v1011 = vpack.c.b16 %v895, %v893
        %v1012 = vpack.c.b16 %v896, %v894
        %v1013 = vpack.c.b16 %v899, %v897
        %v1014 = vpack.c.b16 %v900, %v898
        %v1015 = vpack.c.b16 %v903, %v901
        %v1016 = vpack.c.b16 %v904, %v902
        %v1017 = vpack.c.b16 %v907, %v905
        %v1018 = vpack.c.b16 %v908, %v906
        %v1019 = vpack.c.b16 %v911, %v909
        %v1020 = vpack.c.b16 %v912, %v910
        %v1021 = vpack.c.b16 %v915, %v913
        %v1022 = vpack.c.b16 %v916, %v914
        %v1023 = vpack.c.b16 %v919, %v917
        %v1024 = vpack.c.b16 %v920, %v918
        %v1025 = vpack.c.b16 %v923, %v921
        %v1026 = vpack.c.b16 %v924, %v922
        %v1027 = vpack.c.b16 %v927, %v925
        %v1028 = vpack.c.b16 %v928, %v926
        %v1029 = vpack.c.b16 %v931, %v929
        %v1030 = vpack.c.b16 %v932, %v930
        %v1031 = vpack.c.b16 %v935, %v933
        %v1032 = vpack.c.b16 %v936, %v934
        %v1033 = vpack.c.b16 %v939, %v937
        %v1034 = vpack.c.b16 %v940, %v938
        %v1035 = vpack.c.b16 %v943, %v941
        %v1036 = vpack.c.b16 %v944, %v942
        %v1037 = vpack.c.b16 %v947, %v945
        %v1038 = vpack.c.b16 %v948, %v946
        %v1039 = vpack.c.b16 %v951, %v949
        %v1040 = vpack.c.b16 %v952, %v950
        %v1041 = vpack.c.b16 %v955, %v953
        %v1042 = vpack.c.b16 %v956, %v954
        %v1043 = vpack.c.b16 %v959, %v957
        %v1044 = vpack.c.b16 %v960, %v958
        %v1045 = vpack.c.b16 %v963, %v961
        %v1046 = vpack.c.b16 %v964, %v962
        %v1047 = vpack.c.b16 %v967, %v965
        %v1048 = vpack.c.b16 %v968, %v966
        %v1049 = vpack.c.b16 %v971, %v969
        %v1050 = vpack.c.b16 %v972, %v970
        %v1051 = vpack.c.b16 %v975, %v973
        %v1052 = vpack.c.b16 %v976, %v974
        %v1053 = vpack.c.b16 %v979, %v977
        %v1054 = vpack.c.b16 %v980, %v978
        %v1055 = vpack.c.b16 %v983, %v981
        %v1056 = vpack.c.b16 %v984, %v982
        %v1057 = vpack.c.b16 %v987, %v985
        %v1058 = vpack.c.b16 %v988, %v986
        %v1059 = vpack.c.b16 %v991, %v989
        %v1060 = vpack.c.b16 %v992, %v990
        %v1061 = vpack.c.b16 %v995, %v993
        %v1062 = vpack.c.b16 %v996, %v994
        %v1063 = vpack.c.b16 %v999, %v997
        %v1064 = vpack.c.b16 %v1000, %v998
        %1129 = vmatpush.bf16.msra.mxu0 %v1015
        %1130 = vmatpush.bf16.msra.mxu0 %v1013
        %1131 = vmatpush.bf16.msra.mxu0 %v1011
        %1132 = vmatpush.bf16.msra.mxu0 %v1009
        %1133 = vmatpush.bf16.msra.mxu0 %v1007
        %1134 = vmatpush.bf16.msra.mxu0 %v1005
        %1135 = vmatpush.bf16.msra.mxu0 %v1003
        %1136 = vmatpush.bf16.msra.mxu0 %v1001
        %1137 = vmatmul.bf16.gmra.mxu0 %v801
        %v1138 = vpop.f32.mrf.mxu0
        %v1139 = vadd.f32 %v785, %v1138
        %v1140 = vpop.f32.mrf.mxu0
        %v1141 = vadd.f32 %v785, %v1140
        %1142 = vdwg.mxu0
        %1143 = vmatpush.bf16.msra.mxu0 %v1031
        %1144 = vmatpush.bf16.msra.mxu0 %v1029
        %1145 = vmatpush.bf16.msra.mxu0 %v1027
        %1146 = vmatpush.bf16.msra.mxu0 %v1025
        %1147 = vmatpush.bf16.msra.mxu0 %v1023
        %1148 = vmatpush.bf16.msra.mxu0 %v1021
        %1149 = vmatpush.bf16.msra.mxu0 %v1019
        %1150 = vmatpush.bf16.msra.mxu0 %v1017
        %1151 = vmatmul.bf16.gmra.mxu0 %v802
        %v1152 = vpop.f32.mrf.mxu0
        %v1153 = vadd.f32 %v1139, %v1152
        %v1154 = vpop.f32.mrf.mxu0
        %v1155 = vadd.f32 %v1141, %v1154
        %1156 = vdwg.mxu0
        %1157 = vmatpush.bf16.msra.mxu0 %v1047
        %1158 = vmatpush.bf16.msra.mxu0 %v1045
        %1159 = vmatpush.bf16.msra.mxu0 %v1043
        %1160 = vmatpush.bf16.msra.mxu0 %v1041
        %1161 = vmatpush.bf16.msra.mxu0 %v1039
        %1162 = vmatpush.bf16.msra.mxu0 %v1037
        %1163 = vmatpush.bf16.msra.mxu0 %v1035
        %1164 = vmatpush.bf16.msra.mxu0 %v1033
        %1165 = vmatmul.bf16.gmra.mxu0 %v803
        %v1166 = vpop.f32.mrf.mxu0
        %v1167 = vadd.f32 %v1153, %v1166
        %v1168 = vpop.f32.mrf.mxu0
        %v1169 = vadd.f32 %v1155, %v1168
        %1170 = vdwg.mxu0
        %1171 = vmatpush.bf16.msra.mxu0 %v1063
        %1172 = vmatpush.bf16.msra.mxu0 %v1061
        %1173 = vmatpush.bf16.msra.mxu0 %v1059
        %1174 = vmatpush.bf16.msra.mxu0 %v1057
        %1175 = vmatpush.bf16.msra.mxu0 %v1055
        %1176 = vmatpush.bf16.msra.mxu0 %v1053
        %1177 = vmatpush.bf16.msra.mxu0 %v1051
        %1178 = vmatpush.bf16.msra.mxu0 %v1049
        %1179 = vmatmul.bf16.gmra.mxu0 %v804
        %v1180 = vpop.f32.mrf.mxu0
        %v1181 = vadd.f32 %v1167, %v1180
        %v1182 = vpop.f32.mrf.mxu0
        %v1183 = vadd.f32 %v1169, %v1182
        %1184 = vdwg.mxu0
        %1185 = vmatpush.bf16.msra.mxu0 %v1016
        %1186 = vmatpush.bf16.msra.mxu0 %v1014
        %1187 = vmatpush.bf16.msra.mxu0 %v1012
        %1188 = vmatpush.bf16.msra.mxu0 %v1010
        %1189 = vmatpush.bf16.msra.mxu0 %v1008
        %1190 = vmatpush.bf16.msra.mxu0 %v1006
        %1191 = vmatpush.bf16.msra.mxu0 %v1004
        %1192 = vmatpush.bf16.msra.mxu0 %v1002
        %1193 = vmatmul.bf16.gmra.mxu0 %v801
        %v1194 = vpop.f32.mrf.mxu0
        %v1195 = vadd.f32 %v786, %v1194
        %v1196 = vpop.f32.mrf.mxu0
        %v1197 = vadd.f32 %v786, %v1196
        %1198 = vdwg.mxu0
        %1199 = vmatpush.bf16.msra.mxu0 %v1032
        %1200 = vmatpush.bf16.msra.mxu0 %v1030
        %1201 = vmatpush.bf16.msra.mxu0 %v1028
        %1202 = vmatpush.bf16.msra.mxu0 %v1026
        %1203 = vmatpush.bf16.msra.mxu0 %v1024
        %1204 = vmatpush.bf16.msra.mxu0 %v1022
        %1205 = vmatpush.bf16.msra.mxu0 %v1020
        %1206 = vmatpush.bf16.msra.mxu0 %v1018
        %1207 = vmatmul.bf16.gmra.mxu0 %v802
        %v1208 = vpop.f32.mrf.mxu0
        %v1209 = vadd.f32 %v1195, %v1208
        %v1210 = vpop.f32.mrf.mxu0
        %v1211 = vadd.f32 %v1197, %v1210
        %1212 = vdwg.mxu0
        %1213 = vmatpush.bf16.msra.mxu0 %v1048
        %1214 = vmatpush.bf16.msra.mxu0 %v1046
        %1215 = vmatpush.bf16.msra.mxu0 %v1044
        %1216 = vmatpush.bf16.msra.mxu0 %v1042
        %1217 = vmatpush.bf16.msra.mxu0 %v1040
        %1218 = vmatpush.bf16.msra.mxu0 %v1038
        %1219 = vmatpush.bf16.msra.mxu0 %v1036
        %1220 = vmatpush.bf16.msra.mxu0 %v1034
        %1221 = vmatmul.bf16.gmra.mxu0 %v803
        %v1222 = vpop.f32.mrf.mxu0
        %v1223 = vadd.f32 %v1209, %v1222
        %v1224 = vpop.f32.mrf.mxu0
        %v1225 = vadd.f32 %v1211, %v1224
        %1226 = vdwg.mxu0
        %1227 = vmatpush.bf16.msra.mxu0 %v1064
        %1228 = vmatpush.bf16.msra.mxu0 %v1062
        %1229 = vmatpush.bf16.msra.mxu0 %v1060
        %1230 = vmatpush.bf16.msra.mxu0 %v1058
        %1231 = vmatpush.bf16.msra.mxu0 %v1056
        %1232 = vmatpush.bf16.msra.mxu0 %v1054
        %1233 = vmatpush.bf16.msra.mxu0 %v1052
        %1234 = vmatpush.bf16.msra.mxu0 %v1050
        %1235 = vmatmul.bf16.gmra.mxu0 %v804
        %v1236 = vpop.f32.mrf.mxu0
        %v1237 = vadd.f32 %v1223, %v1236
        %v1238 = vpop.f32.mrf.mxu0
        %v1239 = vadd.f32 %v1225, %v1238
        %1240 = vdwg.mxu0
        %v1241 = vmax.f32 %v1181, 0.0
        %v1242 = vmax.f32 %v1237, 0.0
        %v1243 = vmax.f32 %v1183, 0.0
        %v1244 = vmax.f32 %v1239, 0.0
        %v1245 = vpack.c.bf16 %v1243, %v1241
        %v1246 = vpack.c.bf16 %v1244, %v1242
        %v1247 = vld [vmem:[#allocation8] sm:$0xf]
        %v1248 = vld [vmem:[#allocation8 + $0x4] sm:$0xf]
        %v1249 = vld [vmem:[#allocation8 + $0x8] sm:$0xf]
        %v1250 = vld [vmem:[#allocation8 + $0xc] sm:$0xf]
        %v1251 = vld [vmem:[#allocation8 + $0x10] sm:$0xf]
        %v1252 = vld [vmem:[#allocation8 + $0x14] sm:$0xf]
        %v1253 = vld [vmem:[#allocation8 + $0x18] sm:$0xf]
        %v1254 = vld [vmem:[#allocation8 + $0x1c] sm:$0xf]
        %v1255 = vld [vmem:[#allocation8 + $0x20] sm:$0xf]
        %v1256 = vld [vmem:[#allocation8 + $0x24] sm:$0xf]
        %v1257 = vld [vmem:[#allocation8 + $0x28] sm:$0xf]
        %v1258 = vld [vmem:[#allocation8 + $0x2c] sm:$0xf]
        %v1259 = vld [vmem:[#allocation8 + $0x30] sm:$0xf]
        %v1260 = vld [vmem:[#allocation8 + $0x34] sm:$0xf]
        %v1261 = vld [vmem:[#allocation8 + $0x38] sm:$0xf]
        %v1262 = vld [vmem:[#allocation8 + $0x3c] sm:$0xf]
        %v1263 = vld [vmem:[#allocation8 + $0x40] sm:$0xf]
        %v1264 = vld [vmem:[#allocation8 + $0x44] sm:$0xf]
        %v1265 = vld [vmem:[#allocation8 + $0x48] sm:$0xf]
        %v1266 = vld [vmem:[#allocation8 + $0x4c] sm:$0xf]
        %v1267 = vld [vmem:[#allocation8 + $0x50] sm:$0xf]
        %v1268 = vld [vmem:[#allocation8 + $0x54] sm:$0xf]
        %v1269 = vld [vmem:[#allocation8 + $0x58] sm:$0xf]
        %v1270 = vld [vmem:[#allocation8 + $0x5c] sm:$0xf]
        %v1271 = vld [vmem:[#allocation8 + $0x60] sm:$0xf]
        %v1272 = vld [vmem:[#allocation8 + $0x64] sm:$0xf]
        %v1273 = vld [vmem:[#allocation8 + $0x68] sm:$0xf]
        %v1274 = vld [vmem:[#allocation8 + $0x6c] sm:$0xf]
        %v1275 = vld [vmem:[#allocation8 + $0x70] sm:$0xf]
        %v1276 = vld [vmem:[#allocation8 + $0x74] sm:$0xf]
        %v1277 = vld [vmem:[#allocation8 + $0x78] sm:$0xf]
        %v1278 = vld [vmem:[#allocation8 + $0x7c] sm:$0xf]
        %v1279 = vld [vmem:[#allocation10] sm:$0x1]
        %v1281 = vperm.slane %v1279, 0
        %v1315 = vunpack.c.l.b16 %v1247
        %v1316 = vunpack.c.l.b16 %v1248
        %v1317 = vunpack.c.l.b16 %v1249
        %v1318 = vunpack.c.l.b16 %v1250
        %v1319 = vunpack.c.l.b16 %v1251
        %v1320 = vunpack.c.l.b16 %v1252
        %v1321 = vunpack.c.l.b16 %v1253
        %v1322 = vunpack.c.l.b16 %v1254
        %v1323 = vunpack.c.l.b16 %v1255
        %v1324 = vunpack.c.l.b16 %v1256
        %v1325 = vunpack.c.l.b16 %v1257
        %v1326 = vunpack.c.l.b16 %v1258
        %v1327 = vunpack.c.l.b16 %v1259
        %v1328 = vunpack.c.l.b16 %v1260
        %v1329 = vunpack.c.l.b16 %v1261
        %v1330 = vunpack.c.l.b16 %v1262
        %v1331 = vunpack.c.l.b16 %v1263
        %v1332 = vunpack.c.l.b16 %v1264
        %v1333 = vunpack.c.l.b16 %v1265
        %v1334 = vunpack.c.l.b16 %v1266
        %v1335 = vunpack.c.l.b16 %v1267
        %v1336 = vunpack.c.l.b16 %v1268
        %v1337 = vunpack.c.l.b16 %v1269
        %v1338 = vunpack.c.l.b16 %v1270
        %v1339 = vunpack.c.l.b16 %v1271
        %v1340 = vunpack.c.l.b16 %v1272
        %v1341 = vunpack.c.l.b16 %v1273
        %v1342 = vunpack.c.l.b16 %v1274
        %v1343 = vunpack.c.l.b16 %v1275
        %v1344 = vunpack.c.l.b16 %v1276
        %v1345 = vunpack.c.l.b16 %v1277
        %v1346 = vunpack.c.l.b16 %v1278
        %v1347 = vpack.c.b16 %v1316, %v1315
        %v1348 = vpack.c.b16 %v1318, %v1317
        %v1349 = vpack.c.b16 %v1320, %v1319
        %v1350 = vpack.c.b16 %v1322, %v1321
        %v1351 = vpack.c.b16 %v1324, %v1323
        %v1352 = vpack.c.b16 %v1326, %v1325
        %v1353 = vpack.c.b16 %v1328, %v1327
        %v1354 = vpack.c.b16 %v1330, %v1329
        %v1355 = vpack.c.b16 %v1332, %v1331
        %v1356 = vpack.c.b16 %v1334, %v1333
        %v1357 = vpack.c.b16 %v1336, %v1335
        %v1358 = vpack.c.b16 %v1338, %v1337
        %v1359 = vpack.c.b16 %v1340, %v1339
        %v1360 = vpack.c.b16 %v1342, %v1341
        %v1361 = vpack.c.b16 %v1344, %v1343
        %v1362 = vpack.c.b16 %v1346, %v1345
        %1379 = vmatpush.bf16.msra.mxu0 %v1354
        %1380 = vmatpush.bf16.msra.mxu0 %v1353
        %1381 = vmatpush.bf16.msra.mxu0 %v1352
        %1382 = vmatpush.bf16.msra.mxu0 %v1351
        %1383 = vmatpush.bf16.msra.mxu0 %v1350
        %1384 = vmatpush.bf16.msra.mxu0 %v1349
        %1385 = vmatpush.bf16.msra.mxu0 %v1348
        %1386 = vmatpush.bf16.msra.mxu0 %v1347
        %1387 = vmatmul.bf16.gmra.mxu0 %v1245
        %v1388 = vpop.f32.mrf.mxu0
        %v1389 = vadd.f32 %v1281, %v1388
        %v1390 = vpop.f32.mrf.mxu0
        %v1391 = vadd.f32 %v1281, %v1390
        %1392 = vdwg.mxu0
        %1393 = vmatpush.bf16.msra.mxu0 %v1362
        %1394 = vmatpush.bf16.msra.mxu0 %v1361
        %1395 = vmatpush.bf16.msra.mxu0 %v1360
        %1396 = vmatpush.bf16.msra.mxu0 %v1359
        %1397 = vmatpush.bf16.msra.mxu0 %v1358
        %1398 = vmatpush.bf16.msra.mxu0 %v1357
        %1399 = vmatpush.bf16.msra.mxu0 %v1356
        %1400 = vmatpush.bf16.msra.mxu0 %v1355
        %1401 = vmatmul.bf16.gmra.mxu0 %v1246
        %v1402 = vpop.f32.mrf.mxu0
        %v1403 = vadd.f32 %v1389, %v1402
        %v1404 = vpop.f32.mrf.mxu0
        %v1405 = vadd.f32 %v1391, %v1404
        %1406 = vdwg.mxu0
        %v1407 = vmax.f32 %v1403, 0.0
        %v1408 = vmax.f32 %v1405, 0.0
        %v1409 = vld [vmem:[#allocation11] sm:$0xff]
        %v1410 = vld [vmem:[#allocation11 + $0x8] sm:$0xff]
        %v1411 = vld [vmem:[#allocation11 + $0x10] sm:$0xff]
        %v1412 = vld [vmem:[#allocation11 + $0x18] sm:$0xff]
        %v1413 = vld [vmem:[#allocation11 + $0x20] sm:$0xff]
        %v1414 = vld [vmem:[#allocation11 + $0x28] sm:$0xff]
        %v1415 = vld [vmem:[#allocation11 + $0x30] sm:$0xff]
        %v1416 = vld [vmem:[#allocation11 + $0x38] sm:$0xff]
        %v1417 = vld [vmem:[#allocation11 + $0x40] sm:$0xff]
        %v1418 = vld [vmem:[#allocation11 + $0x48] sm:$0xff]
        %v1419 = vld [vmem:[#allocation11 + $0x50] sm:$0xff]
        %v1420 = vld [vmem:[#allocation11 + $0x58] sm:$0xff]
        %v1421 = vld [vmem:[#allocation11 + $0x60] sm:$0xff]
        %v1422 = vld [vmem:[#allocation11 + $0x68] sm:$0xff]
        %v1423 = vld [vmem:[#allocation11 + $0x70] sm:$0xff]
        %v1424 = vld [vmem:[#allocation11 + $0x78] sm:$0xff]
        %v1425 = vld [vmem:[#allocation11 + $0x80] sm:$0xff]
        %v1426 = vld [vmem:[#allocation11 + $0x88] sm:$0xff]
        %v1427 = vld [vmem:[#allocation11 + $0x90] sm:$0xff]
        %v1428 = vld [vmem:[#allocation11 + $0x98] sm:$0xff]
        %v1429 = vld [vmem:[#allocation11 + $0xa0] sm:$0xff]
        %v1430 = vld [vmem:[#allocation11 + $0xa8] sm:$0xff]
        %v1431 = vld [vmem:[#allocation11 + $0xb0] sm:$0xff]
        %v1432 = vld [vmem:[#allocation11 + $0xb8] sm:$0xff]
        %v1433 = vld [vmem:[#allocation11 + $0xc0] sm:$0xff]
        %v1434 = vld [vmem:[#allocation11 + $0xc8] sm:$0xff]
        %v1435 = vld [vmem:[#allocation11 + $0xd0] sm:$0xff]
        %v1436 = vld [vmem:[#allocation11 + $0xd8] sm:$0xff]
        %v1437 = vld [vmem:[#allocation11 + $0xe0] sm:$0xff]
        %v1438 = vld [vmem:[#allocation11 + $0xe8] sm:$0xff]
        %v1439 = vld [vmem:[#allocation11 + $0xf0] sm:$0xff]
        %v1440 = vld [vmem:[#allocation11 + $0xf8] sm:$0xff]
        %v1441 = vld [vmem:[#allocation13] sm:$0x3]
        %v1443 = vperm.slane %v1441, 0
        %v1444 = vperm.slane %v1441, 1
        %1447 = vmatpush.msra.mxu0 %v1439
        %1448 = vmatpush.msra.mxu0 %v1437
        %1449 = vmatpush.msra.mxu0 %v1435
        %1450 = vmatpush.msra.mxu0 %v1433
        %1451 = vmatpush.msra.mxu0 %v1431
        %1452 = vmatpush.msra.mxu0 %v1429
        %1453 = vmatpush.msra.mxu0 %v1427
        %1454 = vmatpush.msra.mxu0 %v1425
        %1455 = vmatpush.msra.mxu0 %v1423
        %1456 = vmatpush.msra.mxu0 %v1421
        %1457 = vmatpush.msra.mxu0 %v1419
        %1458 = vmatpush.msra.mxu0 %v1417
        %1459 = vmatpush.msra.mxu0 %v1415
        %1460 = vmatpush.msra.mxu0 %v1413
        %1461 = vmatpush.msra.mxu0 %v1411
        %1462 = vmatpush.msra.mxu0 %v1409
        %1463 = vmatmul.f32.gmra.mxu0 %v1407
        %v1464 = vpop.f32.mrf.mxu0
        %v1465 = vadd.f32 %v1443, %v1464
        %1466 = vmatmul.f32.gmra.mxu0 %v1408
        %v1467 = vpop.f32.mrf.mxu0
        %v1468 = vadd.f32 %v1443, %v1467
        %1469 = vdwg.mxu0
        %1470 = vmatpush.msra.mxu0 %v1440
        %1471 = vmatpush.msra.mxu0 %v1438
        %1472 = vmatpush.msra.mxu0 %v1436
        %1473 = vmatpush.msra.mxu0 %v1434
        %1474 = vmatpush.msra.mxu0 %v1432
        %1475 = vmatpush.msra.mxu0 %v1430
        %1476 = vmatpush.msra.mxu0 %v1428
        %1477 = vmatpush.msra.mxu0 %v1426
        %1478 = vmatpush.msra.mxu0 %v1424
        %1479 = vmatpush.msra.mxu0 %v1422
        %1480 = vmatpush.msra.mxu0 %v1420
        %1481 = vmatpush.msra.mxu0 %v1418
        %1482 = vmatpush.msra.mxu0 %v1416
        %1483 = vmatpush.msra.mxu0 %v1414
        %1484 = vmatpush.msra.mxu0 %v1412
        %1485 = vmatpush.msra.mxu0 %v1410
        %1486 = vmatmul.f32.gmra.mxu0 %v1407
        %v1487 = vpop.f32.mrf.mxu0
        %v1488 = vadd.f32 %v1444, %v1487
        %1489 = vmatmul.f32.gmra.mxu0 %v1408
        %v1490 = vpop.f32.mrf.mxu0
        %v1491 = vadd.f32 %v1444, %v1490
        %1492 = vdwg.mxu0
        %v1493 = vld [vmem:[%s608] sm:$0xff]
        %v1494 = vld [vmem:[%s608 + $0x8] sm:$0xff]
        %v1495 = vmul.f32 %v1488, 0.5
        %v1496 = vmul.f32 %v1491, 0.5
        %v1497 = vmul.f32 %v1495, 1.442695
        %v1498 = vpow.pop %v1497
        %v1499 = vmul.f32 %v1496, 1.442695
        %v1500 = vpow.pop %v1499
        %v1501 = vmul.f32 %v1493, %v1498
        %v1502 = vmul.f32 %v1494, %v1500
        %v1503 = vadd.f32 %v1465, %v1501
        %v1504 = vadd.f32 %v1468, %v1502
        %v1505 = vpack.c.bf16 %v1504, %v1503
        %v1506 = vld [vmem:[#allocation14] sm:$0xf]
        %v1507 = vld [vmem:[#allocation14 + $0x4] sm:$0xf]
        %v1508 = vld [vmem:[#allocation14 + $0x8] sm:$0xf]
        %v1509 = vld [vmem:[#allocation14 + $0xc] sm:$0xf]
        %v1510 = vld [vmem:[#allocation14 + $0x10] sm:$0xf]
        %v1511 = vld [vmem:[#allocation14 + $0x14] sm:$0xf]
        %v1512 = vld [vmem:[#allocation14 + $0x18] sm:$0xf]
        %v1513 = vld [vmem:[#allocation14 + $0x1c] sm:$0xf]
        %v1514 = vld [vmem:[#allocation14 + $0x20] sm:$0xf]
        %v1515 = vld [vmem:[#allocation14 + $0x24] sm:$0xf]
        %v1516 = vld [vmem:[#allocation14 + $0x28] sm:$0xf]
        %v1517 = vld [vmem:[#allocation14 + $0x2c] sm:$0xf]
        %v1518 = vld [vmem:[#allocation14 + $0x30] sm:$0xf]
        %v1519 = vld [vmem:[#allocation14 + $0x34] sm:$0xf]
        %v1520 = vld [vmem:[#allocation14 + $0x38] sm:$0xf]
        %v1521 = vld [vmem:[#allocation14 + $0x3c] sm:$0xf]
        %v1522 = vld [vmem:[#allocation16] sm:$0x1]
        %v1524 = vperm.slane %v1522, 0
        %v1542 = vunpack.c.l.b16 %v1506
        %v1543 = vunpack.c.l.b16 %v1507
        %v1544 = vunpack.c.l.b16 %v1508
        %v1545 = vunpack.c.l.b16 %v1509
        %v1546 = vunpack.c.l.b16 %v1510
        %v1547 = vunpack.c.l.b16 %v1511
        %v1548 = vunpack.c.l.b16 %v1512
        %v1549 = vunpack.c.l.b16 %v1513
        %v1550 = vunpack.c.l.b16 %v1514
        %v1551 = vunpack.c.l.b16 %v1515
        %v1552 = vunpack.c.l.b16 %v1516
        %v1553 = vunpack.c.l.b16 %v1517
        %v1554 = vunpack.c.l.b16 %v1518
        %v1555 = vunpack.c.l.b16 %v1519
        %v1556 = vunpack.c.l.b16 %v1520
        %v1557 = vunpack.c.l.b16 %v1521
        %v1558 = vpack.c.b16 %v1543, %v1542
        %v1559 = vpack.c.b16 %v1545, %v1544
        %v1560 = vpack.c.b16 %v1547, %v1546
        %v1561 = vpack.c.b16 %v1549, %v1548
        %v1562 = vpack.c.b16 %v1551, %v1550
        %v1563 = vpack.c.b16 %v1553, %v1552
        %v1564 = vpack.c.b16 %v1555, %v1554
        %v1565 = vpack.c.b16 %v1557, %v1556
        %1574 = vmatpush.bf16.msra.mxu0 %v1565
        %1575 = vmatpush.bf16.msra.mxu0 %v1564
        %1576 = vmatpush.bf16.msra.mxu0 %v1563
        %1577 = vmatpush.bf16.msra.mxu0 %v1562
        %1578 = vmatpush.bf16.msra.mxu0 %v1561
        %1579 = vmatpush.bf16.msra.mxu0 %v1560
        %1580 = vmatpush.bf16.msra.mxu0 %v1559
        %1581 = vmatpush.bf16.msra.mxu0 %v1558
        %1582 = vmatmul.bf16.gmra.mxu0 %v1505
        %v1583 = vpop.f32.mrf.mxu0
        %v1584 = vadd.f32 %v1524, %v1583
        %v1585 = vpop.f32.mrf.mxu0
        %v1586 = vadd.f32 %v1524, %v1585
        %1587 = vdwg.mxu0
        %v1588 = vmax.f32 %v1584, 0.0
        %v1589 = vmax.f32 %v1586, 0.0
        %v1590 = vpack.c.bf16 %v1589, %v1588
        %v1591 = vld [vmem:[#allocation17] sm:$0xff]
        %v1592 = vld [vmem:[#allocation17 + $0x8] sm:$0xff]
        %v1593 = vld [vmem:[#allocation17 + $0x10] sm:$0xff]
        %v1594 = vld [vmem:[#allocation17 + $0x18] sm:$0xff]
        %v1595 = vld [vmem:[#allocation17 + $0x20] sm:$0xff]
        %v1596 = vld [vmem:[#allocation17 + $0x28] sm:$0xff]
        %v1597 = vld [vmem:[#allocation17 + $0x30] sm:$0xff]
        %v1598 = vld [vmem:[#allocation17 + $0x38] sm:$0xff]
        %v1599 = vld [vmem:[#allocation17 + $0x40] sm:$0xff]
        %v1600 = vld [vmem:[#allocation17 + $0x48] sm:$0xff]
        %v1601 = vld [vmem:[#allocation17 + $0x50] sm:$0xff]
        %v1602 = vld [vmem:[#allocation17 + $0x58] sm:$0xff]
        %v1603 = vld [vmem:[#allocation17 + $0x60] sm:$0xff]
        %v1604 = vld [vmem:[#allocation17 + $0x68] sm:$0xff]
        %v1605 = vld [vmem:[#allocation17 + $0x70] sm:$0xff]
        %v1606 = vld [vmem:[#allocation17 + $0x78] sm:$0xff]
        %v1607 = vld [vmem:[%s11] sm:$0x3]
        %v1609 = vperm.slane %v1607, 0
        %v1610 = vperm.slane %v1607, 1
        %v1629 = vunpack.c.l.b16 %v1591
        %v1630 = vunpack.c.h.b16 %v1591
        %v1631 = vunpack.c.l.b16 %v1592
        %v1632 = vunpack.c.h.b16 %v1592
        %v1633 = vunpack.c.l.b16 %v1593
        %v1634 = vunpack.c.h.b16 %v1593
        %v1635 = vunpack.c.l.b16 %v1594
        %v1636 = vunpack.c.h.b16 %v1594
        %v1637 = vunpack.c.l.b16 %v1595
        %v1638 = vunpack.c.h.b16 %v1595
        %v1639 = vunpack.c.l.b16 %v1596
        %v1640 = vunpack.c.h.b16 %v1596
        %v1641 = vunpack.c.l.b16 %v1597
        %v1642 = vunpack.c.h.b16 %v1597
        %v1643 = vunpack.c.l.b16 %v1598
        %v1644 = vunpack.c.h.b16 %v1598
        %v1645 = vunpack.c.l.b16 %v1599
        %v1646 = vunpack.c.h.b16 %v1599
        %v1647 = vunpack.c.l.b16 %v1600
        %v1648 = vunpack.c.h.b16 %v1600
        %v1649 = vunpack.c.l.b16 %v1601
        %v1650 = vunpack.c.h.b16 %v1601
        %v1651 = vunpack.c.l.b16 %v1602
        %v1652 = vunpack.c.h.b16 %v1602
        %v1653 = vunpack.c.l.b16 %v1603
        %v1654 = vunpack.c.h.b16 %v1603
        %v1655 = vunpack.c.l.b16 %v1604
        %v1656 = vunpack.c.h.b16 %v1604
        %v1657 = vunpack.c.l.b16 %v1605
        %v1658 = vunpack.c.h.b16 %v1605
        %v1659 = vunpack.c.l.b16 %v1606
        %v1660 = vunpack.c.h.b16 %v1606
        %v1661 = vpack.c.b16 %v1631, %v1629
        %v1662 = vpack.c.b16 %v1632, %v1630
        %v1663 = vpack.c.b16 %v1635, %v1633
        %v1664 = vpack.c.b16 %v1636, %v1634
        %v1665 = vpack.c.b16 %v1639, %v1637
        %v1666 = vpack.c.b16 %v1640, %v1638
        %v1667 = vpack.c.b16 %v1643, %v1641
        %v1668 = vpack.c.b16 %v1644, %v1642
        %v1669 = vpack.c.b16 %v1647, %v1645
        %v1670 = vpack.c.b16 %v1648, %v1646
        %v1671 = vpack.c.b16 %v1651, %v1649
        %v1672 = vpack.c.b16 %v1652, %v1650
        %v1673 = vpack.c.b16 %v1655, %v1653
        %v1674 = vpack.c.b16 %v1656, %v1654
        %v1675 = vpack.c.b16 %v1659, %v1657
        %v1676 = vpack.c.b16 %v1660, %v1658
        %1693 = vmatpush.bf16.msra.mxu0 %v1675
        %1694 = vmatpush.bf16.msra.mxu0 %v1673
        %1695 = vmatpush.bf16.msra.mxu0 %v1671
        %1696 = vmatpush.bf16.msra.mxu0 %v1669
        %1697 = vmatpush.bf16.msra.mxu0 %v1667
        %1698 = vmatpush.bf16.msra.mxu0 %v1665
        %1699 = vmatpush.bf16.msra.mxu0 %v1663
        %1700 = vmatpush.bf16.msra.mxu0 %v1661
        %1701 = vmatmul.bf16.gmra.mxu0 %v1590
        %v1702 = vpop.f32.mrf.mxu0
        %v1703 = vadd.f32 %v1609, %v1702
        %v1704 = vpop.f32.mrf.mxu0
        %v1705 = vadd.f32 %v1609, %v1704
        %1706 = vdwg.mxu0
        %1707 = vmatpush.bf16.msra.mxu0 %v1676
        %1708 = vmatpush.bf16.msra.mxu0 %v1674
        %1709 = vmatpush.bf16.msra.mxu0 %v1672
        %1710 = vmatpush.bf16.msra.mxu0 %v1670
        %1711 = vmatpush.bf16.msra.mxu0 %v1668
        %1712 = vmatpush.bf16.msra.mxu0 %v1666
        %1713 = vmatpush.bf16.msra.mxu0 %v1664
        %1714 = vmatpush.bf16.msra.mxu0 %v1662
        %1715 = vmatmul.bf16.gmra.mxu0 %v1590
        %v1716 = vpop.f32.mrf.mxu0
        %v1717 = vadd.f32 %v1610, %v1716
        %v1718 = vpop.f32.mrf.mxu0
        %v1719 = vadd.f32 %v1610, %v1718
        %1720 = vdwg.mxu0
        %v1721 = vmax.f32 %v1703, 0.0
        %v1722 = vmax.f32 %v1717, 0.0
        %v1723 = vmax.f32 %v1705, 0.0
        %v1724 = vmax.f32 %v1719, 0.0
        %v1725 = vpack.c.bf16 %v1723, %v1721
        %v1726 = vpack.c.bf16 %v1724, %v1722
        %v1727 = vld [vmem:[#allocation19] sm:$0xff]
        %v1728 = vld [vmem:[#allocation19 + $0x8] sm:$0xff]
        %v1729 = vld [vmem:[#allocation19 + $0x10] sm:$0xff]
        %v1730 = vld [vmem:[#allocation19 + $0x18] sm:$0xff]
        %v1731 = vld [vmem:[#allocation19 + $0x20] sm:$0xff]
        %v1732 = vld [vmem:[#allocation19 + $0x28] sm:$0xff]
        %v1733 = vld [vmem:[#allocation19 + $0x30] sm:$0xff]
        %v1734 = vld [vmem:[#allocation19 + $0x38] sm:$0xff]
        %v1735 = vld [vmem:[#allocation19 + $0x40] sm:$0xff]
        %v1736 = vld [vmem:[#allocation19 + $0x48] sm:$0xff]
        %v1737 = vld [vmem:[#allocation19 + $0x50] sm:$0xff]
        %v1738 = vld [vmem:[#allocation19 + $0x58] sm:$0xff]
        %v1739 = vld [vmem:[#allocation19 + $0x60] sm:$0xff]
        %v1740 = vld [vmem:[#allocation19 + $0x68] sm:$0xff]
        %v1741 = vld [vmem:[#allocation19 + $0x70] sm:$0xff]
        %v1742 = vld [vmem:[#allocation19 + $0x78] sm:$0xff]
        %v1743 = vld [vmem:[#allocation19 + $0x80] sm:$0xff]
        %v1744 = vld [vmem:[#allocation19 + $0x88] sm:$0xff]
        %v1745 = vld [vmem:[#allocation19 + $0x90] sm:$0xff]
        %v1746 = vld [vmem:[#allocation19 + $0x98] sm:$0xff]
        %v1747 = vld [vmem:[#allocation19 + $0xa0] sm:$0xff]
        %v1748 = vld [vmem:[#allocation19 + $0xa8] sm:$0xff]
        %v1749 = vld [vmem:[#allocation19 + $0xb0] sm:$0xff]
        %v1750 = vld [vmem:[#allocation19 + $0xb8] sm:$0xff]
        %v1751 = vld [vmem:[#allocation19 + $0xc0] sm:$0xff]
        %v1752 = vld [vmem:[#allocation19 + $0xc8] sm:$0xff]
        %v1753 = vld [vmem:[#allocation19 + $0xd0] sm:$0xff]
        %v1754 = vld [vmem:[#allocation19 + $0xd8] sm:$0xff]
        %v1755 = vld [vmem:[#allocation19 + $0xe0] sm:$0xff]
        %v1756 = vld [vmem:[#allocation19 + $0xe8] sm:$0xff]
        %v1757 = vld [vmem:[#allocation19 + $0xf0] sm:$0xff]
        %v1758 = vld [vmem:[#allocation19 + $0xf8] sm:$0xff]
        %v1759 = vld [vmem:[#allocation19 + $0x100] sm:$0xff]
        %v1760 = vld [vmem:[#allocation19 + $0x108] sm:$0xff]
        %v1761 = vld [vmem:[#allocation19 + $0x110] sm:$0xff]
        %v1762 = vld [vmem:[#allocation19 + $0x118] sm:$0xff]
        %v1763 = vld [vmem:[#allocation19 + $0x120] sm:$0xff]
        %v1764 = vld [vmem:[#allocation19 + $0x128] sm:$0xff]
        %v1765 = vld [vmem:[#allocation19 + $0x130] sm:$0xff]
        %v1766 = vld [vmem:[#allocation19 + $0x138] sm:$0xff]
        %v1767 = vld [vmem:[#allocation19 + $0x140] sm:$0xff]
        %v1768 = vld [vmem:[#allocation19 + $0x148] sm:$0xff]
        %v1769 = vld [vmem:[#allocation19 + $0x150] sm:$0xff]
        %v1770 = vld [vmem:[#allocation19 + $0x158] sm:$0xff]
        %v1771 = vld [vmem:[#allocation19 + $0x160] sm:$0xff]
        %v1772 = vld [vmem:[#allocation19 + $0x168] sm:$0xff]
        %v1773 = vld [vmem:[#allocation19 + $0x170] sm:$0xff]
        %v1774 = vld [vmem:[#allocation19 + $0x178] sm:$0xff]
        %v1775 = vld [vmem:[#allocation19 + $0x180] sm:$0xff]
        %v1776 = vld [vmem:[#allocation19 + $0x188] sm:$0xff]
        %v1777 = vld [vmem:[#allocation19 + $0x190] sm:$0xff]
        %v1778 = vld [vmem:[#allocation19 + $0x198] sm:$0xff]
        %v1779 = vld [vmem:[#allocation19 + $0x1a0] sm:$0xff]
        %v1780 = vld [vmem:[#allocation19 + $0x1a8] sm:$0xff]
        %v1781 = vld [vmem:[#allocation19 + $0x1b0] sm:$0xff]
        %v1782 = vld [vmem:[#allocation19 + $0x1b8] sm:$0xff]
        %v1783 = vld [vmem:[#allocation19 + $0x1c0] sm:$0xff]
        %v1784 = vld [vmem:[#allocation19 + $0x1c8] sm:$0xff]
        %v1785 = vld [vmem:[#allocation19 + $0x1d0] sm:$0xff]
        %v1786 = vld [vmem:[#allocation19 + $0x1d8] sm:$0xff]
        %v1787 = vld [vmem:[#allocation19 + $0x1e0] sm:$0xff]
        %v1788 = vld [vmem:[#allocation19 + $0x1e8] sm:$0xff]
        %v1789 = vld [vmem:[#allocation19 + $0x1f0] sm:$0xff]
        %v1790 = vld [vmem:[#allocation19 + $0x1f8] sm:$0xff]
        %v1791 = vld [vmem:[%s13] sm:$0xf]
        %v1793 = vperm.slane %v1791, 0
        %v1794 = vperm.slane %v1791, 1
        %v1795 = vperm.slane %v1791, 2
        %v1796 = vperm.slane %v1791, 3
        %v1865 = vunpack.c.l.b16 %v1727
        %v1866 = vunpack.c.h.b16 %v1727
        %v1867 = vunpack.c.l.b16 %v1728
        %v1868 = vunpack.c.h.b16 %v1728
        %v1869 = vunpack.c.l.b16 %v1729
        %v1870 = vunpack.c.h.b16 %v1729
        %v1871 = vunpack.c.l.b16 %v1730
        %v1872 = vunpack.c.h.b16 %v1730
        %v1873 = vunpack.c.l.b16 %v1731
        %v1874 = vunpack.c.h.b16 %v1731
        %v1875 = vunpack.c.l.b16 %v1732
        %v1876 = vunpack.c.h.b16 %v1732
        %v1877 = vunpack.c.l.b16 %v1733
        %v1878 = vunpack.c.h.b16 %v1733
        %v1879 = vunpack.c.l.b16 %v1734
        %v1880 = vunpack.c.h.b16 %v1734
        %v1881 = vunpack.c.l.b16 %v1735
        %v1882 = vunpack.c.h.b16 %v1735
        %v1883 = vunpack.c.l.b16 %v1736
        %v1884 = vunpack.c.h.b16 %v1736
        %v1885 = vunpack.c.l.b16 %v1737
        %v1886 = vunpack.c.h.b16 %v1737
        %v1887 = vunpack.c.l.b16 %v1738
        %v1888 = vunpack.c.h.b16 %v1738
        %v1889 = vunpack.c.l.b16 %v1739
        %v1890 = vunpack.c.h.b16 %v1739
        %v1891 = vunpack.c.l.b16 %v1740
        %v1892 = vunpack.c.h.b16 %v1740
        %v1893 = vunpack.c.l.b16 %v1741
        %v1894 = vunpack.c.h.b16 %v1741
        %v1895 = vunpack.c.l.b16 %v1742
        %v1896 = vunpack.c.h.b16 %v1742
        %v1897 = vunpack.c.l.b16 %v1743
        %v1898 = vunpack.c.h.b16 %v1743
        %v1899 = vunpack.c.l.b16 %v1744
        %v1900 = vunpack.c.h.b16 %v1744
        %v1901 = vunpack.c.l.b16 %v1745
        %v1902 = vunpack.c.h.b16 %v1745
        %v1903 = vunpack.c.l.b16 %v1746
        %v1904 = vunpack.c.h.b16 %v1746
        %v1905 = vunpack.c.l.b16 %v1747
        %v1906 = vunpack.c.h.b16 %v1747
        %v1907 = vunpack.c.l.b16 %v1748
        %v1908 = vunpack.c.h.b16 %v1748
        %v1909 = vunpack.c.l.b16 %v1749
        %v1910 = vunpack.c.h.b16 %v1749
        %v1911 = vunpack.c.l.b16 %v1750
        %v1912 = vunpack.c.h.b16 %v1750
        %v1913 = vunpack.c.l.b16 %v1751
        %v1914 = vunpack.c.h.b16 %v1751
        %v1915 = vunpack.c.l.b16 %v1752
        %v1916 = vunpack.c.h.b16 %v1752
        %v1917 = vunpack.c.l.b16 %v1753
        %v1918 = vunpack.c.h.b16 %v1753
        %v1919 = vunpack.c.l.b16 %v1754
        %v1920 = vunpack.c.h.b16 %v1754
        %v1921 = vunpack.c.l.b16 %v1755
        %v1922 = vunpack.c.h.b16 %v1755
        %v1923 = vunpack.c.l.b16 %v1756
        %v1924 = vunpack.c.h.b16 %v1756
        %v1925 = vunpack.c.l.b16 %v1757
        %v1926 = vunpack.c.h.b16 %v1757
        %v1927 = vunpack.c.l.b16 %v1758
        %v1928 = vunpack.c.h.b16 %v1758
        %v1929 = vunpack.c.l.b16 %v1759
        %v1930 = vunpack.c.h.b16 %v1759
        %v1931 = vunpack.c.l.b16 %v1760
        %v1932 = vunpack.c.h.b16 %v1760
        %v1933 = vunpack.c.l.b16 %v1761
        %v1934 = vunpack.c.h.b16 %v1761
        %v1935 = vunpack.c.l.b16 %v1762
        %v1936 = vunpack.c.h.b16 %v1762
        %v1937 = vunpack.c.l.b16 %v1763
        %v1938 = vunpack.c.h.b16 %v1763
        %v1939 = vunpack.c.l.b16 %v1764
        %v1940 = vunpack.c.h.b16 %v1764
        %v1941 = vunpack.c.l.b16 %v1765
        %v1942 = vunpack.c.h.b16 %v1765
        %v1943 = vunpack.c.l.b16 %v1766
        %v1944 = vunpack.c.h.b16 %v1766
        %v1945 = vunpack.c.l.b16 %v1767
        %v1946 = vunpack.c.h.b16 %v1767
        %v1947 = vunpack.c.l.b16 %v1768
        %v1948 = vunpack.c.h.b16 %v1768
        %v1949 = vunpack.c.l.b16 %v1769
        %v1950 = vunpack.c.h.b16 %v1769
        %v1951 = vunpack.c.l.b16 %v1770
        %v1952 = vunpack.c.h.b16 %v1770
        %v1953 = vunpack.c.l.b16 %v1771
        %v1954 = vunpack.c.h.b16 %v1771
        %v1955 = vunpack.c.l.b16 %v1772
        %v1956 = vunpack.c.h.b16 %v1772
        %v1957 = vunpack.c.l.b16 %v1773
        %v1958 = vunpack.c.h.b16 %v1773
        %v1959 = vunpack.c.l.b16 %v1774
        %v1960 = vunpack.c.h.b16 %v1774
        %v1961 = vunpack.c.l.b16 %v1775
        %v1962 = vunpack.c.h.b16 %v1775
        %v1963 = vunpack.c.l.b16 %v1776
        %v1964 = vunpack.c.h.b16 %v1776
        %v1965 = vunpack.c.l.b16 %v1777
        %v1966 = vunpack.c.h.b16 %v1777
        %v1967 = vunpack.c.l.b16 %v1778
        %v1968 = vunpack.c.h.b16 %v1778
        %v1969 = vunpack.c.l.b16 %v1779
        %v1970 = vunpack.c.h.b16 %v1779
        %v1971 = vunpack.c.l.b16 %v1780
        %v1972 = vunpack.c.h.b16 %v1780
        %v1973 = vunpack.c.l.b16 %v1781
        %v1974 = vunpack.c.h.b16 %v1781
        %v1975 = vunpack.c.l.b16 %v1782
        %v1976 = vunpack.c.h.b16 %v1782
        %v1977 = vunpack.c.l.b16 %v1783
        %v1978 = vunpack.c.h.b16 %v1783
        %v1979 = vunpack.c.l.b16 %v1784
        %v1980 = vunpack.c.h.b16 %v1784
        %v1981 = vunpack.c.l.b16 %v1785
        %v1982 = vunpack.c.h.b16 %v1785
        %v1983 = vunpack.c.l.b16 %v1786
        %v1984 = vunpack.c.h.b16 %v1786
        %v1985 = vunpack.c.l.b16 %v1787
        %v1986 = vunpack.c.h.b16 %v1787
        %v1987 = vunpack.c.l.b16 %v1788
        %v1988 = vunpack.c.h.b16 %v1788
        %v1989 = vunpack.c.l.b16 %v1789
        %v1990 = vunpack.c.h.b16 %v1789
        %v1991 = vunpack.c.l.b16 %v1790
        %v1992 = vunpack.c.h.b16 %v1790
        %v1993 = vpack.c.b16 %v1869, %v1865
        %v1994 = vpack.c.b16 %v1870, %v1866
        %v1995 = vpack.c.b16 %v1871, %v1867
        %v1996 = vpack.c.b16 %v1872, %v1868
        %v1997 = vpack.c.b16 %v1877, %v1873
        %v1998 = vpack.c.b16 %v1878, %v1874
        %v1999 = vpack.c.b16 %v1879, %v1875
        %v2000 = vpack.c.b16 %v1880, %v1876
        %v2001 = vpack.c.b16 %v1885, %v1881
        %v2002 = vpack.c.b16 %v1886, %v1882
        %v2003 = vpack.c.b16 %v1887, %v1883
        %v2004 = vpack.c.b16 %v1888, %v1884
        %v2005 = vpack.c.b16 %v1893, %v1889
        %v2006 = vpack.c.b16 %v1894, %v1890
        %v2007 = vpack.c.b16 %v1895, %v1891
        %v2008 = vpack.c.b16 %v1896, %v1892
        %v2009 = vpack.c.b16 %v1901, %v1897
        %v2010 = vpack.c.b16 %v1902, %v1898
        %v2011 = vpack.c.b16 %v1903, %v1899
        %v2012 = vpack.c.b16 %v1904, %v1900
        %v2013 = vpack.c.b16 %v1909, %v1905
        %v2014 = vpack.c.b16 %v1910, %v1906
        %v2015 = vpack.c.b16 %v1911, %v1907
        %v2016 = vpack.c.b16 %v1912, %v1908
        %v2017 = vpack.c.b16 %v1917, %v1913
        %v2018 = vpack.c.b16 %v1918, %v1914
        %v2019 = vpack.c.b16 %v1919, %v1915
        %v2020 = vpack.c.b16 %v1920, %v1916
        %v2021 = vpack.c.b16 %v1925, %v1921
        %v2022 = vpack.c.b16 %v1926, %v1922
        %v2023 = vpack.c.b16 %v1927, %v1923
        %v2024 = vpack.c.b16 %v1928, %v1924
        %v2025 = vpack.c.b16 %v1933, %v1929
        %v2026 = vpack.c.b16 %v1934, %v1930
        %v2027 = vpack.c.b16 %v1935, %v1931
        %v2028 = vpack.c.b16 %v1936, %v1932
        %v2029 = vpack.c.b16 %v1941, %v1937
        %v2030 = vpack.c.b16 %v1942, %v1938
        %v2031 = vpack.c.b16 %v1943, %v1939
        %v2032 = vpack.c.b16 %v1944, %v1940
        %v2033 = vpack.c.b16 %v1949, %v1945
        %v2034 = vpack.c.b16 %v1950, %v1946
        %v2035 = vpack.c.b16 %v1951, %v1947
        %v2036 = vpack.c.b16 %v1952, %v1948
        %v2037 = vpack.c.b16 %v1957, %v1953
        %v2038 = vpack.c.b16 %v1958, %v1954
        %v2039 = vpack.c.b16 %v1959, %v1955
        %v2040 = vpack.c.b16 %v1960, %v1956
        %v2041 = vpack.c.b16 %v1965, %v1961
        %v2042 = vpack.c.b16 %v1966, %v1962
        %v2043 = vpack.c.b16 %v1967, %v1963
        %v2044 = vpack.c.b16 %v1968, %v1964
        %v2045 = vpack.c.b16 %v1973, %v1969
        %v2046 = vpack.c.b16 %v1974, %v1970
        %v2047 = vpack.c.b16 %v1975, %v1971
        %v2048 = vpack.c.b16 %v1976, %v1972
        %v2049 = vpack.c.b16 %v1981, %v1977
        %v2050 = vpack.c.b16 %v1982, %v1978
        %v2051 = vpack.c.b16 %v1983, %v1979
        %v2052 = vpack.c.b16 %v1984, %v1980
        %v2053 = vpack.c.b16 %v1989, %v1985
        %v2054 = vpack.c.b16 %v1990, %v1986
        %v2055 = vpack.c.b16 %v1991, %v1987
        %v2056 = vpack.c.b16 %v1992, %v1988
        %2121 = vmatpush.bf16.msra.mxu0 %v2021
        %2122 = vmatpush.bf16.msra.mxu0 %v2017
        %2123 = vmatpush.bf16.msra.mxu0 %v2013
        %2124 = vmatpush.bf16.msra.mxu0 %v2009
        %2125 = vmatpush.bf16.msra.mxu0 %v2005
        %2126 = vmatpush.bf16.msra.mxu0 %v2001
        %2127 = vmatpush.bf16.msra.mxu0 %v1997
        %2128 = vmatpush.bf16.msra.mxu0 %v1993
        %2129 = vmatmul.bf16.gmra.mxu0 %v1725
        %v2130 = vpop.f32.mrf.mxu0
        %v2131 = vadd.f32 %v1793, %v2130
        %v2132 = vpop.f32.mrf.mxu0
        %v2133 = vadd.f32 %v1793, %v2132
        %2134 = vdwg.mxu0
        %2135 = vmatpush.bf16.msra.mxu0 %v2053
        %2136 = vmatpush.bf16.msra.mxu0 %v2049
        %2137 = vmatpush.bf16.msra.mxu0 %v2045
        %2138 = vmatpush.bf16.msra.mxu0 %v2041
        %2139 = vmatpush.bf16.msra.mxu0 %v2037
        %2140 = vmatpush.bf16.msra.mxu0 %v2033
        %2141 = vmatpush.bf16.msra.mxu0 %v2029
        %2142 = vmatpush.bf16.msra.mxu0 %v2025
        %2143 = vmatmul.bf16.gmra.mxu0 %v1726
        %v2144 = vpop.f32.mrf.mxu0
        %v2145 = vadd.f32 %v2131, %v2144
        %v2146 = vpop.f32.mrf.mxu0
        %v2147 = vadd.f32 %v2133, %v2146
        %2148 = vdwg.mxu0
        %2149 = vmatpush.bf16.msra.mxu0 %v2022
        %2150 = vmatpush.bf16.msra.mxu0 %v2018
        %2151 = vmatpush.bf16.msra.mxu0 %v2014
        %2152 = vmatpush.bf16.msra.mxu0 %v2010
        %2153 = vmatpush.bf16.msra.mxu0 %v2006
        %2154 = vmatpush.bf16.msra.mxu0 %v2002
        %2155 = vmatpush.bf16.msra.mxu0 %v1998
        %2156 = vmatpush.bf16.msra.mxu0 %v1994
        %2157 = vmatmul.bf16.gmra.mxu0 %v1725
        %v2158 = vpop.f32.mrf.mxu0
        %v2159 = vadd.f32 %v1794, %v2158
        %v2160 = vpop.f32.mrf.mxu0
        %v2161 = vadd.f32 %v1794, %v2160
        %2162 = vdwg.mxu0
        %2163 = vmatpush.bf16.msra.mxu0 %v2054
        %2164 = vmatpush.bf16.msra.mxu0 %v2050
        %2165 = vmatpush.bf16.msra.mxu0 %v2046
        %2166 = vmatpush.bf16.msra.mxu0 %v2042
        %2167 = vmatpush.bf16.msra.mxu0 %v2038
        %2168 = vmatpush.bf16.msra.mxu0 %v2034
        %2169 = vmatpush.bf16.msra.mxu0 %v2030
        %2170 = vmatpush.bf16.msra.mxu0 %v2026
        %2171 = vmatmul.bf16.gmra.mxu0 %v1726
        %v2172 = vpop.f32.mrf.mxu0
        %v2173 = vadd.f32 %v2159, %v2172
        %v2174 = vpop.f32.mrf.mxu0
        %v2175 = vadd.f32 %v2161, %v2174
        %2176 = vdwg.mxu0
        %2177 = vmatpush.bf16.msra.mxu0 %v2023
        %2178 = vmatpush.bf16.msra.mxu0 %v2019
        %2179 = vmatpush.bf16.msra.mxu0 %v2015
        %2180 = vmatpush.bf16.msra.mxu0 %v2011
        %2181 = vmatpush.bf16.msra.mxu0 %v2007
        %2182 = vmatpush.bf16.msra.mxu0 %v2003
        %2183 = vmatpush.bf16.msra.mxu0 %v1999
        %2184 = vmatpush.bf16.msra.mxu0 %v1995
        %2185 = vmatmul.bf16.gmra.mxu0 %v1725
        %v2186 = vpop.f32.mrf.mxu0
        %v2187 = vadd.f32 %v1795, %v2186
        %v2188 = vpop.f32.mrf.mxu0
        %v2189 = vadd.f32 %v1795, %v2188
        %2190 = vdwg.mxu0
        %2191 = vmatpush.bf16.msra.mxu0 %v2055
        %2192 = vmatpush.bf16.msra.mxu0 %v2051
        %2193 = vmatpush.bf16.msra.mxu0 %v2047
        %2194 = vmatpush.bf16.msra.mxu0 %v2043
        %2195 = vmatpush.bf16.msra.mxu0 %v2039
        %2196 = vmatpush.bf16.msra.mxu0 %v2035
        %2197 = vmatpush.bf16.msra.mxu0 %v2031
        %2198 = vmatpush.bf16.msra.mxu0 %v2027
        %2199 = vmatmul.bf16.gmra.mxu0 %v1726
        %v2200 = vpop.f32.mrf.mxu0
        %v2201 = vadd.f32 %v2187, %v2200
        %v2202 = vpop.f32.mrf.mxu0
        %v2203 = vadd.f32 %v2189, %v2202
        %2204 = vdwg.mxu0
        %2205 = vmatpush.bf16.msra.mxu0 %v2024
        %2206 = vmatpush.bf16.msra.mxu0 %v2020
        %2207 = vmatpush.bf16.msra.mxu0 %v2016
        %2208 = vmatpush.bf16.msra.mxu0 %v2012
        %2209 = vmatpush.bf16.msra.mxu0 %v2008
        %2210 = vmatpush.bf16.msra.mxu0 %v2004
        %2211 = vmatpush.bf16.msra.mxu0 %v2000
        %2212 = vmatpush.bf16.msra.mxu0 %v1996
        %2213 = vmatmul.bf16.gmra.mxu0 %v1725
        %v2214 = vpop.f32.mrf.mxu0
        %v2215 = vadd.f32 %v1796, %v2214
        %v2216 = vpop.f32.mrf.mxu0
        %v2217 = vadd.f32 %v1796, %v2216
        %2218 = vdwg.mxu0
        %2219 = vmatpush.bf16.msra.mxu0 %v2056
        %2220 = vmatpush.bf16.msra.mxu0 %v2052
        %2221 = vmatpush.bf16.msra.mxu0 %v2048
        %2222 = vmatpush.bf16.msra.mxu0 %v2044
        %2223 = vmatpush.bf16.msra.mxu0 %v2040
        %2224 = vmatpush.bf16.msra.mxu0 %v2036
        %2225 = vmatpush.bf16.msra.mxu0 %v2032
        %2226 = vmatpush.bf16.msra.mxu0 %v2028
        %2227 = vmatmul.bf16.gmra.mxu0 %v1726
        %v2228 = vpop.f32.mrf.mxu0
        %v2229 = vadd.f32 %v2215, %v2228
        %v2230 = vpop.f32.mrf.mxu0
        %v2231 = vadd.f32 %v2217, %v2230
        %2232 = vdwg.mxu0
        %v2233 = vxor.u32 %v2145, 2147483648
        %v2234 = vxor.u32 %v2173, 2147483648
        %v2235 = vxor.u32 %v2201, 2147483648
        %v2236 = vxor.u32 %v2229, 2147483648
        %v2237 = vxor.u32 %v2147, 2147483648
        %v2238 = vxor.u32 %v2175, 2147483648
        %v2239 = vxor.u32 %v2203, 2147483648
        %v2240 = vxor.u32 %v2231, 2147483648
        %v2241 = vmul.f32 %v2233, 1.442695
        %v2242 = vpow.pop %v2241
        %v2243 = vmul.f32 %v2234, 1.442695
        %v2244 = vpow.pop %v2243
        %v2245 = vmul.f32 %v2235, 1.442695
        %v2246 = vpow.pop %v2245
        %v2247 = vmul.f32 %v2236, 1.442695
        %v2248 = vpow.pop %v2247
        %v2249 = vmul.f32 %v2237, 1.442695
        %v2250 = vpow.pop %v2249
        %v2251 = vmul.f32 %v2238, 1.442695
        %v2252 = vpow.pop %v2251
        %v2253 = vmul.f32 %v2239, 1.442695
        %v2254 = vpow.pop %v2253
        %v2255 = vmul.f32 %v2240, 1.442695
        %v2256 = vpow.pop %v2255
        %v2257 = vadd.f32 %v2242, 1.0
        %v2258 = vadd.f32 %v2244, 1.0
        %v2259 = vadd.f32 %v2246, 1.0
        %v2260 = vadd.f32 %v2248, 1.0
        %v2261 = vadd.f32 %v2250, 1.0
        %v2262 = vadd.f32 %v2252, 1.0
        %v2263 = vadd.f32 %v2254, 1.0
        %v2264 = vadd.f32 %v2256, 1.0
        %v2265 = vrcp.pop %v2257
        %v2266 = vmul.f32 %v2257, %v2265
        %v2267 = vsub.f32 1.0, %v2266
        %v2268 = vmul.f32 %v2265, %v2267
        %v2269 = vadd.f32 %v2265, %v2268
        %vm2270 = vweird.f32 %v2257
        %vm2271 = vweird.f32 %v2265
        %vm2272 = vmor %vm2270, %vm2271
        %v2273 = vsel %vm2272, %v2265, %v2269
        %v2274 = vand.u32 2147483647, %v2257
        %vm2275 = vcmp.eq.f32.partialorder %v2274, 8.507059e+37
        %v2276 = vand.u32 %v2257, 2147483648
        %v2277 = vor.u32 1.1754944e-38, %v2276
        %v2278 = vsel %vm2275, %v2277, %v2273
        %v2279 = vmul.f32 1.0, %v2278
        %v2280 = vrcp.pop %v2258
        %v2281 = vmul.f32 %v2258, %v2280
        %v2282 = vsub.f32 1.0, %v2281
        %v2283 = vmul.f32 %v2280, %v2282
        %v2284 = vadd.f32 %v2280, %v2283
        %vm2285 = vweird.f32 %v2258
        %vm2286 = vweird.f32 %v2280
        %vm2287 = vmor %vm2285, %vm2286
        %v2288 = vsel %vm2287, %v2280, %v2284
        %v2289 = vand.u32 2147483647, %v2258
        %vm2290 = vcmp.eq.f32.partialorder %v2289, 8.507059e+37
        %v2291 = vand.u32 %v2258, 2147483648
        %v2292 = vor.u32 1.1754944e-38, %v2291
        %v2293 = vsel %vm2290, %v2292, %v2288
        %v2294 = vmul.f32 1.0, %v2293
        %v2295 = vrcp.pop %v2259
        %v2296 = vmul.f32 %v2259, %v2295
        %v2297 = vsub.f32 1.0, %v2296
        %v2298 = vmul.f32 %v2295, %v2297
        %v2299 = vadd.f32 %v2295, %v2298
        %vm2300 = vweird.f32 %v2259
        %vm2301 = vweird.f32 %v2295
        %vm2302 = vmor %vm2300, %vm2301
        %v2303 = vsel %vm2302, %v2295, %v2299
        %v2304 = vand.u32 2147483647, %v2259
        %vm2305 = vcmp.eq.f32.partialorder %v2304, 8.507059e+37
        %v2306 = vand.u32 %v2259, 2147483648
        %v2307 = vor.u32 1.1754944e-38, %v2306
        %v2308 = vsel %vm2305, %v2307, %v2303
        %v2309 = vmul.f32 1.0, %v2308
        %v2310 = vrcp.pop %v2260
        %v2311 = vmul.f32 %v2260, %v2310
        %v2312 = vsub.f32 1.0, %v2311
        %v2313 = vmul.f32 %v2310, %v2312
        %v2314 = vadd.f32 %v2310, %v2313
        %vm2315 = vweird.f32 %v2260
        %vm2316 = vweird.f32 %v2310
        %vm2317 = vmor %vm2315, %vm2316
        %v2318 = vsel %vm2317, %v2310, %v2314
        %v2319 = vand.u32 2147483647, %v2260
        %vm2320 = vcmp.eq.f32.partialorder %v2319, 8.507059e+37
        %v2321 = vand.u32 %v2260, 2147483648
        %v2322 = vor.u32 1.1754944e-38, %v2321
        %v2323 = vsel %vm2320, %v2322, %v2318
        %v2324 = vmul.f32 1.0, %v2323
        %v2325 = vrcp.pop %v2261
        %v2326 = vmul.f32 %v2261, %v2325
        %v2327 = vsub.f32 1.0, %v2326
        %v2328 = vmul.f32 %v2325, %v2327
        %v2329 = vadd.f32 %v2325, %v2328
        %vm2330 = vweird.f32 %v2261
        %vm2331 = vweird.f32 %v2325
        %vm2332 = vmor %vm2330, %vm2331
        %v2333 = vsel %vm2332, %v2325, %v2329
        %v2334 = vand.u32 2147483647, %v2261
        %vm2335 = vcmp.eq.f32.partialorder %v2334, 8.507059e+37
        %v2336 = vand.u32 %v2261, 2147483648
        %v2337 = vor.u32 1.1754944e-38, %v2336
        %v2338 = vsel %vm2335, %v2337, %v2333
        %v2339 = vmul.f32 1.0, %v2338
        %v2340 = vrcp.pop %v2262
        %v2341 = vmul.f32 %v2262, %v2340
        %v2342 = vsub.f32 1.0, %v2341
        %v2343 = vmul.f32 %v2340, %v2342
        %v2344 = vadd.f32 %v2340, %v2343
        %vm2345 = vweird.f32 %v2262
        %vm2346 = vweird.f32 %v2340
        %vm2347 = vmor %vm2345, %vm2346
        %v2348 = vsel %vm2347, %v2340, %v2344
        %v2349 = vand.u32 2147483647, %v2262
        %vm2350 = vcmp.eq.f32.partialorder %v2349, 8.507059e+37
        %v2351 = vand.u32 %v2262, 2147483648
        %v2352 = vor.u32 1.1754944e-38, %v2351
        %v2353 = vsel %vm2350, %v2352, %v2348
        %v2354 = vmul.f32 1.0, %v2353
        %v2355 = vrcp.pop %v2263
        %v2356 = vmul.f32 %v2263, %v2355
        %v2357 = vsub.f32 1.0, %v2356
        %v2358 = vmul.f32 %v2355, %v2357
        %v2359 = vadd.f32 %v2355, %v2358
        %vm2360 = vweird.f32 %v2263
        %vm2361 = vweird.f32 %v2355
        %vm2362 = vmor %vm2360, %vm2361
        %v2363 = vsel %vm2362, %v2355, %v2359
        %v2364 = vand.u32 2147483647, %v2263
        %vm2365 = vcmp.eq.f32.partialorder %v2364, 8.507059e+37
        %v2366 = vand.u32 %v2263, 2147483648
        %v2367 = vor.u32 1.1754944e-38, %v2366
        %v2368 = vsel %vm2365, %v2367, %v2363
        %v2369 = vmul.f32 1.0, %v2368
        %v2370 = vrcp.pop %v2264
        %v2371 = vmul.f32 %v2264, %v2370
        %v2372 = vsub.f32 1.0, %v2371
        %v2373 = vmul.f32 %v2370, %v2372
        %v2374 = vadd.f32 %v2370, %v2373
        %vm2375 = vweird.f32 %v2264
        %vm2376 = vweird.f32 %v2370
        %vm2377 = vmor %vm2375, %vm2376
        %v2378 = vsel %vm2377, %v2370, %v2374
        %v2379 = vand.u32 2147483647, %v2264
        %vm2380 = vcmp.eq.f32.partialorder %v2379, 8.507059e+37
        %v2381 = vand.u32 %v2264, 2147483648
        %v2382 = vor.u32 1.1754944e-38, %v2381
        %v2383 = vsel %vm2380, %v2382, %v2378
        %v2384 = vmul.f32 1.0, %v2383
        %2385 = vst [vmem:[%s703] sm:$0xff] %v2279
        %2386 = vst [vmem:[%s703 + $0x8] sm:$0xff] %v2294
        %2387 = vst [vmem:[%s703 + $0x10] sm:$0xff] %v2309
        %2388 = vst [vmem:[%s703 + $0x18] sm:$0xff] %v2324
        %2389 = vst [vmem:[%s703 + $0x20] sm:$0xff] %v2339
        %2390 = vst [vmem:[%s703 + $0x28] sm:$0xff] %v2354
        %2391 = vst [vmem:[%s703 + $0x30] sm:$0xff] %v2369
        %2392 = vst [vmem:[%s703 + $0x38] sm:$0xff] %v2384
        %2393 = vst [vmem:[%s710] sm:$0xff] %v1465
        %2394 = vst [vmem:[%s710 + $0x8] sm:$0xff] %v1488
        %2395 = vst [vmem:[%s710 + $0x10] sm:$0xff] %v1468
        %2396 = vst [vmem:[%s710 + $0x18] sm:$0xff] %v1491
        %s2397 = sand.u32 %s355, 1
        %s2398 = scalar_lea.sflag [#allocation4], %s2397
        %s2399 = sand.u32 %s355, 1
        %s2400 = smul.addr %s2399, 64
        %s2401 = scalar_lea.vmem [#allocation20], %s2400
        %s2402 = sand.u32 %s381, 1
        %s2403 = scalar_lea.sflag [#allocation22], %s2402
        %s2404 = sand.u32 %s381, 1
        %s2405 = smul.addr %s2404, 32
        %s2406 = scalar_lea.vmem [#allocation21], %s2405
        // Predicated region
        $region121: #{tpu_custom_call.1} parent=75 // pred_check
          %p2407 = pneg %p365
        $region122: #{tpu_custom_call.1} parent=75 // pred_check_branch
          %2409 = sbr.rel (%p2407) target = $region124
        $region123: #{tpu_custom_call.1} parent=75 // pred_region
          %s2410 = smul.u32 2, %s43
          %2412 = vsyncadd %s2398, 0
          %s2413 = smul.addr %s2410, 4
          %s2414 = smul.addr %s2413, 8
          %s2415 = scalar_lea.hbm %s14, %s2414
          %s2416 = sshll.u32 %s2401, 4
          %s2417 = int_to_ptr.vmem [resolvable:$true] %s2416
          %s2418 = sshll.u32 %s2415, 4
          %s2419 = int_to_ptr.hbm [resolvable:$true] %s2418
          %2424 = dma.vmem_to_hbm [thread:$0]  %s2417, 1024, %s2419, %s2398, 512, 512, 32
        $region124: #{tpu_custom_call.1} parent=75 // pred_fallthru
          _
        // Predicated region
        $region125: #{tpu_custom_call.1} parent=75 // pred_check
          %p2425 = pneg %p391
        $region126: #{tpu_custom_call.1} parent=75 // pred_check_branch
          %2427 = sbr.rel (%p2425) target = $region128
        $region127: #{tpu_custom_call.1} parent=75 // pred_region
          %s2428 = smul.u32 2, %s43
          %2430 = vsyncadd %s2403, 0
          %s2431 = smul.addr %s2428, 2
          %s2432 = smul.addr %s2431, 8
          %s2433 = scalar_lea.hbm %s15, %s2432
          %s2434 = sshll.u32 %s2406, 4
          %s2435 = int_to_ptr.vmem [resolvable:$true] %s2434
          %s2436 = sshll.u32 %s2433, 4
          %s2437 = int_to_ptr.hbm [resolvable:$true] %s2436
          %2442 = dma.vmem_to_hbm [thread:$0]  %s2435, 512, %s2437, %s2403, 256, 256, 16
        $region128: #{tpu_custom_call.1} parent=75 // pred_fallthru
          _
      $region76: #{tpu_custom_call.1} parent=5 // pred_fallthru
        _
      %p2443 = scmp.le.s32.totalorder 2, %s38
      // Predicated region
      $region129: #{tpu_custom_call.1} parent=5 // pred_check
        %p2444 = pneg %p2443
      $region130: #{tpu_custom_call.1} parent=5 // pred_check_branch
        %2446 = sbr.rel (%p2444) target = $region132
      $region131: #{tpu_custom_call.1} parent=5 // pred_region
        %s2447 = ssub.s32 %s38, 2
        // Predicated region
        $region133: #{tpu_custom_call.1} parent=131 // pred_check
          %p2448 = pneg %p371
        $region134: #{tpu_custom_call.1} parent=131 // pred_check_branch
          %2450 = sbr.rel (%p2448) target = $region136
        $region135: #{tpu_custom_call.1} parent=131 // pred_region
          %s2451 = sand.u32 %s356, 1
          %s2452 = scalar_lea.sflag [#allocation4], %s2451
          %s2453 = sand.u32 %s356, 1
          %s2454 = smul.addr %s2453, 64
          %s2455 = scalar_lea.vmem [#allocation20], %s2454
          %2457 = dma.done %s2452, 1024
        $region136: #{tpu_custom_call.1} parent=131 // pred_fallthru
          _
        // Predicated region
        $region137: #{tpu_custom_call.1} parent=131 // pred_check
          %p2458 = pneg %p397
        $region138: #{tpu_custom_call.1} parent=131 // pred_check_branch
          %2460 = sbr.rel (%p2458) target = $region140
        $region139: #{tpu_custom_call.1} parent=131 // pred_region
          %s2461 = sand.u32 %s382, 1
          %s2462 = scalar_lea.sflag [#allocation22], %s2461
          %s2463 = sand.u32 %s382, 1
          %s2464 = smul.addr %s2463, 32
          %s2465 = scalar_lea.vmem [#allocation21], %s2464
          %2467 = dma.done %s2462, 512
        $region140: #{tpu_custom_call.1} parent=131 // pred_fallthru
          _
      $region132: #{tpu_custom_call.1} parent=5 // pred_fallthru
        _
    $region6: #{tpu_custom_call.1} parent=1 // loop_footer
      %s42 = sadd.s32 1, %s38
    $region7: #{tpu_custom_call.1} parent=1 // loop_footer_branch
      %37 = sbr.rel target = $region3
    $region8: #{tpu_custom_call.1} parent=1 // loop_exit
      _
    %2468 = vsyncpa [#allocation3], 1
    %s2469 = scalar_lea.sflag [#allocation3], 1
    %2470 = vsyncpa %s2469, 1
    %2471 = vsyncpa [#allocation6], 1
    %s2472 = scalar_lea.sflag [#allocation6], 1
    %2473 = vsyncpa %s2472, 1
    %2474 = vsyncpa [#allocation9], 1
    %2475 = vsyncpa [#allocation12], 1
    %2476 = vsyncpa [#allocation15], 1
    %2477 = vsyncpa [#allocation18], 1
    %2478 = vsyncpa [#allocation4], 1
    %s2479 = scalar_lea.sflag [#allocation4], 1
    %2480 = vsyncpa %s2479, 1
    %2481 = vsyncpa [#allocation22], 1
    %s2482 = scalar_lea.sflag [#allocation22], 1
    %2483 = vsyncpa %s2482, 1

</llo_original>
